<compile_context>
chip_gen: v5e
topology: v5e:2x2
jax: 0.10.0
libtpu: 0.0.40
codegen_flags: <defaults>
</compile_context>

<pallas_src>
import functools

import jax
import jax.numpy as jnp
from jax.experimental import pallas as pl
from jax.experimental.pallas import tpu as pltpu


def basic_block_kernel(xpad_ref, mask_ref, w1_ref, w2_ref, b1_ref, b2_ref,
                       out_ref, mid_ref, *, H, W):
    # xpad_ref : ((H+2)*(W+2)+2, Cin) bf16 — zero-padded input, padded spatial grid
    #            flattened onto sublanes, channels on lanes (+2 guard rows at the end).
    # mask_ref : (H*(W+2), 1) f32 — 1.0 on real output pixels, 0.0 on the 2 garbage
    #            columns per image row of the accumulator layout.
    # w1_ref   : (9, Cin,  Cout) bf16 — tap-major weights with BN1 scale folded in.
    # w2_ref   : (9, Cout, Cout) bf16 — BN2 scale folded in.
    # b*_ref   : (1, Cout) f32 folded BatchNorm biases.
    # out_ref  : (H*(W+2), Cout) f32 — includes the garbage columns (sliced off outside).
    # mid_ref  : VMEM scratch, same row count as xpad_ref, Cout lanes, bf16 — padded
    #            conv1 output used as conv2's input.
    Wp = W + 2
    M = H * Wp

    def conv3x3(src_ref, w_ref):
        cout = w_ref.shape[-1]
        acc = jnp.zeros((M, cout), jnp.float32)
        for dh in range(3):
            for dw in range(3):
                tap = src_ref[pl.ds(dh * Wp + dw, M), :]          # sublane-offset slice
                acc = acc + jnp.dot(tap, w_ref[dh * 3 + dw],
                                    preferred_element_type=jnp.float32)
        return acc
        # NOTE: on v7x the MRB accumulates these 9 dots nearly for free; on v5e/v6e the
        # 8 f32 accumulate-adds are VPU filler under the MXU time at real channel counts.

    # ---- conv1 (+ folded BN1 scale): bias + ReLU; garbage rows forced to zero so the
    #      single interior store below also writes mid's halo columns as zeros. ----
    acc1 = conv3x3(xpad_ref, w1_ref)
    h1 = jnp.maximum(acc1 + b1_ref[...], 0.0) * mask_ref[...]

    # ---- re-pad conv1 output for conv2: one big interior store + two small strips ----
    zeros_strip = jnp.zeros((Wp + 1, h1.shape[-1]), jnp.bfloat16)
    mid_ref[pl.ds(0, Wp + 1), :] = zeros_strip                  # pad row 0 + halo (1,0)
    mid_ref[pl.ds(Wp + 1, M), :] = h1.astype(jnp.bfloat16)      # interior (+ halo cols)
    mid_ref[pl.ds(Wp + 1 + M, Wp + 1), :] = zeros_strip         # pad row H+1 + guard rows

    # ---- conv2 (+ folded BN2 scale): bias + residual (centre tap of xpad) + ReLU ----
    acc2 = conv3x3(mid_ref, w2_ref)
    ident = xpad_ref[pl.ds(Wp + 1, M), :].astype(jnp.float32)   # original x, same layout
    out_ref[...] = jnp.maximum(acc2 + b2_ref[...] + ident, 0.0).astype(out_ref.dtype)


def basic_block_forward_nhwc(x, w1, w2, s1, b1, s2, b2):
    """x: (N, H, W, Cin) NHWC; w1/w2: HWIO; s*/b*: (Cout,) folded eval-mode BN affine."""
    N, H, W, Cin = x.shape
    Cout = w1.shape[3]
    assert Cin == Cout, "stride=1 / downsample=None BasicBlock requires Cin == Cout"
    Wp, M = W + 2, H * (W + 2)
    R = (H + 2) * Wp + 2     # +2 guard rows keep the (dh=2, dw=2) tap slice in bounds

    # Fold BN scale into the conv weights (BN in eval mode is an affine after the conv).
    w1f = (w1 * s1.reshape(1, 1, 1, Cout)).reshape(9, Cin, Cout).astype(jnp.bfloat16)
    w2f = (w2 * s2.reshape(1, 1, 1, Cout)).reshape(9, Cout, Cout).astype(jnp.bfloat16)
    b1r = b1.reshape(1, Cout).astype(jnp.float32)
    b2r = b2.reshape(1, Cout).astype(jnp.float32)

    # Zero-pad spatially and flatten the padded spatial grid onto sublanes (channels
    # stay on lanes). One fused cast+pad+reshape XLA pass; no layout transposes.
    xpad = jnp.pad(x.astype(jnp.bfloat16), ((0, 0), (1, 1), (1, 1), (0, 0)))
    xflat = jnp.pad(xpad.reshape(N, (H + 2) * Wp, Cin), ((0, 0), (0, 2), (0, 0)))

    # Row-validity mask for the (H*(W+2), C) accumulator layout: (i mod (W+2)) < W.
    mask = ((jnp.arange(M, dtype=jnp.int32) % Wp) < W).astype(jnp.float32).reshape(M, 1)

    # Per-step VMEM footprint (double-buffered ins/outs, scratch, live f32 temps) + margin.
    est = (2 * R * Cin * 2 + 2 * (9 * Cin * Cout + 9 * Cout * Cout) * 2
           + 2 * M * Cout * 4 + R * Cout * 2 + 8 * M * Cout * 4 + 2 * M * 4)
    vmem_limit = min(max(32 * 1024 * 1024, 2 * est), 112 * 1024 * 1024)

    kernel = functools.partial(basic_block_kernel, H=H, W=W)
    out_flat = pl.pallas_call(
        kernel,
        out_shape=jax.ShapeDtypeStruct((N, M, Cout), jnp.float32),
        grid_spec=pltpu.PrefetchScalarGridSpec(
            num_scalar_prefetch=0,
            grid=(N,),
            in_specs=[
                pl.BlockSpec((None, R, Cin), lambda n: (n, 0, 0)),
                pl.BlockSpec((M, 1), lambda n: (0, 0)),
                pl.BlockSpec((9, Cin, Cout), lambda n: (0, 0, 0)),
                pl.BlockSpec((9, Cout, Cout), lambda n: (0, 0, 0)),
                pl.BlockSpec((1, Cout), lambda n: (0, 0)),
                pl.BlockSpec((1, Cout), lambda n: (0, 0)),
            ],
            out_specs=pl.BlockSpec((None, M, Cout), lambda n: (n, 0, 0)),
            scratch_shapes=[pltpu.VMEM((R, Cout), jnp.bfloat16)],
        ),
        compiler_params=pltpu.CompilerParams(
            dimension_semantics=("parallel",),
            vmem_limit_bytes=int(vmem_limit),
        ),
    )(xflat, mask, w1f, w2f, b1r, b2r)

    # Discard the 2 garbage columns per image row (the only output post-processing).
    return out_flat.reshape(N, H, Wp, Cout)[:, :, :W, :]


def basic_block_forward_nchw(x_nchw, w1, w2, s1, b1, s2, b2):
    """Thin NCHW adapter matching the PyTorch module's I/O convention."""
    x = jnp.transpose(x_nchw, (0, 2, 3, 1))
    y = basic_block_forward_nhwc(x, w1, w2, s1, b1, s2, b2)
    return jnp.transpose(y, (0, 3, 1, 2)).astype(x_nchw.dtype)


def ref_forward_nhwc(x, w1, w2, s1, b1, s2, b2):
    """Pure-JAX f32 reference (NHWC, HWIO weights)."""
    dn = ("NHWC", "HWIO", "NHWC")
    y = jax.lax.conv_general_dilated(x, w1, (1, 1), ((1, 1), (1, 1)),
                                     dimension_numbers=dn)
    y = jnp.maximum(y * s1 + b1, 0.0)
    y = jax.lax.conv_general_dilated(y, w2, (1, 1), ((1, 1), (1, 1)),
                                     dimension_numbers=dn)
    return jnp.maximum(y * s2 + b2 + x, 0.0)


if __name__ == "__main__":
    key = jax.random.PRNGKey(0)
    k1, k2, kx, kg, kb, km, kv = jax.random.split(key, 7)

    # small NHWC shapes consistent with the module (inplanes == planes, stride=1)
    N, H, W, C = 2, 16, 16, 4
    planes = C
    eps = 1e-5

    # conv weights: kaiming_normal_(mode='fan_out', nonlinearity='relu'), HWIO layout
    fan_out = planes * 3 * 3
    std = (2.0 / fan_out) ** 0.5
    w1 = jax.random.normal(k1, (3, 3, C, planes), jnp.float32) * std
    w2 = jax.random.normal(k2, (3, 3, planes, planes), jnp.float32) * std

    # eval-mode BatchNorm folded to a per-channel affine; nontrivial stats so the
    # weight/bias folding is actually exercised.
    gamma = 1.0 + 0.1 * jax.random.normal(kg, (planes,), jnp.float32)
    beta = 0.1 * jax.random.normal(kb, (planes,), jnp.float32)
    mean = 0.1 * jax.random.normal(km, (planes,), jnp.float32)
    var = 1.0 + 0.1 * jax.random.uniform(kv, (planes,), jnp.float32)
    s1 = gamma / jnp.sqrt(var + eps)
    b1 = beta - mean * s1
    s2 = gamma / jnp.sqrt(var + eps)
    b2 = beta - mean * s2

    x = jax.random.normal(kx, (N, H, W, C), jnp.float32)

    out = jax.block_until_ready(basic_block_forward_nhwc(x, w1, w2, s1, b1, s2, b2))
    ref = ref_forward_nhwc(x, w1, w2, s1, b1, s2, b2)
    assert out.shape == ref.shape == (N, H, W, C)

    # bf16 MXU operands / bf16 residual path with f32 accumulation -> relaxed tolerance
    max_err = jnp.max(jnp.abs(out - ref))
    assert jnp.allclose(out, ref, atol=5e-2, rtol=5e-2), f"max err = {max_err}"

    print("KERNEL_OK")
</pallas_src>

<mosaic_0001>
module attributes {stable_mosaic.version = 11 : i64} {
  func.func @basic_block_kernel(%arg0: i32, %arg1: memref<1x326x4xbf16, #tpu.memory_space<vmem>>, %arg2: memref<288x1xf32, #tpu.memory_space<vmem>>, %arg3: memref<9x4x4xbf16, #tpu.memory_space<vmem>>, %arg4: memref<9x4x4xbf16, #tpu.memory_space<vmem>>, %arg5: memref<1x4xf32, #tpu.memory_space<vmem>>, %arg6: memref<1x4xf32, #tpu.memory_space<vmem>>, %arg7: memref<1x288x4xf32, #tpu.memory_space<vmem>>, %arg8: memref<326x4xbf16, #tpu.memory_space<vmem>>) attributes {dimension_semantics = [#tpu.dimension_semantics<parallel>], iteration_bounds = array<i64: 2>, scalar_prefetch = 0 : i64, scratch_operands = 1 : i64, tpu.core_type = #tpu.core_type<tc>, window_params = [{transform_indices = @transform_0, window_bounds = array<i64: 1, 326, 4>}, {pipeline_mode = #tpu.pipeline_mode<synchronous>, transform_indices = @transform_1, window_bounds = array<i64: 288, 1>}, {pipeline_mode = #tpu.pipeline_mode<synchronous>, transform_indices = @transform_2, window_bounds = array<i64: 9, 4, 4>}, {pipeline_mode = #tpu.pipeline_mode<synchronous>, transform_indices = @transform_3, window_bounds = array<i64: 9, 4, 4>}, {pipeline_mode = #tpu.pipeline_mode<synchronous>, transform_indices = @transform_4, window_bounds = array<i64: 1, 4>}, {pipeline_mode = #tpu.pipeline_mode<synchronous>, transform_indices = @transform_5, window_bounds = array<i64: 1, 4>}, {transform_indices = @transform_6, window_bounds = array<i64: 1, 288, 4>}]} {
    %cst = arith.constant 0.000000e+00 : f32
    %0 = vector.broadcast %cst : f32 to vector<288x4xf32>
    %c0 = arith.constant 0 : index
    %c0_0 = arith.constant 0 : index
    %c0_1 = arith.constant 0 : index
    %1 = vector.load %arg1[%c0, %c0_0, %c0_1] : memref<1x326x4xbf16, #tpu.memory_space<vmem>>, vector<1x288x4xbf16>
    %2 = vector.shape_cast %1 : vector<1x288x4xbf16> to vector<288x4xbf16>
    %c0_2 = arith.constant 0 : index
    %c0_3 = arith.constant 0 : index
    %c0_4 = arith.constant 0 : index
    %3 = vector.load %arg3[%c0_2, %c0_3, %c0_4] : memref<9x4x4xbf16, #tpu.memory_space<vmem>>, vector<1x4x4xbf16>
    %4 = vector.shape_cast %3 : vector<1x4x4xbf16> to vector<4x4xbf16>
    %cst_5 = arith.constant dense<0.000000e+00> : vector<288x4xf32>
    %5 = tpu.matmul %2, %4, %cst_5 {dimension_numbers = #tpu.dot_dimension_numbers<[1], [0], [0], [1], [0, 0, 1, 1], [], []>} : vector<288x4xbf16>, vector<4x4xbf16>, vector<288x4xf32> -> vector<288x4xf32>
    %6 = arith.addf %0, %5 : vector<288x4xf32>
    %c0_6 = arith.constant 0 : index
    %c1 = arith.constant 1 : index
    %c0_7 = arith.constant 0 : index
    %7 = vector.load %arg1[%c0_6, %c1, %c0_7] : memref<1x326x4xbf16, #tpu.memory_space<vmem>>, vector<1x288x4xbf16>
    %8 = vector.shape_cast %7 : vector<1x288x4xbf16> to vector<288x4xbf16>
    %c1_8 = arith.constant 1 : index
    %c0_9 = arith.constant 0 : index
    %c0_10 = arith.constant 0 : index
    %9 = vector.load %arg3[%c1_8, %c0_9, %c0_10] : memref<9x4x4xbf16, #tpu.memory_space<vmem>>, vector<1x4x4xbf16>
    %10 = vector.shape_cast %9 : vector<1x4x4xbf16> to vector<4x4xbf16>
    %cst_11 = arith.constant dense<0.000000e+00> : vector<288x4xf32>
    %11 = tpu.matmul %8, %10, %cst_11 {dimension_numbers = #tpu.dot_dimension_numbers<[1], [0], [0], [1], [0, 0, 1, 1], [], []>} : vector<288x4xbf16>, vector<4x4xbf16>, vector<288x4xf32> -> vector<288x4xf32>
    %12 = arith.addf %6, %11 : vector<288x4xf32>
    %c0_12 = arith.constant 0 : index
    %c2 = arith.constant 2 : index
    %c0_13 = arith.constant 0 : index
    %13 = vector.load %arg1[%c0_12, %c2, %c0_13] : memref<1x326x4xbf16, #tpu.memory_space<vmem>>, vector<1x288x4xbf16>
    %14 = vector.shape_cast %13 : vector<1x288x4xbf16> to vector<288x4xbf16>
    %c2_14 = arith.constant 2 : index
    %c0_15 = arith.constant 0 : index
    %c0_16 = arith.constant 0 : index
    %15 = vector.load %arg3[%c2_14, %c0_15, %c0_16] : memref<9x4x4xbf16, #tpu.memory_space<vmem>>, vector<1x4x4xbf16>
    %16 = vector.shape_cast %15 : vector<1x4x4xbf16> to vector<4x4xbf16>
    %cst_17 = arith.constant dense<0.000000e+00> : vector<288x4xf32>
    %17 = tpu.matmul %14, %16, %cst_17 {dimension_numbers = #tpu.dot_dimension_numbers<[1], [0], [0], [1], [0, 0, 1, 1], [], []>} : vector<288x4xbf16>, vector<4x4xbf16>, vector<288x4xf32> -> vector<288x4xf32>
    %18 = arith.addf %12, %17 : vector<288x4xf32>
    %c0_18 = arith.constant 0 : index
    %c18 = arith.constant 18 : index
    %c0_19 = arith.constant 0 : index
    %19 = vector.load %arg1[%c0_18, %c18, %c0_19] : memref<1x326x4xbf16, #tpu.memory_space<vmem>>, vector<1x288x4xbf16>
    %20 = vector.shape_cast %19 : vector<1x288x4xbf16> to vector<288x4xbf16>
    %c3 = arith.constant 3 : index
    %c0_20 = arith.constant 0 : index
    %c0_21 = arith.constant 0 : index
    %21 = vector.load %arg3[%c3, %c0_20, %c0_21] : memref<9x4x4xbf16, #tpu.memory_space<vmem>>, vector<1x4x4xbf16>
    %22 = vector.shape_cast %21 : vector<1x4x4xbf16> to vector<4x4xbf16>
    %cst_22 = arith.constant dense<0.000000e+00> : vector<288x4xf32>
    %23 = tpu.matmul %20, %22, %cst_22 {dimension_numbers = #tpu.dot_dimension_numbers<[1], [0], [0], [1], [0, 0, 1, 1], [], []>} : vector<288x4xbf16>, vector<4x4xbf16>, vector<288x4xf32> -> vector<288x4xf32>
    %24 = arith.addf %18, %23 : vector<288x4xf32>
    %c0_23 = arith.constant 0 : index
    %c19 = arith.constant 19 : index
    %c0_24 = arith.constant 0 : index
    %25 = vector.load %arg1[%c0_23, %c19, %c0_24] : memref<1x326x4xbf16, #tpu.memory_space<vmem>>, vector<1x288x4xbf16>
    %26 = vector.shape_cast %25 : vector<1x288x4xbf16> to vector<288x4xbf16>
    %c4 = arith.constant 4 : index
    %c0_25 = arith.constant 0 : index
    %c0_26 = arith.constant 0 : index
    %27 = vector.load %arg3[%c4, %c0_25, %c0_26] : memref<9x4x4xbf16, #tpu.memory_space<vmem>>, vector<1x4x4xbf16>
    %28 = vector.shape_cast %27 : vector<1x4x4xbf16> to vector<4x4xbf16>
    %cst_27 = arith.constant dense<0.000000e+00> : vector<288x4xf32>
    %29 = tpu.matmul %26, %28, %cst_27 {dimension_numbers = #tpu.dot_dimension_numbers<[1], [0], [0], [1], [0, 0, 1, 1], [], []>} : vector<288x4xbf16>, vector<4x4xbf16>, vector<288x4xf32> -> vector<288x4xf32>
    %30 = arith.addf %24, %29 : vector<288x4xf32>
    %c0_28 = arith.constant 0 : index
    %c20 = arith.constant 20 : index
    %c0_29 = arith.constant 0 : index
    %31 = vector.load %arg1[%c0_28, %c20, %c0_29] : memref<1x326x4xbf16, #tpu.memory_space<vmem>>, vector<1x288x4xbf16>
    %32 = vector.shape_cast %31 : vector<1x288x4xbf16> to vector<288x4xbf16>
    %c5 = arith.constant 5 : index
    %c0_30 = arith.constant 0 : index
    %c0_31 = arith.constant 0 : index
    %33 = vector.load %arg3[%c5, %c0_30, %c0_31] : memref<9x4x4xbf16, #tpu.memory_space<vmem>>, vector<1x4x4xbf16>
    %34 = vector.shape_cast %33 : vector<1x4x4xbf16> to vector<4x4xbf16>
    %cst_32 = arith.constant dense<0.000000e+00> : vector<288x4xf32>
    %35 = tpu.matmul %32, %34, %cst_32 {dimension_numbers = #tpu.dot_dimension_numbers<[1], [0], [0], [1], [0, 0, 1, 1], [], []>} : vector<288x4xbf16>, vector<4x4xbf16>, vector<288x4xf32> -> vector<288x4xf32>
    %36 = arith.addf %30, %35 : vector<288x4xf32>
    %c0_33 = arith.constant 0 : index
    %c36 = arith.constant 36 : index
    %c0_34 = arith.constant 0 : index
    %37 = vector.load %arg1[%c0_33, %c36, %c0_34] : memref<1x326x4xbf16, #tpu.memory_space<vmem>>, vector<1x288x4xbf16>
    %38 = vector.shape_cast %37 : vector<1x288x4xbf16> to vector<288x4xbf16>
    %c6 = arith.constant 6 : index
    %c0_35 = arith.constant 0 : index
    %c0_36 = arith.constant 0 : index
    %39 = vector.load %arg3[%c6, %c0_35, %c0_36] : memref<9x4x4xbf16, #tpu.memory_space<vmem>>, vector<1x4x4xbf16>
    %40 = vector.shape_cast %39 : vector<1x4x4xbf16> to vector<4x4xbf16>
    %cst_37 = arith.constant dense<0.000000e+00> : vector<288x4xf32>
    %41 = tpu.matmul %38, %40, %cst_37 {dimension_numbers = #tpu.dot_dimension_numbers<[1], [0], [0], [1], [0, 0, 1, 1], [], []>} : vector<288x4xbf16>, vector<4x4xbf16>, vector<288x4xf32> -> vector<288x4xf32>
    %42 = arith.addf %36, %41 : vector<288x4xf32>
    %c0_38 = arith.constant 0 : index
    %c37 = arith.constant 37 : index
    %c0_39 = arith.constant 0 : index
    %43 = vector.load %arg1[%c0_38, %c37, %c0_39] : memref<1x326x4xbf16, #tpu.memory_space<vmem>>, vector<1x288x4xbf16>
    %44 = vector.shape_cast %43 : vector<1x288x4xbf16> to vector<288x4xbf16>
    %c7 = arith.constant 7 : index
    %c0_40 = arith.constant 0 : index
    %c0_41 = arith.constant 0 : index
    %45 = vector.load %arg3[%c7, %c0_40, %c0_41] : memref<9x4x4xbf16, #tpu.memory_space<vmem>>, vector<1x4x4xbf16>
    %46 = vector.shape_cast %45 : vector<1x4x4xbf16> to vector<4x4xbf16>
    %cst_42 = arith.constant dense<0.000000e+00> : vector<288x4xf32>
    %47 = tpu.matmul %44, %46, %cst_42 {dimension_numbers = #tpu.dot_dimension_numbers<[1], [0], [0], [1], [0, 0, 1, 1], [], []>} : vector<288x4xbf16>, vector<4x4xbf16>, vector<288x4xf32> -> vector<288x4xf32>
    %48 = arith.addf %42, %47 : vector<288x4xf32>
    %c0_43 = arith.constant 0 : index
    %c38 = arith.constant 38 : index
    %c0_44 = arith.constant 0 : index
    %49 = vector.load %arg1[%c0_43, %c38, %c0_44] : memref<1x326x4xbf16, #tpu.memory_space<vmem>>, vector<1x288x4xbf16>
    %50 = vector.shape_cast %49 : vector<1x288x4xbf16> to vector<288x4xbf16>
    %c8 = arith.constant 8 : index
    %c0_45 = arith.constant 0 : index
    %c0_46 = arith.constant 0 : index
    %51 = vector.load %arg3[%c8, %c0_45, %c0_46] : memref<9x4x4xbf16, #tpu.memory_space<vmem>>, vector<1x4x4xbf16>
    %52 = vector.shape_cast %51 : vector<1x4x4xbf16> to vector<4x4xbf16>
    %cst_47 = arith.constant dense<0.000000e+00> : vector<288x4xf32>
    %53 = tpu.matmul %50, %52, %cst_47 {dimension_numbers = #tpu.dot_dimension_numbers<[1], [0], [0], [1], [0, 0, 1, 1], [], []>} : vector<288x4xbf16>, vector<4x4xbf16>, vector<288x4xf32> -> vector<288x4xf32>
    %54 = arith.addf %48, %53 : vector<288x4xf32>
    %c0_48 = arith.constant 0 : index
    %c0_49 = arith.constant 0 : index
    %55 = vector.load %arg5[%c0_48, %c0_49] : memref<1x4xf32, #tpu.memory_space<vmem>>, vector<1x4xf32>
    %56 = vector.broadcast %55 : vector<1x4xf32> to vector<288x4xf32>
    %57 = arith.addf %54, %56 : vector<288x4xf32>
    %cst_50 = arith.constant 0.000000e+00 : f32
    %58 = vector.broadcast %cst_50 : f32 to vector<288x4xf32>
    %59 = arith.maximumf %57, %58 : vector<288x4xf32>
    %c0_51 = arith.constant 0 : index
    %c0_52 = arith.constant 0 : index
    %60 = vector.load %arg2[%c0_51, %c0_52] : memref<288x1xf32, #tpu.memory_space<vmem>>, vector<288x1xf32>
    %61 = vector.broadcast %60 : vector<288x1xf32> to vector<288x4xf32>
    %62 = arith.mulf %59, %61 : vector<288x4xf32>
    %cst_53 = arith.constant 0.000000e+00 : bf16
    %63 = vector.broadcast %cst_53 : bf16 to vector<19x4xbf16>
    %c0_54 = arith.constant 0 : index
    %c0_55 = arith.constant 0 : index
    %64 = vector.load %arg8[%c0_54, %c0_55] : memref<326x4xbf16, #tpu.memory_space<vmem>>, vector<19x4xbf16>
    tpu.vector_store %arg8[%c0_54, %c0_55], %63 {strides = array<i32>} : memref<326x4xbf16, #tpu.memory_space<vmem>>, vector<19x4xbf16>,
    %65 = arith.truncf %62 : vector<288x4xf32> to vector<288x4xbf16>
    %c19_56 = arith.constant 19 : index
    %c0_57 = arith.constant 0 : index
    %66 = vector.load %arg8[%c19_56, %c0_57] : memref<326x4xbf16, #tpu.memory_space<vmem>>, vector<288x4xbf16>
    tpu.vector_store %arg8[%c19_56, %c0_57], %65 {strides = array<i32>} : memref<326x4xbf16, #tpu.memory_space<vmem>>, vector<288x4xbf16>,
    %c307 = arith.constant 307 : index
    %c0_58 = arith.constant 0 : index
    %67 = vector.load %arg8[%c307, %c0_58] : memref<326x4xbf16, #tpu.memory_space<vmem>>, vector<19x4xbf16>
    tpu.vector_store %arg8[%c307, %c0_58], %63 {strides = array<i32>} : memref<326x4xbf16, #tpu.memory_space<vmem>>, vector<19x4xbf16>,
    %cst_59 = arith.constant 0.000000e+00 : f32
    %68 = vector.broadcast %cst_59 : f32 to vector<288x4xf32>
    %c0_60 = arith.constant 0 : index
    %c0_61 = arith.constant 0 : index
    %69 = vector.load %arg8[%c0_60, %c0_61] : memref<326x4xbf16, #tpu.memory_space<vmem>>, vector<288x4xbf16>
    %c0_62 = arith.constant 0 : index
    %c0_63 = arith.constant 0 : index
    %c0_64 = arith.constant 0 : index
    %70 = vector.load %arg4[%c0_62, %c0_63, %c0_64] : memref<9x4x4xbf16, #tpu.memory_space<vmem>>, vector<1x4x4xbf16>
    %71 = vector.shape_cast %70 : vector<1x4x4xbf16> to vector<4x4xbf16>
    %cst_65 = arith.constant dense<0.000000e+00> : vector<288x4xf32>
    %72 = tpu.matmul %69, %71, %cst_65 {dimension_numbers = #tpu.dot_dimension_numbers<[1], [0], [0], [1], [0, 0, 1, 1], [], []>} : vector<288x4xbf16>, vector<4x4xbf16>, vector<288x4xf32> -> vector<288x4xf32>
    %73 = arith.addf %68, %72 : vector<288x4xf32>
    %c1_66 = arith.constant 1 : index
    %c0_67 = arith.constant 0 : index
    %74 = vector.load %arg8[%c1_66, %c0_67] : memref<326x4xbf16, #tpu.memory_space<vmem>>, vector<288x4xbf16>
    %c1_68 = arith.constant 1 : index
    %c0_69 = arith.constant 0 : index
    %c0_70 = arith.constant 0 : index
    %75 = vector.load %arg4[%c1_68, %c0_69, %c0_70] : memref<9x4x4xbf16, #tpu.memory_space<vmem>>, vector<1x4x4xbf16>
    %76 = vector.shape_cast %75 : vector<1x4x4xbf16> to vector<4x4xbf16>
    %cst_71 = arith.constant dense<0.000000e+00> : vector<288x4xf32>
    %77 = tpu.matmul %74, %76, %cst_71 {dimension_numbers = #tpu.dot_dimension_numbers<[1], [0], [0], [1], [0, 0, 1, 1], [], []>} : vector<288x4xbf16>, vector<4x4xbf16>, vector<288x4xf32> -> vector<288x4xf32>
    %78 = arith.addf %73, %77 : vector<288x4xf32>
    %c2_72 = arith.constant 2 : index
    %c0_73 = arith.constant 0 : index
    %79 = vector.load %arg8[%c2_72, %c0_73] : memref<326x4xbf16, #tpu.memory_space<vmem>>, vector<288x4xbf16>
    %c2_74 = arith.constant 2 : index
    %c0_75 = arith.constant 0 : index
    %c0_76 = arith.constant 0 : index
    %80 = vector.load %arg4[%c2_74, %c0_75, %c0_76] : memref<9x4x4xbf16, #tpu.memory_space<vmem>>, vector<1x4x4xbf16>
    %81 = vector.shape_cast %80 : vector<1x4x4xbf16> to vector<4x4xbf16>
    %cst_77 = arith.constant dense<0.000000e+00> : vector<288x4xf32>
    %82 = tpu.matmul %79, %81, %cst_77 {dimension_numbers = #tpu.dot_dimension_numbers<[1], [0], [0], [1], [0, 0, 1, 1], [], []>} : vector<288x4xbf16>, vector<4x4xbf16>, vector<288x4xf32> -> vector<288x4xf32>
    %83 = arith.addf %78, %82 : vector<288x4xf32>
    %c18_78 = arith.constant 18 : index
    %c0_79 = arith.constant 0 : index
    %84 = vector.load %arg8[%c18_78, %c0_79] : memref<326x4xbf16, #tpu.memory_space<vmem>>, vector<288x4xbf16>
    %c3_80 = arith.constant 3 : index
    %c0_81 = arith.constant 0 : index
    %c0_82 = arith.constant 0 : index
    %85 = vector.load %arg4[%c3_80, %c0_81, %c0_82] : memref<9x4x4xbf16, #tpu.memory_space<vmem>>, vector<1x4x4xbf16>
    %86 = vector.shape_cast %85 : vector<1x4x4xbf16> to vector<4x4xbf16>
    %cst_83 = arith.constant dense<0.000000e+00> : vector<288x4xf32>
    %87 = tpu.matmul %84, %86, %cst_83 {dimension_numbers = #tpu.dot_dimension_numbers<[1], [0], [0], [1], [0, 0, 1, 1], [], []>} : vector<288x4xbf16>, vector<4x4xbf16>, vector<288x4xf32> -> vector<288x4xf32>
    %88 = arith.addf %83, %87 : vector<288x4xf32>
    %c19_84 = arith.constant 19 : index
    %c0_85 = arith.constant 0 : index
    %89 = vector.load %arg8[%c19_84, %c0_85] : memref<326x4xbf16, #tpu.memory_space<vmem>>, vector<288x4xbf16>
    %c4_86 = arith.constant 4 : index
    %c0_87 = arith.constant 0 : index
    %c0_88 = arith.constant 0 : index
    %90 = vector.load %arg4[%c4_86, %c0_87, %c0_88] : memref<9x4x4xbf16, #tpu.memory_space<vmem>>, vector<1x4x4xbf16>
    %91 = vector.shape_cast %90 : vector<1x4x4xbf16> to vector<4x4xbf16>
    %cst_89 = arith.constant dense<0.000000e+00> : vector<288x4xf32>
    %92 = tpu.matmul %89, %91, %cst_89 {dimension_numbers = #tpu.dot_dimension_numbers<[1], [0], [0], [1], [0, 0, 1, 1], [], []>} : vector<288x4xbf16>, vector<4x4xbf16>, vector<288x4xf32> -> vector<288x4xf32>
    %93 = arith.addf %88, %92 : vector<288x4xf32>
    %c20_90 = arith.constant 20 : index
    %c0_91 = arith.constant 0 : index
    %94 = vector.load %arg8[%c20_90, %c0_91] : memref<326x4xbf16, #tpu.memory_space<vmem>>, vector<288x4xbf16>
    %c5_92 = arith.constant 5 : index
    %c0_93 = arith.constant 0 : index
    %c0_94 = arith.constant 0 : index
    %95 = vector.load %arg4[%c5_92, %c0_93, %c0_94] : memref<9x4x4xbf16, #tpu.memory_space<vmem>>, vector<1x4x4xbf16>
    %96 = vector.shape_cast %95 : vector<1x4x4xbf16> to vector<4x4xbf16>
    %cst_95 = arith.constant dense<0.000000e+00> : vector<288x4xf32>
    %97 = tpu.matmul %94, %96, %cst_95 {dimension_numbers = #tpu.dot_dimension_numbers<[1], [0], [0], [1], [0, 0, 1, 1], [], []>} : vector<288x4xbf16>, vector<4x4xbf16>, vector<288x4xf32> -> vector<288x4xf32>
    %98 = arith.addf %93, %97 : vector<288x4xf32>
    %c36_96 = arith.constant 36 : index
    %c0_97 = arith.constant 0 : index
    %99 = vector.load %arg8[%c36_96, %c0_97] : memref<326x4xbf16, #tpu.memory_space<vmem>>, vector<288x4xbf16>
    %c6_98 = arith.constant 6 : index
    %c0_99 = arith.constant 0 : index
    %c0_100 = arith.constant 0 : index
    %100 = vector.load %arg4[%c6_98, %c0_99, %c0_100] : memref<9x4x4xbf16, #tpu.memory_space<vmem>>, vector<1x4x4xbf16>
    %101 = vector.shape_cast %100 : vector<1x4x4xbf16> to vector<4x4xbf16>
    %cst_101 = arith.constant dense<0.000000e+00> : vector<288x4xf32>
    %102 = tpu.matmul %99, %101, %cst_101 {dimension_numbers = #tpu.dot_dimension_numbers<[1], [0], [0], [1], [0, 0, 1, 1], [], []>} : vector<288x4xbf16>, vector<4x4xbf16>, vector<288x4xf32> -> vector<288x4xf32>
    %103 = arith.addf %98, %102 : vector<288x4xf32>
    %c37_102 = arith.constant 37 : index
    %c0_103 = arith.constant 0 : index
    %104 = vector.load %arg8[%c37_102, %c0_103] : memref<326x4xbf16, #tpu.memory_space<vmem>>, vector<288x4xbf16>
    %c7_104 = arith.constant 7 : index
    %c0_105 = arith.constant 0 : index
    %c0_106 = arith.constant 0 : index
    %105 = vector.load %arg4[%c7_104, %c0_105, %c0_106] : memref<9x4x4xbf16, #tpu.memory_space<vmem>>, vector<1x4x4xbf16>
    %106 = vector.shape_cast %105 : vector<1x4x4xbf16> to vector<4x4xbf16>
    %cst_107 = arith.constant dense<0.000000e+00> : vector<288x4xf32>
    %107 = tpu.matmul %104, %106, %cst_107 {dimension_numbers = #tpu.dot_dimension_numbers<[1], [0], [0], [1], [0, 0, 1, 1], [], []>} : vector<288x4xbf16>, vector<4x4xbf16>, vector<288x4xf32> -> vector<288x4xf32>
    %108 = arith.addf %103, %107 : vector<288x4xf32>
    %c38_108 = arith.constant 38 : index
    %c0_109 = arith.constant 0 : index
    %109 = vector.load %arg8[%c38_108, %c0_109] : memref<326x4xbf16, #tpu.memory_space<vmem>>, vector<288x4xbf16>
    %c8_110 = arith.constant 8 : index
    %c0_111 = arith.constant 0 : index
    %c0_112 = arith.constant 0 : index
    %110 = vector.load %arg4[%c8_110, %c0_111, %c0_112] : memref<9x4x4xbf16, #tpu.memory_space<vmem>>, vector<1x4x4xbf16>
    %111 = vector.shape_cast %110 : vector<1x4x4xbf16> to vector<4x4xbf16>
    %cst_113 = arith.constant dense<0.000000e+00> : vector<288x4xf32>
    %112 = tpu.matmul %109, %111, %cst_113 {dimension_numbers = #tpu.dot_dimension_numbers<[1], [0], [0], [1], [0, 0, 1, 1], [], []>} : vector<288x4xbf16>, vector<4x4xbf16>, vector<288x4xf32> -> vector<288x4xf32>
    %113 = arith.addf %108, %112 : vector<288x4xf32>
    %c0_114 = arith.constant 0 : index
    %c19_115 = arith.constant 19 : index
    %c0_116 = arith.constant 0 : index
    %114 = vector.load %arg1[%c0_114, %c19_115, %c0_116] : memref<1x326x4xbf16, #tpu.memory_space<vmem>>, vector<1x288x4xbf16>
    %115 = vector.shape_cast %114 : vector<1x288x4xbf16> to vector<288x4xbf16>
    %116 = arith.extf %115 : vector<288x4xbf16> to vector<288x4xf32>
    %c0_117 = arith.constant 0 : index
    %c0_118 = arith.constant 0 : index
    %117 = vector.load %arg6[%c0_117, %c0_118] : memref<1x4xf32, #tpu.memory_space<vmem>>, vector<1x4xf32>
    %118 = vector.broadcast %117 : vector<1x4xf32> to vector<288x4xf32>
    %119 = arith.addf %113, %118 : vector<288x4xf32>
    %120 = arith.addf %119, %116 : vector<288x4xf32>
    %cst_119 = arith.constant 0.000000e+00 : f32
    %121 = vector.broadcast %cst_119 : f32 to vector<288x4xf32>
    %122 = arith.maximumf %120, %121 : vector<288x4xf32>
    %c0_120 = arith.constant 0 : index
    %c0_121 = arith.constant 0 : index
    %c0_122 = arith.constant 0 : index
    %123 = vector.load %arg7[%c0_120, %c0_121, %c0_122] : memref<1x288x4xf32, #tpu.memory_space<vmem>>, vector<1x288x4xf32>
    %124 = vector.shape_cast %123 : vector<1x288x4xf32> to vector<288x4xf32>
    %125 = vector.shape_cast %122 : vector<288x4xf32> to vector<1x288x4xf32>
    tpu.vector_store %arg7[%c0_120, %c0_121, %c0_122], %125 {strides = array<i32>} : memref<1x288x4xf32, #tpu.memory_space<vmem>>, vector<1x288x4xf32>,
    return
  }
  func.func @transform_0(%arg0: i32) -> (i32, i32, i32) {
    %c0_i32 = arith.constant 0 : i32
    %c0_i32_0 = arith.constant 0 : i32
    %c0_i32_1 = arith.constant 0 : i32
    return %arg0, %c0_i32, %c0_i32_0 : i32, i32, i32
  }
  func.func @transform_1(%arg0: i32) -> (i32, i32) {
    %c0_i32 = arith.constant 0 : i32
    %c0_i32_0 = arith.constant 0 : i32
    %c0_i32_1 = arith.constant 0 : i32
    return %c0_i32, %c0_i32_0 : i32, i32
  }
  func.func @transform_2(%arg0: i32) -> (i32, i32, i32) {
    %c0_i32 = arith.constant 0 : i32
    %c0_i32_0 = arith.constant 0 : i32
    %c0_i32_1 = arith.constant 0 : i32
    %c0_i32_2 = arith.constant 0 : i32
    return %c0_i32, %c0_i32_0, %c0_i32_1 : i32, i32, i32
  }
  func.func @transform_3(%arg0: i32) -> (i32, i32, i32) {
    %c0_i32 = arith.constant 0 : i32
    %c0_i32_0 = arith.constant 0 : i32
    %c0_i32_1 = arith.constant 0 : i32
    %c0_i32_2 = arith.constant 0 : i32
    return %c0_i32, %c0_i32_0, %c0_i32_1 : i32, i32, i32
  }
  func.func @transform_4(%arg0: i32) -> (i32, i32) {
    %c0_i32 = arith.constant 0 : i32
    %c0_i32_0 = arith.constant 0 : i32
    %c0_i32_1 = arith.constant 0 : i32
    return %c0_i32, %c0_i32_0 : i32, i32
  }
  func.func @transform_5(%arg0: i32) -> (i32, i32) {
    %c0_i32 = arith.constant 0 : i32
    %c0_i32_0 = arith.constant 0 : i32
    %c0_i32_1 = arith.constant 0 : i32
    return %c0_i32, %c0_i32_0 : i32, i32
  }
  func.func @transform_6(%arg0: i32) -> (i32, i32, i32) {
    %c0_i32 = arith.constant 0 : i32
    %c0_i32_0 = arith.constant 0 : i32
    %c0_i32_1 = arith.constant 0 : i32
    return %arg0, %c0_i32, %c0_i32_0 : i32, i32, i32
  }
}

</mosaic_0001>

<llo_original>
// kernel: tpu_custom_call.1
$region0: #{tpu_custom_call.1}
  #allocation0 [shape = 'u32[]', space=smem, size = 0x4, offset = 0x4, fixed_abs, tag = 'smem constant byte address 0x4 - core index']
  #allocation1 [shape = 'u32[72,128]{1,0:T(1,128)}', space=vmem, size = 0x9000, scoped, tag = 'internal scratch']
  #allocation2 [shape = 'bf16[326,4]{1,0:T(8,128)(2,1)}', space=vmem, size = 0x14800, scoped, tag = 'scratch operand']
  %s0 = inlined_call_operand.vmem [shape: bf16[2,326,4], index: 0, kind: input, shape index: {}]
  %s1 = inlined_call_operand.vmem [shape: f32[288,1], index: 1, kind: input, shape index: {}]
  %s2 = inlined_call_operand.vmem [shape: bf16[9,4,4], index: 2, kind: input, shape index: {}]
  %s3 = inlined_call_operand.vmem [shape: bf16[9,4,4], index: 3, kind: input, shape index: {}]
  %s4 = inlined_call_operand.vmem [shape: f32[1,4], index: 4, kind: input, shape index: {}]
  %s5 = inlined_call_operand.vmem [shape: f32[1,4], index: 5, kind: input, shape index: {}]
  %s6 = inlined_call_operand.vmem [shape: f32[2,288,4], index: 6, kind: output, shape index: {}]
  %s7 = sld [smem:[#allocation0]]
  $region57: #{tpu_custom_call.1} parent=0
    _
  %s9 = ssub.s32 1, %s7
  %s10 = scalar_select 0, %s9, %s7
  loop: start=0, step=1, limit=4
  $region2: #{tpu_custom_call.1} parent=0 // loop_pre_header
    _
  $region3: #{tpu_custom_call.1} parent=0 // loop_header
    %s12 = sphi 0, %s16
    %p13 = scmp.ge.s32.totalorder %s12, 4
    %s22 = sphi 0, %s24
    %s25 = sphi 0, %s22
    %s26 = sphi 0, %s25
    %s42 = sphi 0, %s26
    %s46 = sphi 0, %s46
    %s48 = sphi 0, %s46
    %s49 = sphi 0, %s48
    %s63 = sphi 0, %s49
    %s67 = sphi 0, %s67
    %s69 = sphi 0, %s67
    %s70 = sphi 0, %s69
    %s84 = sphi 0, %s70
    %s88 = sphi 0, %s88
    %s90 = sphi 0, %s88
    %s91 = sphi 0, %s90
    %s105 = sphi 0, %s91
    %s109 = sphi 0, %s109
    %s111 = sphi 0, %s109
    %s112 = sphi 0, %s111
    %s126 = sphi 0, %s112
    %s130 = sphi 0, %s130
    %s132 = sphi 0, %s130
    %s133 = sphi 0, %s132
    %s147 = sphi 0, %s133
    %s153 = sphi 0, %s155
    %s156 = sphi 0, %s153
    %s157 = sphi 0, %s156
    %s173 = sphi 0, %s157
  $region4: #{tpu_custom_call.1} parent=0 // loop_header_branch
    %15 = sbr.rel (%p13) target = $region8
  $region5: #{tpu_custom_call.1} parent=0 // loop_body
    %s17 = ssub.s32 %s12, 1
    %s18 = ssub.s32 %s12, 2
    %s19 = sadd.s32 %s12, 1
    %s20 = ssub.s32 %s12, %s19
    %p21 = scmp.eq.s32.totalorder %s20, 0
    %s23 = sadd.s32 %s22, 1
    %s24 = scalar_select %p21, %s22, %s23
    %p27 = pneg %p21
    %p28 = scmp.eq.s32.totalorder %s12, 1
    %p29 = por %p27, %p28
    %p30 = scmp.ne.s32.totalorder %s22, %s25
    %p31 = scmp.eq.s32.totalorder %s12, 0
    %p32 = por %p30, %p31
    %p33 = scmp.ne.s32.totalorder %s22, %s25
    %p34 = scmp.eq.s32.totalorder %s17, 1
    %p35 = por %p33, %p34
    %p36 = scmp.ne.s32.totalorder %s25, %s26
    %p37 = scmp.eq.s32.totalorder %s17, 0
    %p38 = por %p36, %p37
    %p39 = scmp.ne.s32.totalorder %s25, %s26
    %p40 = scmp.eq.s32.totalorder %s18, 1
    %p41 = por %p39, %p40
    %p43 = scmp.ne.s32.totalorder %s26, %s42
    %p44 = scmp.eq.s32.totalorder %s18, 0
    %p45 = por %p43, %p44
    %s47 = sadd.s32 %s46, 1
    %p50 = scmp.eq.s32.totalorder %s12, 1
    %p51 = scmp.ne.s32.totalorder %s46, %s48
    %p52 = scmp.eq.s32.totalorder %s12, 0
    %p53 = por %p51, %p52
    %p54 = scmp.ne.s32.totalorder %s46, %s48
    %p55 = scmp.eq.s32.totalorder %s17, 1
    %p56 = por %p54, %p55
    %p57 = scmp.ne.s32.totalorder %s48, %s49
    %p58 = scmp.eq.s32.totalorder %s17, 0
    %p59 = por %p57, %p58
    %p60 = scmp.ne.s32.totalorder %s48, %s49
    %p61 = scmp.eq.s32.totalorder %s18, 1
    %p62 = por %p60, %p61
    %p64 = scmp.ne.s32.totalorder %s49, %s63
    %p65 = scmp.eq.s32.totalorder %s18, 0
    %p66 = por %p64, %p65
    %s68 = sadd.s32 %s67, 1
    %p71 = scmp.eq.s32.totalorder %s12, 1
    %p72 = scmp.ne.s32.totalorder %s67, %s69
    %p73 = scmp.eq.s32.totalorder %s12, 0
    %p74 = por %p72, %p73
    %p75 = scmp.ne.s32.totalorder %s67, %s69
    %p76 = scmp.eq.s32.totalorder %s17, 1
    %p77 = por %p75, %p76
    %p78 = scmp.ne.s32.totalorder %s69, %s70
    %p79 = scmp.eq.s32.totalorder %s17, 0
    %p80 = por %p78, %p79
    %p81 = scmp.ne.s32.totalorder %s69, %s70
    %p82 = scmp.eq.s32.totalorder %s18, 1
    %p83 = por %p81, %p82
    %p85 = scmp.ne.s32.totalorder %s70, %s84
    %p86 = scmp.eq.s32.totalorder %s18, 0
    %p87 = por %p85, %p86
    %s89 = sadd.s32 %s88, 1
    %p92 = scmp.eq.s32.totalorder %s12, 1
    %p93 = scmp.ne.s32.totalorder %s88, %s90
    %p94 = scmp.eq.s32.totalorder %s12, 0
    %p95 = por %p93, %p94
    %p96 = scmp.ne.s32.totalorder %s88, %s90
    %p97 = scmp.eq.s32.totalorder %s17, 1
    %p98 = por %p96, %p97
    %p99 = scmp.ne.s32.totalorder %s90, %s91
    %p100 = scmp.eq.s32.totalorder %s17, 0
    %p101 = por %p99, %p100
    %p102 = scmp.ne.s32.totalorder %s90, %s91
    %p103 = scmp.eq.s32.totalorder %s18, 1
    %p104 = por %p102, %p103
    %p106 = scmp.ne.s32.totalorder %s91, %s105
    %p107 = scmp.eq.s32.totalorder %s18, 0
    %p108 = por %p106, %p107
    %s110 = sadd.s32 %s109, 1
    %p113 = scmp.eq.s32.totalorder %s12, 1
    %p114 = scmp.ne.s32.totalorder %s109, %s111
    %p115 = scmp.eq.s32.totalorder %s12, 0
    %p116 = por %p114, %p115
    %p117 = scmp.ne.s32.totalorder %s109, %s111
    %p118 = scmp.eq.s32.totalorder %s17, 1
    %p119 = por %p117, %p118
    %p120 = scmp.ne.s32.totalorder %s111, %s112
    %p121 = scmp.eq.s32.totalorder %s17, 0
    %p122 = por %p120, %p121
    %p123 = scmp.ne.s32.totalorder %s111, %s112
    %p124 = scmp.eq.s32.totalorder %s18, 1
    %p125 = por %p123, %p124
    %p127 = scmp.ne.s32.totalorder %s112, %s126
    %p128 = scmp.eq.s32.totalorder %s18, 0
    %p129 = por %p127, %p128
    %s131 = sadd.s32 %s130, 1
    %p134 = scmp.eq.s32.totalorder %s12, 1
    %p135 = scmp.ne.s32.totalorder %s130, %s132
    %p136 = scmp.eq.s32.totalorder %s12, 0
    %p137 = por %p135, %p136
    %p138 = scmp.ne.s32.totalorder %s130, %s132
    %p139 = scmp.eq.s32.totalorder %s17, 1
    %p140 = por %p138, %p139
    %p141 = scmp.ne.s32.totalorder %s132, %s133
    %p142 = scmp.eq.s32.totalorder %s17, 0
    %p143 = por %p141, %p142
    %p144 = scmp.ne.s32.totalorder %s132, %s133
    %p145 = scmp.eq.s32.totalorder %s18, 1
    %p146 = por %p144, %p145
    %p148 = scmp.ne.s32.totalorder %s133, %s147
    %p149 = scmp.eq.s32.totalorder %s18, 0
    %p150 = por %p148, %p149
    %s151 = ssub.s32 %s12, %s19
    %p152 = scmp.eq.s32.totalorder %s151, 0
    %s154 = sadd.s32 %s153, 1
    %s155 = scalar_select %p152, %s153, %s154
    %p158 = pneg %p152
    %p159 = scmp.eq.s32.totalorder %s12, 1
    %p160 = por %p158, %p159
    %p161 = scmp.ne.s32.totalorder %s153, %s156
    %p162 = scmp.eq.s32.totalorder %s12, 0
    %p163 = por %p161, %p162
    %p164 = scmp.ne.s32.totalorder %s153, %s156
    %p165 = scmp.eq.s32.totalorder %s17, 1
    %p166 = por %p164, %p165
    %p167 = scmp.ne.s32.totalorder %s156, %s157
    %p168 = scmp.eq.s32.totalorder %s17, 0
    %p169 = por %p167, %p168
    %p170 = scmp.ne.s32.totalorder %s156, %s157
    %p171 = scmp.eq.s32.totalorder %s18, 1
    %p172 = por %p170, %p171
    %p174 = scmp.ne.s32.totalorder %s157, %s173
    %p175 = scmp.eq.s32.totalorder %s18, 0
    %p176 = por %p174, %p175
    %p177 = scmp.le.s32.totalorder 1, %s12
    %p178 = scmp.lt.s32.totalorder %s12, 3
    %p179 = pnand %p177, %p178
    %p180 = pneg %p179
    // Predicated region
    $region9: #{tpu_custom_call.1} parent=5 // pred_check
      _
    $region10: #{tpu_custom_call.1} parent=5 // pred_check_branch
      %182 = sbr.rel (%p179) target = $region12
    $region11: #{tpu_custom_call.1} parent=5 // pred_region
      %s183 = ssub.s32 %s12, 1
      // Predicated region
      $region13: #{tpu_custom_call.1} parent=11 // pred_check
        %p184 = pneg %p59
      $region14: #{tpu_custom_call.1} parent=11 // pred_check_branch
        %186 = sbr.rel (%p184) target = $region16
      $region15: #{tpu_custom_call.1} parent=11 // pred_region
        _
      $region16: #{tpu_custom_call.1} parent=11 // pred_fallthru
        _
      // Predicated region
      $region17: #{tpu_custom_call.1} parent=11 // pred_check
        %p187 = pneg %p80
      $region18: #{tpu_custom_call.1} parent=11 // pred_check_branch
        %189 = sbr.rel (%p187) target = $region20
      $region19: #{tpu_custom_call.1} parent=11 // pred_region
        _
      $region20: #{tpu_custom_call.1} parent=11 // pred_fallthru
        _
      // Predicated region
      $region21: #{tpu_custom_call.1} parent=11 // pred_check
        %p190 = pneg %p101
      $region22: #{tpu_custom_call.1} parent=11 // pred_check_branch
        %192 = sbr.rel (%p190) target = $region24
      $region23: #{tpu_custom_call.1} parent=11 // pred_region
        _
      $region24: #{tpu_custom_call.1} parent=11 // pred_fallthru
        _
      // Predicated region
      $region25: #{tpu_custom_call.1} parent=11 // pred_check
        %p193 = pneg %p122
      $region26: #{tpu_custom_call.1} parent=11 // pred_check_branch
        %195 = sbr.rel (%p193) target = $region28
      $region27: #{tpu_custom_call.1} parent=11 // pred_region
        _
      $region28: #{tpu_custom_call.1} parent=11 // pred_fallthru
        _
      // Predicated region
      $region29: #{tpu_custom_call.1} parent=11 // pred_check
        %p196 = pneg %p143
      $region30: #{tpu_custom_call.1} parent=11 // pred_check_branch
        %198 = sbr.rel (%p196) target = $region32
      $region31: #{tpu_custom_call.1} parent=11 // pred_region
        _
      $region32: #{tpu_custom_call.1} parent=11 // pred_fallthru
        _
    $region12: #{tpu_custom_call.1} parent=5 // pred_fallthru
      _
    %p199 = scmp.lt.s32.totalorder %s12, 2
    // Predicated region
    $region33: #{tpu_custom_call.1} parent=5 // pred_check
      %p200 = pneg %p199
    $region34: #{tpu_custom_call.1} parent=5 // pred_check_branch
      %202 = sbr.rel (%p200) target = $region36
    $region35: #{tpu_custom_call.1} parent=5 // pred_region
      // Predicated region
      $region37: #{tpu_custom_call.1} parent=35 // pred_check
        %p203 = pneg %p32
      $region38: #{tpu_custom_call.1} parent=35 // pred_check_branch
        %205 = sbr.rel (%p203) target = $region40
      $region39: #{tpu_custom_call.1} parent=35 // pred_region
        %p206 = scmp.lt.s32.totalorder %s12, 1
        %s207 = scalar_select %p206, %s12, 1
        %s208 = smul.addr %s207, 41
        %s209 = smul.addr %s208, 4
        %s210 = scalar_lea.vmem %s0, %s209
      $region40: #{tpu_custom_call.1} parent=35 // pred_fallthru
        _
    $region36: #{tpu_custom_call.1} parent=5 // pred_fallthru
      _
    %p211 = scmp.le.s32.totalorder 1, %s12
    %p212 = scmp.lt.s32.totalorder %s12, 3
    %p213 = pnand %p211, %p212
    %p214 = pneg %p213
    // Predicated region
    $region41: #{tpu_custom_call.1} parent=5 // pred_check
      _
    $region42: #{tpu_custom_call.1} parent=5 // pred_check_branch
      %216 = sbr.rel (%p213) target = $region44
    $region43: #{tpu_custom_call.1} parent=5 // pred_region
      %s217 = ssub.s32 %s12, 1
      %p218 = scmp.lt.s32.totalorder %s17, 1
      %s219 = scalar_select %p218, %s17, 1
      %s220 = smul.addr %s219, 41
      %s221 = smul.addr %s220, 4
      %s222 = scalar_lea.vmem %s0, %s221
      %p223 = pneg %p38
      %p224 = pneg %p35
      %p225 = pneg %p59
      %p226 = pneg %p56
      %p227 = pneg %p80
      %p228 = pneg %p77
      %p229 = pneg %p101
      %p230 = pneg %p98
      %p231 = pneg %p122
      %p232 = pneg %p119
      %p233 = pneg %p143
      %p234 = pneg %p140
      %p235 = pneg %p169
      %p236 = pneg %p166
      %p237 = scmp.lt.s32.totalorder %s17, 1
      %s238 = scalar_select %p237, %s17, 1
      %s239 = smul.addr %s238, 36
      %s240 = smul.addr %s239, 8
      %s241 = scalar_lea.vmem %s6, %s240
      %p242 = scmp.lt.s32.totalorder %s17, 1
      %s243 = scalar_select %p242, %s17, 1
      %s244 = smul.addr %s243, 41
      %s245 = smul.addr %s244, 4
      %s246 = scalar_lea.vmem %s0, %s245
      %p247 = scmp.lt.s32.totalorder %s17, 1
      %s248 = scalar_select %p247, %s17, 1
      %s249 = smul.addr %s248, 36
      %s250 = smul.addr %s249, 8
      %s251 = scalar_lea.vmem %s6, %s250
      %v253 = vld [vmem:[%s246] sm:$0xf]
      %v254 = vld [vmem:[%s246 + $0x4] sm:$0xf]
      %v255 = vld [vmem:[%s246 + $0x8] sm:$0xf]
      %v256 = vld [vmem:[%s246 + $0xc] sm:$0xf]
      %v257 = vld [vmem:[%s246 + $0x10] sm:$0xf]
      %v258 = vld [vmem:[%s246 + $0x14] sm:$0xf]
      %v259 = vld [vmem:[%s246 + $0x18] sm:$0xf]
      %v260 = vld [vmem:[%s246 + $0x1c] sm:$0xf]
      %v261 = vld [vmem:[%s246 + $0x20] sm:$0xf]
      %v262 = vld [vmem:[%s246 + $0x24] sm:$0xf]
      %v263 = vld [vmem:[%s246 + $0x28] sm:$0xf]
      %v264 = vld [vmem:[%s246 + $0x2c] sm:$0xf]
      %v265 = vld [vmem:[%s246 + $0x30] sm:$0xf]
      %v266 = vld [vmem:[%s246 + $0x34] sm:$0xf]
      %v267 = vld [vmem:[%s246 + $0x38] sm:$0xf]
      %v268 = vld [vmem:[%s246 + $0x3c] sm:$0xf]
      %v269 = vld [vmem:[%s246 + $0x40] sm:$0xf]
      %v270 = vld [vmem:[%s246 + $0x44] sm:$0xf]
      %v271 = vld [vmem:[%s246 + $0x48] sm:$0xf]
      %v272 = vld [vmem:[%s246 + $0x4c] sm:$0xf]
      %v273 = vld [vmem:[%s246 + $0x50] sm:$0xf]
      %v274 = vld [vmem:[%s246 + $0x54] sm:$0xf]
      %v275 = vld [vmem:[%s246 + $0x58] sm:$0xf]
      %v276 = vld [vmem:[%s246 + $0x5c] sm:$0xf]
      %v277 = vld [vmem:[%s246 + $0x60] sm:$0xf]
      %v278 = vld [vmem:[%s246 + $0x64] sm:$0xf]
      %v279 = vld [vmem:[%s246 + $0x68] sm:$0xf]
      %v280 = vld [vmem:[%s246 + $0x6c] sm:$0xf]
      %v281 = vld [vmem:[%s246 + $0x70] sm:$0xf]
      %v282 = vld [vmem:[%s246 + $0x74] sm:$0xf]
      %v283 = vld [vmem:[%s246 + $0x78] sm:$0xf]
      %v284 = vld [vmem:[%s246 + $0x7c] sm:$0xf]
      %v285 = vld [vmem:[%s246 + $0x80] sm:$0xf]
      %v286 = vld [vmem:[%s246 + $0x84] sm:$0xf]
      %v287 = vld [vmem:[%s246 + $0x88] sm:$0xf]
      %v288 = vld [vmem:[%s246 + $0x8c] sm:$0xf]
      %v289 = vld [vmem:[%s2] sm:$0x3]
      %v290 = vld [vmem:[%s246 + $0x90] sm:$0x1]
      %s291 = scalar_lea.vmem %s2, 2
      %v292 = vld [vmem:[%s291] sm:$0x3]
      %v330 = vunpack.c.l.b16 %v253
      %v331 = vunpack.c.l.b16 %v254
      %v332 = vunpack.c.l.b16 %v255
      %v333 = vunpack.c.l.b16 %v256
      %v334 = vunpack.c.l.b16 %v257
      %v335 = vunpack.c.l.b16 %v258
      %v336 = vunpack.c.l.b16 %v259
      %v337 = vunpack.c.l.b16 %v260
      %v338 = vunpack.c.l.b16 %v261
      %v339 = vunpack.c.l.b16 %v262
      %v340 = vunpack.c.l.b16 %v263
      %v341 = vunpack.c.l.b16 %v264
      %v342 = vunpack.c.l.b16 %v265
      %v343 = vunpack.c.l.b16 %v266
      %v344 = vunpack.c.l.b16 %v267
      %v345 = vunpack.c.l.b16 %v268
      %v346 = vunpack.c.l.b16 %v269
      %v347 = vunpack.c.l.b16 %v270
      %v348 = vunpack.c.l.b16 %v271
      %v349 = vunpack.c.l.b16 %v272
      %v350 = vunpack.c.l.b16 %v273
      %v351 = vunpack.c.l.b16 %v274
      %v352 = vunpack.c.l.b16 %v275
      %v353 = vunpack.c.l.b16 %v276
      %v354 = vunpack.c.l.b16 %v277
      %v355 = vunpack.c.l.b16 %v278
      %v356 = vunpack.c.l.b16 %v279
      %v357 = vunpack.c.l.b16 %v280
      %v358 = vunpack.c.l.b16 %v281
      %v359 = vunpack.c.l.b16 %v282
      %v360 = vunpack.c.l.b16 %v283
      %v361 = vunpack.c.l.b16 %v284
      %v362 = vunpack.c.l.b16 %v285
      %v363 = vunpack.c.l.b16 %v286
      %v364 = vunpack.c.l.b16 %v287
      %v365 = vunpack.c.l.b16 %v288
      %v366 = vunpack.c.l.b16 %v290
      %v367 = vpack.c.b16 %v331, %v330
      %v368 = vpack.c.b16 %v333, %v332
      %v369 = vpack.c.b16 %v335, %v334
      %v370 = vpack.c.b16 %v337, %v336
      %v371 = vpack.c.b16 %v339, %v338
      %v372 = vpack.c.b16 %v341, %v340
      %v373 = vpack.c.b16 %v343, %v342
      %v374 = vpack.c.b16 %v345, %v344
      %v375 = vpack.c.b16 %v347, %v346
      %v376 = vpack.c.b16 %v349, %v348
      %v377 = vpack.c.b16 %v351, %v350
      %v378 = vpack.c.b16 %v353, %v352
      %v379 = vpack.c.b16 %v355, %v354
      %v380 = vpack.c.b16 %v357, %v356
      %v381 = vpack.c.b16 %v359, %v358
      %v382 = vpack.c.b16 %v361, %v360
      %v383 = vpack.c.b16 %v363, %v362
      %v384 = vpack.c.b16 %v365, %v364
      %v385 = vpack.c.b16 %v366, %v366
      %vm386 = vsmask.f32 7424
      %v388 = vshrl.u32 %v367, 16
      %v390 = vshll.u32 %v367, 16
      %v392 = vrot.slane %v390, 1
      %v393 = vor.u32 %v388, %v392
      %v395 = vshll.u32 %v368, 16
      %v397 = vrot.slane %v395, 1
      %v398 = vsel %vm386, %v393, %v397
      %v399 = vshrl.u32 %v368, 16
      %v401 = vor.u32 %v399, %v397
      %v403 = vshll.u32 %v369, 16
      %v405 = vrot.slane %v403, 1
      %v406 = vsel %vm386, %v401, %v405
      %v407 = vshrl.u32 %v369, 16
      %v409 = vor.u32 %v407, %v405
      %v411 = vshll.u32 %v370, 16
      %v413 = vrot.slane %v411, 1
      %v414 = vsel %vm386, %v409, %v413
      %v415 = vshrl.u32 %v370, 16
      %v417 = vor.u32 %v415, %v413
      %v419 = vshll.u32 %v371, 16
      %v421 = vrot.slane %v419, 1
      %v422 = vsel %vm386, %v417, %v421
      %v423 = vshrl.u32 %v371, 16
      %v425 = vor.u32 %v423, %v421
      %v427 = vshll.u32 %v372, 16
      %v429 = vrot.slane %v427, 1
      %v430 = vsel %vm386, %v425, %v429
      %v431 = vshrl.u32 %v372, 16
      %v433 = vor.u32 %v431, %v429
      %v435 = vshll.u32 %v373, 16
      %v437 = vrot.slane %v435, 1
      %v438 = vsel %vm386, %v433, %v437
      %v439 = vshrl.u32 %v373, 16
      %v441 = vor.u32 %v439, %v437
      %v443 = vshll.u32 %v374, 16
      %v445 = vrot.slane %v443, 1
      %v446 = vsel %vm386, %v441, %v445
      %v447 = vshrl.u32 %v374, 16
      %v449 = vor.u32 %v447, %v445
      %v451 = vshll.u32 %v375, 16
      %v453 = vrot.slane %v451, 1
      %v454 = vsel %vm386, %v449, %v453
      %v455 = vshrl.u32 %v375, 16
      %v457 = vor.u32 %v455, %v453
      %v459 = vshll.u32 %v376, 16
      %v461 = vrot.slane %v459, 1
      %v462 = vsel %vm386, %v457, %v461
      %v463 = vshrl.u32 %v376, 16
      %v465 = vor.u32 %v463, %v461
      %v467 = vshll.u32 %v377, 16
      %v469 = vrot.slane %v467, 1
      %v470 = vsel %vm386, %v465, %v469
      %v471 = vshrl.u32 %v377, 16
      %v473 = vor.u32 %v471, %v469
      %v475 = vshll.u32 %v378, 16
      %v477 = vrot.slane %v475, 1
      %v478 = vsel %vm386, %v473, %v477
      %v479 = vshrl.u32 %v378, 16
      %v481 = vor.u32 %v479, %v477
      %v483 = vshll.u32 %v379, 16
      %v485 = vrot.slane %v483, 1
      %v486 = vsel %vm386, %v481, %v485
      %v487 = vshrl.u32 %v379, 16
      %v489 = vor.u32 %v487, %v485
      %v491 = vshll.u32 %v380, 16
      %v493 = vrot.slane %v491, 1
      %v494 = vsel %vm386, %v489, %v493
      %v495 = vshrl.u32 %v380, 16
      %v497 = vor.u32 %v495, %v493
      %v499 = vshll.u32 %v381, 16
      %v501 = vrot.slane %v499, 1
      %v502 = vsel %vm386, %v497, %v501
      %v503 = vshrl.u32 %v381, 16
      %v505 = vor.u32 %v503, %v501
      %v507 = vshll.u32 %v382, 16
      %v509 = vrot.slane %v507, 1
      %v510 = vsel %vm386, %v505, %v509
      %v511 = vshrl.u32 %v382, 16
      %v513 = vor.u32 %v511, %v509
      %v515 = vshll.u32 %v383, 16
      %v517 = vrot.slane %v515, 1
      %v518 = vsel %vm386, %v513, %v517
      %v519 = vshrl.u32 %v383, 16
      %v521 = vor.u32 %v519, %v517
      %v523 = vshll.u32 %v384, 16
      %v525 = vrot.slane %v523, 1
      %v526 = vsel %vm386, %v521, %v525
      %v527 = vshrl.u32 %v384, 16
      %v529 = vor.u32 %v527, %v525
      %v531 = vshll.u32 %v385, 16
      %v533 = vrot.slane %v531, 1
      %v534 = vsel %vm386, %v529, %v533
      %vm535 = vcmask 31744
      %v537 = vsel %vm535, %v398, 0
      %v540 = vsel %vm535, %v406, 0
      %v543 = vsel %vm535, %v414, 0
      %v546 = vsel %vm535, %v422, 0
      %v549 = vsel %vm535, %v430, 0
      %v552 = vsel %vm535, %v438, 0
      %v555 = vsel %vm535, %v446, 0
      %v558 = vsel %vm535, %v454, 0
      %v561 = vsel %vm535, %v462, 0
      %v564 = vsel %vm535, %v470, 0
      %v567 = vsel %vm535, %v478, 0
      %v570 = vsel %vm535, %v486, 0
      %v573 = vsel %vm535, %v494, 0
      %v576 = vsel %vm535, %v502, 0
      %v579 = vsel %vm535, %v510, 0
      %v582 = vsel %vm535, %v518, 0
      %v585 = vsel %vm535, %v526, 0
      %v588 = vsel %vm535, %v534, 0
      %vm590 = vcmask 1041408
      %v592 = vsel %vm590, %v292, 0
      %594 = vmatpush.bf16.msra.mxu0 0
      %595 = vmatpush.bf16.msra.mxu0 0
      %596 = vmatpush.bf16.msra.mxu0 0
      %597 = vmatpush.bf16.msra.mxu0 0
      %598 = vmatpush.bf16.msra.mxu0 0
      %599 = vmatpush.bf16.msra.mxu0 0
      %600 = vmatpush.bf16.msra.mxu0 0
      %601 = vmatpush.bf16.msra.mxu0 %v592
      %602 = vmatmul.bf16.gmra.mxu0 %v537
      %v603 = vpop.f32.mrf.mxu0
      %v604 = vadd.f32 0.0, %v603
      %v605 = vpop.f32.mrf.mxu0
      %v606 = vadd.f32 0.0, %v605
      %607 = vmatmul.bf16.gmra.mxu0 %v540
      %v608 = vpop.f32.mrf.mxu0
      %v609 = vadd.f32 0.0, %v608
      %v610 = vpop.f32.mrf.mxu0
      %v611 = vadd.f32 0.0, %v610
      %612 = vmatmul.bf16.gmra.mxu0 %v543
      %v613 = vpop.f32.mrf.mxu0
      %v614 = vadd.f32 0.0, %v613
      %v615 = vpop.f32.mrf.mxu0
      %v616 = vadd.f32 0.0, %v615
      %617 = vmatmul.bf16.gmra.mxu0 %v546
      %v618 = vpop.f32.mrf.mxu0
      %v619 = vadd.f32 0.0, %v618
      %v620 = vpop.f32.mrf.mxu0
      %v621 = vadd.f32 0.0, %v620
      %622 = vmatmul.bf16.gmra.mxu0 %v549
      %v623 = vpop.f32.mrf.mxu0
      %v624 = vadd.f32 0.0, %v623
      %v625 = vpop.f32.mrf.mxu0
      %v626 = vadd.f32 0.0, %v625
      %627 = vmatmul.bf16.gmra.mxu0 %v552
      %v628 = vpop.f32.mrf.mxu0
      %v629 = vadd.f32 0.0, %v628
      %v630 = vpop.f32.mrf.mxu0
      %v631 = vadd.f32 0.0, %v630
      %632 = vmatmul.bf16.gmra.mxu0 %v555
      %v633 = vpop.f32.mrf.mxu0
      %v634 = vadd.f32 0.0, %v633
      %v635 = vpop.f32.mrf.mxu0
      %v636 = vadd.f32 0.0, %v635
      %637 = vmatmul.bf16.gmra.mxu0 %v558
      %v638 = vpop.f32.mrf.mxu0
      %v639 = vadd.f32 0.0, %v638
      %v640 = vpop.f32.mrf.mxu0
      %v641 = vadd.f32 0.0, %v640
      %642 = vmatmul.bf16.gmra.mxu0 %v561
      %v643 = vpop.f32.mrf.mxu0
      %v644 = vadd.f32 0.0, %v643
      %v645 = vpop.f32.mrf.mxu0
      %v646 = vadd.f32 0.0, %v645
      %647 = vmatmul.bf16.gmra.mxu0 %v564
      %v648 = vpop.f32.mrf.mxu0
      %v649 = vadd.f32 0.0, %v648
      %v650 = vpop.f32.mrf.mxu0
      %v651 = vadd.f32 0.0, %v650
      %652 = vmatmul.bf16.gmra.mxu0 %v567
      %v653 = vpop.f32.mrf.mxu0
      %v654 = vadd.f32 0.0, %v653
      %v655 = vpop.f32.mrf.mxu0
      %v656 = vadd.f32 0.0, %v655
      %657 = vmatmul.bf16.gmra.mxu0 %v570
      %v658 = vpop.f32.mrf.mxu0
      %v659 = vadd.f32 0.0, %v658
      %v660 = vpop.f32.mrf.mxu0
      %v661 = vadd.f32 0.0, %v660
      %662 = vmatmul.bf16.gmra.mxu0 %v573
      %v663 = vpop.f32.mrf.mxu0
      %v664 = vadd.f32 0.0, %v663
      %v665 = vpop.f32.mrf.mxu0
      %v666 = vadd.f32 0.0, %v665
      %667 = vmatmul.bf16.gmra.mxu0 %v576
      %v668 = vpop.f32.mrf.mxu0
      %v669 = vadd.f32 0.0, %v668
      %v670 = vpop.f32.mrf.mxu0
      %v671 = vadd.f32 0.0, %v670
      %672 = vmatmul.bf16.gmra.mxu0 %v579
      %v673 = vpop.f32.mrf.mxu0
      %v674 = vadd.f32 0.0, %v673
      %v675 = vpop.f32.mrf.mxu0
      %v676 = vadd.f32 0.0, %v675
      %677 = vmatmul.bf16.gmra.mxu0 %v582
      %v678 = vpop.f32.mrf.mxu0
      %v679 = vadd.f32 0.0, %v678
      %v680 = vpop.f32.mrf.mxu0
      %v681 = vadd.f32 0.0, %v680
      %682 = vmatmul.bf16.gmra.mxu0 %v585
      %v683 = vpop.f32.mrf.mxu0
      %v684 = vadd.f32 0.0, %v683
      %v685 = vpop.f32.mrf.mxu0
      %v686 = vadd.f32 0.0, %v685
      %687 = vmatmul.bf16.gmra.mxu0 %v588
      %v688 = vpop.f32.mrf.mxu0
      %v689 = vadd.f32 0.0, %v688
      %v690 = vpop.f32.mrf.mxu0
      %v691 = vadd.f32 0.0, %v690
      %692 = vdwg.mxu0
      %v693 = vsel %vm535, %v367, 0
      %v695 = vsel %vm535, %v368, 0
      %v697 = vsel %vm535, %v369, 0
      %v699 = vsel %vm535, %v370, 0
      %v701 = vsel %vm535, %v371, 0
      %v703 = vsel %vm535, %v372, 0
      %v705 = vsel %vm535, %v373, 0
      %v707 = vsel %vm535, %v374, 0
      %v709 = vsel %vm535, %v375, 0
      %v711 = vsel %vm535, %v376, 0
      %v713 = vsel %vm535, %v377, 0
      %v715 = vsel %vm535, %v378, 0
      %v717 = vsel %vm535, %v379, 0
      %v719 = vsel %vm535, %v380, 0
      %v721 = vsel %vm535, %v381, 0
      %v723 = vsel %vm535, %v382, 0
      %v725 = vsel %vm535, %v383, 0
      %v727 = vsel %vm535, %v384, 0
      %v730 = vsel %vm590, %v289, 0
      %732 = vmatpush.bf16.msra.mxu0 0
      %733 = vmatpush.bf16.msra.mxu0 0
      %734 = vmatpush.bf16.msra.mxu0 0
      %735 = vmatpush.bf16.msra.mxu0 0
      %736 = vmatpush.bf16.msra.mxu0 0
      %737 = vmatpush.bf16.msra.mxu0 0
      %738 = vmatpush.bf16.msra.mxu0 0
      %739 = vmatpush.bf16.msra.mxu0 %v730
      %740 = vmatmul.bf16.gmra.mxu0 %v693
      %v741 = vpop.f32.mrf.mxu0
      %v742 = vadd.f32 %v604, %v741
      %v743 = vpop.f32.mrf.mxu0
      %v744 = vadd.f32 %v606, %v743
      %745 = vmatmul.bf16.gmra.mxu0 %v695
      %v746 = vpop.f32.mrf.mxu0
      %v747 = vadd.f32 %v609, %v746
      %v748 = vpop.f32.mrf.mxu0
      %v749 = vadd.f32 %v611, %v748
      %750 = vmatmul.bf16.gmra.mxu0 %v697
      %v751 = vpop.f32.mrf.mxu0
      %v752 = vadd.f32 %v614, %v751
      %v753 = vpop.f32.mrf.mxu0
      %v754 = vadd.f32 %v616, %v753
      %755 = vmatmul.bf16.gmra.mxu0 %v699
      %v756 = vpop.f32.mrf.mxu0
      %v757 = vadd.f32 %v619, %v756
      %v758 = vpop.f32.mrf.mxu0
      %v759 = vadd.f32 %v621, %v758
      %760 = vmatmul.bf16.gmra.mxu0 %v701
      %v761 = vpop.f32.mrf.mxu0
      %v762 = vadd.f32 %v624, %v761
      %v763 = vpop.f32.mrf.mxu0
      %v764 = vadd.f32 %v626, %v763
      %765 = vmatmul.bf16.gmra.mxu0 %v703
      %v766 = vpop.f32.mrf.mxu0
      %v767 = vadd.f32 %v629, %v766
      %v768 = vpop.f32.mrf.mxu0
      %v769 = vadd.f32 %v631, %v768
      %770 = vmatmul.bf16.gmra.mxu0 %v705
      %v771 = vpop.f32.mrf.mxu0
      %v772 = vadd.f32 %v634, %v771
      %v773 = vpop.f32.mrf.mxu0
      %v774 = vadd.f32 %v636, %v773
      %775 = vmatmul.bf16.gmra.mxu0 %v707
      %v776 = vpop.f32.mrf.mxu0
      %v777 = vadd.f32 %v639, %v776
      %v778 = vpop.f32.mrf.mxu0
      %v779 = vadd.f32 %v641, %v778
      %780 = vmatmul.bf16.gmra.mxu0 %v709
      %v781 = vpop.f32.mrf.mxu0
      %v782 = vadd.f32 %v644, %v781
      %v783 = vpop.f32.mrf.mxu0
      %v784 = vadd.f32 %v646, %v783
      %785 = vmatmul.bf16.gmra.mxu0 %v711
      %v786 = vpop.f32.mrf.mxu0
      %v787 = vadd.f32 %v649, %v786
      %v788 = vpop.f32.mrf.mxu0
      %v789 = vadd.f32 %v651, %v788
      %790 = vmatmul.bf16.gmra.mxu0 %v713
      %v791 = vpop.f32.mrf.mxu0
      %v792 = vadd.f32 %v654, %v791
      %v793 = vpop.f32.mrf.mxu0
      %v794 = vadd.f32 %v656, %v793
      %795 = vmatmul.bf16.gmra.mxu0 %v715
      %v796 = vpop.f32.mrf.mxu0
      %v797 = vadd.f32 %v659, %v796
      %v798 = vpop.f32.mrf.mxu0
      %v799 = vadd.f32 %v661, %v798
      %800 = vmatmul.bf16.gmra.mxu0 %v717
      %v801 = vpop.f32.mrf.mxu0
      %v802 = vadd.f32 %v664, %v801
      %v803 = vpop.f32.mrf.mxu0
      %v804 = vadd.f32 %v666, %v803
      %805 = vmatmul.bf16.gmra.mxu0 %v719
      %v806 = vpop.f32.mrf.mxu0
      %v807 = vadd.f32 %v669, %v806
      %v808 = vpop.f32.mrf.mxu0
      %v809 = vadd.f32 %v671, %v808
      %810 = vmatmul.bf16.gmra.mxu0 %v721
      %v811 = vpop.f32.mrf.mxu0
      %v812 = vadd.f32 %v674, %v811
      %v813 = vpop.f32.mrf.mxu0
      %v814 = vadd.f32 %v676, %v813
      %815 = vmatmul.bf16.gmra.mxu0 %v723
      %v816 = vpop.f32.mrf.mxu0
      %v817 = vadd.f32 %v679, %v816
      %v818 = vpop.f32.mrf.mxu0
      %v819 = vadd.f32 %v681, %v818
      %820 = vmatmul.bf16.gmra.mxu0 %v725
      %v821 = vpop.f32.mrf.mxu0
      %v822 = vadd.f32 %v684, %v821
      %v823 = vpop.f32.mrf.mxu0
      %v824 = vadd.f32 %v686, %v823
      %825 = vmatmul.bf16.gmra.mxu0 %v727
      %v826 = vpop.f32.mrf.mxu0
      %v827 = vadd.f32 %v689, %v826
      %v828 = vpop.f32.mrf.mxu0
      %v829 = vadd.f32 %v691, %v828
      %830 = vdwg.mxu0
      %v831 = vld [vmem:[%s246] sm:$0xe]
      %s832 = scalar_lea.vmem %s2, 4
      %v833 = vld [vmem:[%s832] sm:$0x3]
      %v835 = vunpack.c.l.b16 %v831
      %v836 = vpack.c.b16 %v331, %v835
      %vm837 = vcmask 1046528
      %v838 = vrot.slane %v836, 1
      %v839 = vrot.slane %v368, 1
      %v840 = vsel %vm837, %v838, %v839
      %v841 = vrot.slane %v369, 1
      %v842 = vsel %vm837, %v839, %v841
      %v843 = vrot.slane %v370, 1
      %v844 = vsel %vm837, %v841, %v843
      %v845 = vrot.slane %v371, 1
      %v846 = vsel %vm837, %v843, %v845
      %v847 = vrot.slane %v372, 1
      %v848 = vsel %vm837, %v845, %v847
      %v849 = vrot.slane %v373, 1
      %v850 = vsel %vm837, %v847, %v849
      %v851 = vrot.slane %v374, 1
      %v852 = vsel %vm837, %v849, %v851
      %v853 = vrot.slane %v375, 1
      %v854 = vsel %vm837, %v851, %v853
      %v855 = vrot.slane %v376, 1
      %v856 = vsel %vm837, %v853, %v855
      %v857 = vrot.slane %v377, 1
      %v858 = vsel %vm837, %v855, %v857
      %v859 = vrot.slane %v378, 1
      %v860 = vsel %vm837, %v857, %v859
      %v861 = vrot.slane %v379, 1
      %v862 = vsel %vm837, %v859, %v861
      %v863 = vrot.slane %v380, 1
      %v864 = vsel %vm837, %v861, %v863
      %v865 = vrot.slane %v381, 1
      %v866 = vsel %vm837, %v863, %v865
      %v867 = vrot.slane %v382, 1
      %v868 = vsel %vm837, %v865, %v867
      %v869 = vrot.slane %v383, 1
      %v870 = vsel %vm837, %v867, %v869
      %v871 = vrot.slane %v384, 1
      %v872 = vsel %vm837, %v869, %v871
      %v873 = vrot.slane %v385, 1
      %v874 = vsel %vm837, %v871, %v873
      %v876 = vsel %vm535, %v840, 0
      %v879 = vsel %vm535, %v842, 0
      %v882 = vsel %vm535, %v844, 0
      %v885 = vsel %vm535, %v846, 0
      %v888 = vsel %vm535, %v848, 0
      %v891 = vsel %vm535, %v850, 0
      %v894 = vsel %vm535, %v852, 0
      %v897 = vsel %vm535, %v854, 0
      %v900 = vsel %vm535, %v856, 0
      %v903 = vsel %vm535, %v858, 0
      %v906 = vsel %vm535, %v860, 0
      %v909 = vsel %vm535, %v862, 0
      %v912 = vsel %vm535, %v864, 0
      %v915 = vsel %vm535, %v866, 0
      %v918 = vsel %vm535, %v868, 0
      %v921 = vsel %vm535, %v870, 0
      %v924 = vsel %vm535, %v872, 0
      %v927 = vsel %vm535, %v874, 0
      %v930 = vsel %vm590, %v833, 0
      %932 = vmatpush.bf16.msra.mxu0 0
      %933 = vmatpush.bf16.msra.mxu0 0
      %934 = vmatpush.bf16.msra.mxu0 0
      %935 = vmatpush.bf16.msra.mxu0 0
      %936 = vmatpush.bf16.msra.mxu0 0
      %937 = vmatpush.bf16.msra.mxu0 0
      %938 = vmatpush.bf16.msra.mxu0 0
      %939 = vmatpush.bf16.msra.mxu0 %v930
      %940 = vmatmul.bf16.gmra.mxu0 %v876
      %v941 = vpop.f32.mrf.mxu0
      %v942 = vadd.f32 0.0, %v941
      %v943 = vpop.f32.mrf.mxu0
      %v944 = vadd.f32 0.0, %v943
      %945 = vmatmul.bf16.gmra.mxu0 %v879
      %v946 = vpop.f32.mrf.mxu0
      %v947 = vadd.f32 0.0, %v946
      %v948 = vpop.f32.mrf.mxu0
      %v949 = vadd.f32 0.0, %v948
      %950 = vmatmul.bf16.gmra.mxu0 %v882
      %v951 = vpop.f32.mrf.mxu0
      %v952 = vadd.f32 0.0, %v951
      %v953 = vpop.f32.mrf.mxu0
      %v954 = vadd.f32 0.0, %v953
      %955 = vmatmul.bf16.gmra.mxu0 %v885
      %v956 = vpop.f32.mrf.mxu0
      %v957 = vadd.f32 0.0, %v956
      %v958 = vpop.f32.mrf.mxu0
      %v959 = vadd.f32 0.0, %v958
      %960 = vmatmul.bf16.gmra.mxu0 %v888
      %v961 = vpop.f32.mrf.mxu0
      %v962 = vadd.f32 0.0, %v961
      %v963 = vpop.f32.mrf.mxu0
      %v964 = vadd.f32 0.0, %v963
      %965 = vmatmul.bf16.gmra.mxu0 %v891
      %v966 = vpop.f32.mrf.mxu0
      %v967 = vadd.f32 0.0, %v966
      %v968 = vpop.f32.mrf.mxu0
      %v969 = vadd.f32 0.0, %v968
      %970 = vmatmul.bf16.gmra.mxu0 %v894
      %v971 = vpop.f32.mrf.mxu0
      %v972 = vadd.f32 0.0, %v971
      %v973 = vpop.f32.mrf.mxu0
      %v974 = vadd.f32 0.0, %v973
      %975 = vmatmul.bf16.gmra.mxu0 %v897
      %v976 = vpop.f32.mrf.mxu0
      %v977 = vadd.f32 0.0, %v976
      %v978 = vpop.f32.mrf.mxu0
      %v979 = vadd.f32 0.0, %v978
      %980 = vmatmul.bf16.gmra.mxu0 %v900
      %v981 = vpop.f32.mrf.mxu0
      %v982 = vadd.f32 0.0, %v981
      %v983 = vpop.f32.mrf.mxu0
      %v984 = vadd.f32 0.0, %v983
      %985 = vmatmul.bf16.gmra.mxu0 %v903
      %v986 = vpop.f32.mrf.mxu0
      %v987 = vadd.f32 0.0, %v986
      %v988 = vpop.f32.mrf.mxu0
      %v989 = vadd.f32 0.0, %v988
      %990 = vmatmul.bf16.gmra.mxu0 %v906
      %v991 = vpop.f32.mrf.mxu0
      %v992 = vadd.f32 0.0, %v991
      %v993 = vpop.f32.mrf.mxu0
      %v994 = vadd.f32 0.0, %v993
      %995 = vmatmul.bf16.gmra.mxu0 %v909
      %v996 = vpop.f32.mrf.mxu0
      %v997 = vadd.f32 0.0, %v996
      %v998 = vpop.f32.mrf.mxu0
      %v999 = vadd.f32 0.0, %v998
      %1000 = vmatmul.bf16.gmra.mxu0 %v912
      %v1001 = vpop.f32.mrf.mxu0
      %v1002 = vadd.f32 0.0, %v1001
      %v1003 = vpop.f32.mrf.mxu0
      %v1004 = vadd.f32 0.0, %v1003
      %1005 = vmatmul.bf16.gmra.mxu0 %v915
      %v1006 = vpop.f32.mrf.mxu0
      %v1007 = vadd.f32 0.0, %v1006
      %v1008 = vpop.f32.mrf.mxu0
      %v1009 = vadd.f32 0.0, %v1008
      %1010 = vmatmul.bf16.gmra.mxu0 %v918
      %v1011 = vpop.f32.mrf.mxu0
      %v1012 = vadd.f32 0.0, %v1011
      %v1013 = vpop.f32.mrf.mxu0
      %v1014 = vadd.f32 0.0, %v1013
      %1015 = vmatmul.bf16.gmra.mxu0 %v921
      %v1016 = vpop.f32.mrf.mxu0
      %v1017 = vadd.f32 0.0, %v1016
      %v1018 = vpop.f32.mrf.mxu0
      %v1019 = vadd.f32 0.0, %v1018
      %1020 = vmatmul.bf16.gmra.mxu0 %v924
      %v1021 = vpop.f32.mrf.mxu0
      %v1022 = vadd.f32 0.0, %v1021
      %v1023 = vpop.f32.mrf.mxu0
      %v1024 = vadd.f32 0.0, %v1023
      %1025 = vmatmul.bf16.gmra.mxu0 %v927
      %v1026 = vpop.f32.mrf.mxu0
      %v1027 = vadd.f32 0.0, %v1026
      %v1028 = vpop.f32.mrf.mxu0
      %v1029 = vadd.f32 0.0, %v1028
      %1030 = vdwg.mxu0
      %v1031 = vadd.f32 %v742, %v942
      %v1032 = vadd.f32 %v744, %v944
      %v1033 = vadd.f32 %v747, %v947
      %v1034 = vadd.f32 %v749, %v949
      %v1035 = vadd.f32 %v752, %v952
      %v1036 = vadd.f32 %v754, %v954
      %v1037 = vadd.f32 %v757, %v957
      %v1038 = vadd.f32 %v759, %v959
      %v1039 = vadd.f32 %v762, %v962
      %v1040 = vadd.f32 %v764, %v964
      %v1041 = vadd.f32 %v767, %v967
      %v1042 = vadd.f32 %v769, %v969
      %v1043 = vadd.f32 %v772, %v972
      %v1044 = vadd.f32 %v774, %v974
      %v1045 = vadd.f32 %v777, %v977
      %v1046 = vadd.f32 %v779, %v979
      %v1047 = vadd.f32 %v782, %v982
      %v1048 = vadd.f32 %v784, %v984
      %v1049 = vadd.f32 %v787, %v987
      %v1050 = vadd.f32 %v789, %v989
      %v1051 = vadd.f32 %v792, %v992
      %v1052 = vadd.f32 %v794, %v994
      %v1053 = vadd.f32 %v797, %v997
      %v1054 = vadd.f32 %v799, %v999
      %v1055 = vadd.f32 %v802, %v1002
      %v1056 = vadd.f32 %v804, %v1004
      %v1057 = vadd.f32 %v807, %v1007
      %v1058 = vadd.f32 %v809, %v1009
      %v1059 = vadd.f32 %v812, %v1012
      %v1060 = vadd.f32 %v814, %v1014
      %v1061 = vadd.f32 %v817, %v1017
      %v1062 = vadd.f32 %v819, %v1019
      %v1063 = vadd.f32 %v822, %v1022
      %v1064 = vadd.f32 %v824, %v1024
      %v1065 = vadd.f32 %v827, %v1027
      %v1066 = vadd.f32 %v829, %v1029
      %v1067 = vld [vmem:[%s246 + $0x8] sm:$0xe]
      %v1068 = vld [vmem:[%s246 + $0xc] sm:$0xf]
      %v1069 = vld [vmem:[%s246 + $0x10] sm:$0xf]
      %v1070 = vld [vmem:[%s246 + $0x14] sm:$0xf]
      %v1071 = vld [vmem:[%s246 + $0x18] sm:$0xf]
      %v1072 = vld [vmem:[%s246 + $0x1c] sm:$0xf]
      %v1073 = vld [vmem:[%s246 + $0x20] sm:$0xf]
      %v1074 = vld [vmem:[%s246 + $0x24] sm:$0xf]
      %v1075 = vld [vmem:[%s246 + $0x28] sm:$0xf]
      %v1076 = vld [vmem:[%s246 + $0x2c] sm:$0xf]
      %v1077 = vld [vmem:[%s246 + $0x30] sm:$0xf]
      %v1078 = vld [vmem:[%s246 + $0x34] sm:$0xf]
      %v1079 = vld [vmem:[%s246 + $0x38] sm:$0xf]
      %v1080 = vld [vmem:[%s246 + $0x3c] sm:$0xf]
      %v1081 = vld [vmem:[%s246 + $0x40] sm:$0xf]
      %v1082 = vld [vmem:[%s246 + $0x44] sm:$0xf]
      %v1083 = vld [vmem:[%s246 + $0x48] sm:$0xf]
      %v1084 = vld [vmem:[%s246 + $0x4c] sm:$0xf]
      %v1085 = vld [vmem:[%s246 + $0x50] sm:$0xf]
      %v1086 = vld [vmem:[%s246 + $0x54] sm:$0xf]
      %v1087 = vld [vmem:[%s246 + $0x58] sm:$0xf]
      %v1088 = vld [vmem:[%s246 + $0x5c] sm:$0xf]
      %v1089 = vld [vmem:[%s246 + $0x60] sm:$0xf]
      %v1090 = vld [vmem:[%s246 + $0x64] sm:$0xf]
      %v1091 = vld [vmem:[%s246 + $0x68] sm:$0xf]
      %v1092 = vld [vmem:[%s246 + $0x6c] sm:$0xf]
      %v1093 = vld [vmem:[%s246 + $0x70] sm:$0xf]
      %v1094 = vld [vmem:[%s246 + $0x74] sm:$0xf]
      %v1095 = vld [vmem:[%s246 + $0x78] sm:$0xf]
      %v1096 = vld [vmem:[%s246 + $0x7c] sm:$0xf]
      %v1097 = vld [vmem:[%s246 + $0x80] sm:$0xf]
      %v1098 = vld [vmem:[%s246 + $0x84] sm:$0xf]
      %v1099 = vld [vmem:[%s246 + $0x88] sm:$0xf]
      %v1100 = vld [vmem:[%s246 + $0x8c] sm:$0xf]
      %v1101 = vld [vmem:[%s246 + $0x90] sm:$0xf]
      %v1102 = vld [vmem:[%s246 + $0x94] sm:$0xf]
      %v1103 = vld [vmem:[%s246 + $0x98] sm:$0x1]
      %s1104 = scalar_lea.vmem %s2, 6
      %v1105 = vld [vmem:[%s1104] sm:$0x3]
      %v1143 = vunpack.c.l.b16 %v1067
      %v1144 = vunpack.c.l.b16 %v1068
      %v1145 = vunpack.c.l.b16 %v1069
      %v1146 = vunpack.c.l.b16 %v1070
      %v1147 = vunpack.c.l.b16 %v1071
      %v1148 = vunpack.c.l.b16 %v1072
      %v1149 = vunpack.c.l.b16 %v1073
      %v1150 = vunpack.c.l.b16 %v1074
      %v1151 = vunpack.c.l.b16 %v1075
      %v1152 = vunpack.c.l.b16 %v1076
      %v1153 = vunpack.c.l.b16 %v1077
      %v1154 = vunpack.c.l.b16 %v1078
      %v1155 = vunpack.c.l.b16 %v1079
      %v1156 = vunpack.c.l.b16 %v1080
      %v1157 = vunpack.c.l.b16 %v1081
      %v1158 = vunpack.c.l.b16 %v1082
      %v1159 = vunpack.c.l.b16 %v1083
      %v1160 = vunpack.c.l.b16 %v1084
      %v1161 = vunpack.c.l.b16 %v1085
      %v1162 = vunpack.c.l.b16 %v1086
      %v1163 = vunpack.c.l.b16 %v1087
      %v1164 = vunpack.c.l.b16 %v1088
      %v1165 = vunpack.c.l.b16 %v1089
      %v1166 = vunpack.c.l.b16 %v1090
      %v1167 = vunpack.c.l.b16 %v1091
      %v1168 = vunpack.c.l.b16 %v1092
      %v1169 = vunpack.c.l.b16 %v1093
      %v1170 = vunpack.c.l.b16 %v1094
      %v1171 = vunpack.c.l.b16 %v1095
      %v1172 = vunpack.c.l.b16 %v1096
      %v1173 = vunpack.c.l.b16 %v1097
      %v1174 = vunpack.c.l.b16 %v1098
      %v1175 = vunpack.c.l.b16 %v1099
      %v1176 = vunpack.c.l.b16 %v1100
      %v1177 = vunpack.c.l.b16 %v1101
      %v1178 = vunpack.c.l.b16 %v1102
      %v1179 = vunpack.c.l.b16 %v1103
      %v1180 = vpack.c.b16 %v1144, %v1143
      %v1181 = vpack.c.b16 %v1146, %v1145
      %v1182 = vpack.c.b16 %v1148, %v1147
      %v1183 = vpack.c.b16 %v1150, %v1149
      %v1184 = vpack.c.b16 %v1152, %v1151
      %v1185 = vpack.c.b16 %v1154, %v1153
      %v1186 = vpack.c.b16 %v1156, %v1155
      %v1187 = vpack.c.b16 %v1158, %v1157
      %v1188 = vpack.c.b16 %v1160, %v1159
      %v1189 = vpack.c.b16 %v1162, %v1161
      %v1190 = vpack.c.b16 %v1164, %v1163
      %v1191 = vpack.c.b16 %v1166, %v1165
      %v1192 = vpack.c.b16 %v1168, %v1167
      %v1193 = vpack.c.b16 %v1170, %v1169
      %v1194 = vpack.c.b16 %v1172, %v1171
      %v1195 = vpack.c.b16 %v1174, %v1173
      %v1196 = vpack.c.b16 %v1176, %v1175
      %v1197 = vpack.c.b16 %v1178, %v1177
      %v1198 = vpack.c.b16 %v1179, %v1179
      %v1199 = vrot.slane %v1180, 1
      %v1200 = vrot.slane %v1181, 1
      %v1201 = vsel %vm837, %v1199, %v1200
      %v1202 = vrot.slane %v1182, 1
      %v1203 = vsel %vm837, %v1200, %v1202
      %v1204 = vrot.slane %v1183, 1
      %v1205 = vsel %vm837, %v1202, %v1204
      %v1206 = vrot.slane %v1184, 1
      %v1207 = vsel %vm837, %v1204, %v1206
      %v1208 = vrot.slane %v1185, 1
      %v1209 = vsel %vm837, %v1206, %v1208
      %v1210 = vrot.slane %v1186, 1
      %v1211 = vsel %vm837, %v1208, %v1210
      %v1212 = vrot.slane %v1187, 1
      %v1213 = vsel %vm837, %v1210, %v1212
      %v1214 = vrot.slane %v1188, 1
      %v1215 = vsel %vm837, %v1212, %v1214
      %v1216 = vrot.slane %v1189, 1
      %v1217 = vsel %vm837, %v1214, %v1216
      %v1218 = vrot.slane %v1190, 1
      %v1219 = vsel %vm837, %v1216, %v1218
      %v1220 = vrot.slane %v1191, 1
      %v1221 = vsel %vm837, %v1218, %v1220
      %v1222 = vrot.slane %v1192, 1
      %v1223 = vsel %vm837, %v1220, %v1222
      %v1224 = vrot.slane %v1193, 1
      %v1225 = vsel %vm837, %v1222, %v1224
      %v1226 = vrot.slane %v1194, 1
      %v1227 = vsel %vm837, %v1224, %v1226
      %v1228 = vrot.slane %v1195, 1
      %v1229 = vsel %vm837, %v1226, %v1228
      %v1230 = vrot.slane %v1196, 1
      %v1231 = vsel %vm837, %v1228, %v1230
      %v1232 = vrot.slane %v1197, 1
      %v1233 = vsel %vm837, %v1230, %v1232
      %v1234 = vrot.slane %v1198, 1
      %v1235 = vsel %vm837, %v1232, %v1234
      %v1237 = vsel %vm535, %v1201, 0
      %v1240 = vsel %vm535, %v1203, 0
      %v1243 = vsel %vm535, %v1205, 0
      %v1246 = vsel %vm535, %v1207, 0
      %v1249 = vsel %vm535, %v1209, 0
      %v1252 = vsel %vm535, %v1211, 0
      %v1255 = vsel %vm535, %v1213, 0
      %v1258 = vsel %vm535, %v1215, 0
      %v1261 = vsel %vm535, %v1217, 0
      %v1264 = vsel %vm535, %v1219, 0
      %v1267 = vsel %vm535, %v1221, 0
      %v1270 = vsel %vm535, %v1223, 0
      %v1273 = vsel %vm535, %v1225, 0
      %v1276 = vsel %vm535, %v1227, 0
      %v1279 = vsel %vm535, %v1229, 0
      %v1282 = vsel %vm535, %v1231, 0
      %v1285 = vsel %vm535, %v1233, 0
      %v1288 = vsel %vm535, %v1235, 0
      %v1291 = vsel %vm590, %v1105, 0
      %1293 = vmatpush.bf16.msra.mxu0 0
      %1294 = vmatpush.bf16.msra.mxu0 0
      %1295 = vmatpush.bf16.msra.mxu0 0
      %1296 = vmatpush.bf16.msra.mxu0 0
      %1297 = vmatpush.bf16.msra.mxu0 0
      %1298 = vmatpush.bf16.msra.mxu0 0
      %1299 = vmatpush.bf16.msra.mxu0 0
      %1300 = vmatpush.bf16.msra.mxu0 %v1291
      %1301 = vmatmul.bf16.gmra.mxu0 %v1237
      %v1302 = vpop.f32.mrf.mxu0
      %v1303 = vadd.f32 0.0, %v1302
      %v1304 = vpop.f32.mrf.mxu0
      %v1305 = vadd.f32 0.0, %v1304
      %1306 = vmatmul.bf16.gmra.mxu0 %v1240
      %v1307 = vpop.f32.mrf.mxu0
      %v1308 = vadd.f32 0.0, %v1307
      %v1309 = vpop.f32.mrf.mxu0
      %v1310 = vadd.f32 0.0, %v1309
      %1311 = vmatmul.bf16.gmra.mxu0 %v1243
      %v1312 = vpop.f32.mrf.mxu0
      %v1313 = vadd.f32 0.0, %v1312
      %v1314 = vpop.f32.mrf.mxu0
      %v1315 = vadd.f32 0.0, %v1314
      %1316 = vmatmul.bf16.gmra.mxu0 %v1246
      %v1317 = vpop.f32.mrf.mxu0
      %v1318 = vadd.f32 0.0, %v1317
      %v1319 = vpop.f32.mrf.mxu0
      %v1320 = vadd.f32 0.0, %v1319
      %1321 = vmatmul.bf16.gmra.mxu0 %v1249
      %v1322 = vpop.f32.mrf.mxu0
      %v1323 = vadd.f32 0.0, %v1322
      %v1324 = vpop.f32.mrf.mxu0
      %v1325 = vadd.f32 0.0, %v1324
      %1326 = vmatmul.bf16.gmra.mxu0 %v1252
      %v1327 = vpop.f32.mrf.mxu0
      %v1328 = vadd.f32 0.0, %v1327
      %v1329 = vpop.f32.mrf.mxu0
      %v1330 = vadd.f32 0.0, %v1329
      %1331 = vmatmul.bf16.gmra.mxu0 %v1255
      %v1332 = vpop.f32.mrf.mxu0
      %v1333 = vadd.f32 0.0, %v1332
      %v1334 = vpop.f32.mrf.mxu0
      %v1335 = vadd.f32 0.0, %v1334
      %1336 = vmatmul.bf16.gmra.mxu0 %v1258
      %v1337 = vpop.f32.mrf.mxu0
      %v1338 = vadd.f32 0.0, %v1337
      %v1339 = vpop.f32.mrf.mxu0
      %v1340 = vadd.f32 0.0, %v1339
      %1341 = vmatmul.bf16.gmra.mxu0 %v1261
      %v1342 = vpop.f32.mrf.mxu0
      %v1343 = vadd.f32 0.0, %v1342
      %v1344 = vpop.f32.mrf.mxu0
      %v1345 = vadd.f32 0.0, %v1344
      %1346 = vmatmul.bf16.gmra.mxu0 %v1264
      %v1347 = vpop.f32.mrf.mxu0
      %v1348 = vadd.f32 0.0, %v1347
      %v1349 = vpop.f32.mrf.mxu0
      %v1350 = vadd.f32 0.0, %v1349
      %1351 = vmatmul.bf16.gmra.mxu0 %v1267
      %v1352 = vpop.f32.mrf.mxu0
      %v1353 = vadd.f32 0.0, %v1352
      %v1354 = vpop.f32.mrf.mxu0
      %v1355 = vadd.f32 0.0, %v1354
      %1356 = vmatmul.bf16.gmra.mxu0 %v1270
      %v1357 = vpop.f32.mrf.mxu0
      %v1358 = vadd.f32 0.0, %v1357
      %v1359 = vpop.f32.mrf.mxu0
      %v1360 = vadd.f32 0.0, %v1359
      %1361 = vmatmul.bf16.gmra.mxu0 %v1273
      %v1362 = vpop.f32.mrf.mxu0
      %v1363 = vadd.f32 0.0, %v1362
      %v1364 = vpop.f32.mrf.mxu0
      %v1365 = vadd.f32 0.0, %v1364
      %1366 = vmatmul.bf16.gmra.mxu0 %v1276
      %v1367 = vpop.f32.mrf.mxu0
      %v1368 = vadd.f32 0.0, %v1367
      %v1369 = vpop.f32.mrf.mxu0
      %v1370 = vadd.f32 0.0, %v1369
      %1371 = vmatmul.bf16.gmra.mxu0 %v1279
      %v1372 = vpop.f32.mrf.mxu0
      %v1373 = vadd.f32 0.0, %v1372
      %v1374 = vpop.f32.mrf.mxu0
      %v1375 = vadd.f32 0.0, %v1374
      %1376 = vmatmul.bf16.gmra.mxu0 %v1282
      %v1377 = vpop.f32.mrf.mxu0
      %v1378 = vadd.f32 0.0, %v1377
      %v1379 = vpop.f32.mrf.mxu0
      %v1380 = vadd.f32 0.0, %v1379
      %1381 = vmatmul.bf16.gmra.mxu0 %v1285
      %v1382 = vpop.f32.mrf.mxu0
      %v1383 = vadd.f32 0.0, %v1382
      %v1384 = vpop.f32.mrf.mxu0
      %v1385 = vadd.f32 0.0, %v1384
      %1386 = vmatmul.bf16.gmra.mxu0 %v1288
      %v1387 = vpop.f32.mrf.mxu0
      %v1388 = vadd.f32 0.0, %v1387
      %v1389 = vpop.f32.mrf.mxu0
      %v1390 = vadd.f32 0.0, %v1389
      %1391 = vdwg.mxu0
      %v1392 = vadd.f32 %v1031, %v1303
      %v1393 = vadd.f32 %v1032, %v1305
      %v1394 = vadd.f32 %v1033, %v1308
      %v1395 = vadd.f32 %v1034, %v1310
      %v1396 = vadd.f32 %v1035, %v1313
      %v1397 = vadd.f32 %v1036, %v1315
      %v1398 = vadd.f32 %v1037, %v1318
      %v1399 = vadd.f32 %v1038, %v1320
      %v1400 = vadd.f32 %v1039, %v1323
      %v1401 = vadd.f32 %v1040, %v1325
      %v1402 = vadd.f32 %v1041, %v1328
      %v1403 = vadd.f32 %v1042, %v1330
      %v1404 = vadd.f32 %v1043, %v1333
      %v1405 = vadd.f32 %v1044, %v1335
      %v1406 = vadd.f32 %v1045, %v1338
      %v1407 = vadd.f32 %v1046, %v1340
      %v1408 = vadd.f32 %v1047, %v1343
      %v1409 = vadd.f32 %v1048, %v1345
      %v1410 = vadd.f32 %v1049, %v1348
      %v1411 = vadd.f32 %v1050, %v1350
      %v1412 = vadd.f32 %v1051, %v1353
      %v1413 = vadd.f32 %v1052, %v1355
      %v1414 = vadd.f32 %v1053, %v1358
      %v1415 = vadd.f32 %v1054, %v1360
      %v1416 = vadd.f32 %v1055, %v1363
      %v1417 = vadd.f32 %v1056, %v1365
      %v1418 = vadd.f32 %v1057, %v1368
      %v1419 = vadd.f32 %v1058, %v1370
      %v1420 = vadd.f32 %v1059, %v1373
      %v1421 = vadd.f32 %v1060, %v1375
      %v1422 = vadd.f32 %v1061, %v1378
      %v1423 = vadd.f32 %v1062, %v1380
      %v1424 = vadd.f32 %v1063, %v1383
      %v1425 = vadd.f32 %v1064, %v1385
      %v1426 = vadd.f32 %v1065, %v1388
      %v1427 = vadd.f32 %v1066, %v1390
      %v1428 = vld [vmem:[%s246 + $0x98] sm:$0x3]
      %s1429 = scalar_lea.vmem %s2, 8
      %v1430 = vld [vmem:[%s1429] sm:$0x3]
      %v1432 = vunpack.c.l.b16 %v1428
      %v1433 = vpack.c.b16 %v1432, %v1432
      %vm1434 = vsmask.f32 6400
      %v1436 = vshrl.u32 %v1180, 16
      %v1438 = vrot.slane %v1436, 1
      %v1439 = vshll.u32 %v1180, 16
      %v1441 = vrot.slane %v1439, 2
      %v1442 = vor.u32 %v1438, %v1441
      %v1444 = vshrl.u32 %v1181, 16
      %v1446 = vrot.slane %v1444, 1
      %v1447 = vshll.u32 %v1181, 16
      %v1449 = vrot.slane %v1447, 2
      %v1450 = vor.u32 %v1446, %v1449
      %v1451 = vsel %vm1434, %v1442, %v1450
      %v1453 = vshrl.u32 %v1182, 16
      %v1455 = vrot.slane %v1453, 1
      %v1456 = vshll.u32 %v1182, 16
      %v1458 = vrot.slane %v1456, 2
      %v1459 = vor.u32 %v1455, %v1458
      %v1460 = vsel %vm1434, %v1450, %v1459
      %v1462 = vshrl.u32 %v1183, 16
      %v1464 = vrot.slane %v1462, 1
      %v1465 = vshll.u32 %v1183, 16
      %v1467 = vrot.slane %v1465, 2
      %v1468 = vor.u32 %v1464, %v1467
      %v1469 = vsel %vm1434, %v1459, %v1468
      %v1471 = vshrl.u32 %v1184, 16
      %v1473 = vrot.slane %v1471, 1
      %v1474 = vshll.u32 %v1184, 16
      %v1476 = vrot.slane %v1474, 2
      %v1477 = vor.u32 %v1473, %v1476
      %v1478 = vsel %vm1434, %v1468, %v1477
      %v1480 = vshrl.u32 %v1185, 16
      %v1482 = vrot.slane %v1480, 1
      %v1483 = vshll.u32 %v1185, 16
      %v1485 = vrot.slane %v1483, 2
      %v1486 = vor.u32 %v1482, %v1485
      %v1487 = vsel %vm1434, %v1477, %v1486
      %v1489 = vshrl.u32 %v1186, 16
      %v1491 = vrot.slane %v1489, 1
      %v1492 = vshll.u32 %v1186, 16
      %v1494 = vrot.slane %v1492, 2
      %v1495 = vor.u32 %v1491, %v1494
      %v1496 = vsel %vm1434, %v1486, %v1495
      %v1498 = vshrl.u32 %v1187, 16
      %v1500 = vrot.slane %v1498, 1
      %v1501 = vshll.u32 %v1187, 16
      %v1503 = vrot.slane %v1501, 2
      %v1504 = vor.u32 %v1500, %v1503
      %v1505 = vsel %vm1434, %v1495, %v1504
      %v1507 = vshrl.u32 %v1188, 16
      %v1509 = vrot.slane %v1507, 1
      %v1510 = vshll.u32 %v1188, 16
      %v1512 = vrot.slane %v1510, 2
      %v1513 = vor.u32 %v1509, %v1512
      %v1514 = vsel %vm1434, %v1504, %v1513
      %v1516 = vshrl.u32 %v1189, 16
      %v1518 = vrot.slane %v1516, 1
      %v1519 = vshll.u32 %v1189, 16
      %v1521 = vrot.slane %v1519, 2
      %v1522 = vor.u32 %v1518, %v1521
      %v1523 = vsel %vm1434, %v1513, %v1522
      %v1525 = vshrl.u32 %v1190, 16
      %v1527 = vrot.slane %v1525, 1
      %v1528 = vshll.u32 %v1190, 16
      %v1530 = vrot.slane %v1528, 2
      %v1531 = vor.u32 %v1527, %v1530
      %v1532 = vsel %vm1434, %v1522, %v1531
      %v1534 = vshrl.u32 %v1191, 16
      %v1536 = vrot.slane %v1534, 1
      %v1537 = vshll.u32 %v1191, 16
      %v1539 = vrot.slane %v1537, 2
      %v1540 = vor.u32 %v1536, %v1539
      %v1541 = vsel %vm1434, %v1531, %v1540
      %v1543 = vshrl.u32 %v1192, 16
      %v1545 = vrot.slane %v1543, 1
      %v1546 = vshll.u32 %v1192, 16
      %v1548 = vrot.slane %v1546, 2
      %v1549 = vor.u32 %v1545, %v1548
      %v1550 = vsel %vm1434, %v1540, %v1549
      %v1552 = vshrl.u32 %v1193, 16
      %v1554 = vrot.slane %v1552, 1
      %v1555 = vshll.u32 %v1193, 16
      %v1557 = vrot.slane %v1555, 2
      %v1558 = vor.u32 %v1554, %v1557
      %v1559 = vsel %vm1434, %v1549, %v1558
      %v1561 = vshrl.u32 %v1194, 16
      %v1563 = vrot.slane %v1561, 1
      %v1564 = vshll.u32 %v1194, 16
      %v1566 = vrot.slane %v1564, 2
      %v1567 = vor.u32 %v1563, %v1566
      %v1568 = vsel %vm1434, %v1558, %v1567
      %v1570 = vshrl.u32 %v1195, 16
      %v1572 = vrot.slane %v1570, 1
      %v1573 = vshll.u32 %v1195, 16
      %v1575 = vrot.slane %v1573, 2
      %v1576 = vor.u32 %v1572, %v1575
      %v1577 = vsel %vm1434, %v1567, %v1576
      %v1579 = vshrl.u32 %v1196, 16
      %v1581 = vrot.slane %v1579, 1
      %v1582 = vshll.u32 %v1196, 16
      %v1584 = vrot.slane %v1582, 2
      %v1585 = vor.u32 %v1581, %v1584
      %v1586 = vsel %vm1434, %v1576, %v1585
      %v1588 = vshrl.u32 %v1197, 16
      %v1590 = vrot.slane %v1588, 1
      %v1591 = vshll.u32 %v1197, 16
      %v1593 = vrot.slane %v1591, 2
      %v1594 = vor.u32 %v1590, %v1593
      %v1595 = vsel %vm1434, %v1585, %v1594
      %v1597 = vshrl.u32 %v1433, 16
      %v1599 = vrot.slane %v1597, 1
      %v1600 = vshll.u32 %v1433, 16
      %v1602 = vrot.slane %v1600, 2
      %v1603 = vor.u32 %v1599, %v1602
      %v1604 = vsel %vm1434, %v1594, %v1603
      %v1606 = vsel %vm535, %v1451, 0
      %v1609 = vsel %vm535, %v1460, 0
      %v1612 = vsel %vm535, %v1469, 0
      %v1615 = vsel %vm535, %v1478, 0
      %v1618 = vsel %vm535, %v1487, 0
      %v1621 = vsel %vm535, %v1496, 0
      %v1624 = vsel %vm535, %v1505, 0
      %v1627 = vsel %vm535, %v1514, 0
      %v1630 = vsel %vm535, %v1523, 0
      %v1633 = vsel %vm535, %v1532, 0
      %v1636 = vsel %vm535, %v1541, 0
      %v1639 = vsel %vm535, %v1550, 0
      %v1642 = vsel %vm535, %v1559, 0
      %v1645 = vsel %vm535, %v1568, 0
      %v1648 = vsel %vm535, %v1577, 0
      %v1651 = vsel %vm535, %v1586, 0
      %v1654 = vsel %vm535, %v1595, 0
      %v1657 = vsel %vm535, %v1604, 0
      %v1660 = vsel %vm590, %v1430, 0
      %1662 = vmatpush.bf16.msra.mxu0 0
      %1663 = vmatpush.bf16.msra.mxu0 0
      %1664 = vmatpush.bf16.msra.mxu0 0
      %1665 = vmatpush.bf16.msra.mxu0 0
      %1666 = vmatpush.bf16.msra.mxu0 0
      %1667 = vmatpush.bf16.msra.mxu0 0
      %1668 = vmatpush.bf16.msra.mxu0 0
      %1669 = vmatpush.bf16.msra.mxu0 %v1660
      %1670 = vmatmul.bf16.gmra.mxu0 %v1606
      %v1671 = vpop.f32.mrf.mxu0
      %v1672 = vadd.f32 0.0, %v1671
      %v1673 = vpop.f32.mrf.mxu0
      %v1674 = vadd.f32 0.0, %v1673
      %1675 = vmatmul.bf16.gmra.mxu0 %v1609
      %v1676 = vpop.f32.mrf.mxu0
      %v1677 = vadd.f32 0.0, %v1676
      %v1678 = vpop.f32.mrf.mxu0
      %v1679 = vadd.f32 0.0, %v1678
      %1680 = vmatmul.bf16.gmra.mxu0 %v1612
      %v1681 = vpop.f32.mrf.mxu0
      %v1682 = vadd.f32 0.0, %v1681
      %v1683 = vpop.f32.mrf.mxu0
      %v1684 = vadd.f32 0.0, %v1683
      %1685 = vmatmul.bf16.gmra.mxu0 %v1615
      %v1686 = vpop.f32.mrf.mxu0
      %v1687 = vadd.f32 0.0, %v1686
      %v1688 = vpop.f32.mrf.mxu0
      %v1689 = vadd.f32 0.0, %v1688
      %1690 = vmatmul.bf16.gmra.mxu0 %v1618
      %v1691 = vpop.f32.mrf.mxu0
      %v1692 = vadd.f32 0.0, %v1691
      %v1693 = vpop.f32.mrf.mxu0
      %v1694 = vadd.f32 0.0, %v1693
      %1695 = vmatmul.bf16.gmra.mxu0 %v1621
      %v1696 = vpop.f32.mrf.mxu0
      %v1697 = vadd.f32 0.0, %v1696
      %v1698 = vpop.f32.mrf.mxu0
      %v1699 = vadd.f32 0.0, %v1698
      %1700 = vmatmul.bf16.gmra.mxu0 %v1624
      %v1701 = vpop.f32.mrf.mxu0
      %v1702 = vadd.f32 0.0, %v1701
      %v1703 = vpop.f32.mrf.mxu0
      %v1704 = vadd.f32 0.0, %v1703
      %1705 = vmatmul.bf16.gmra.mxu0 %v1627
      %v1706 = vpop.f32.mrf.mxu0
      %v1707 = vadd.f32 0.0, %v1706
      %v1708 = vpop.f32.mrf.mxu0
      %v1709 = vadd.f32 0.0, %v1708
      %1710 = vmatmul.bf16.gmra.mxu0 %v1630
      %v1711 = vpop.f32.mrf.mxu0
      %v1712 = vadd.f32 0.0, %v1711
      %v1713 = vpop.f32.mrf.mxu0
      %v1714 = vadd.f32 0.0, %v1713
      %1715 = vmatmul.bf16.gmra.mxu0 %v1633
      %v1716 = vpop.f32.mrf.mxu0
      %v1717 = vadd.f32 0.0, %v1716
      %v1718 = vpop.f32.mrf.mxu0
      %v1719 = vadd.f32 0.0, %v1718
      %1720 = vmatmul.bf16.gmra.mxu0 %v1636
      %v1721 = vpop.f32.mrf.mxu0
      %v1722 = vadd.f32 0.0, %v1721
      %v1723 = vpop.f32.mrf.mxu0
      %v1724 = vadd.f32 0.0, %v1723
      %1725 = vmatmul.bf16.gmra.mxu0 %v1639
      %v1726 = vpop.f32.mrf.mxu0
      %v1727 = vadd.f32 0.0, %v1726
      %v1728 = vpop.f32.mrf.mxu0
      %v1729 = vadd.f32 0.0, %v1728
      %1730 = vmatmul.bf16.gmra.mxu0 %v1642
      %v1731 = vpop.f32.mrf.mxu0
      %v1732 = vadd.f32 0.0, %v1731
      %v1733 = vpop.f32.mrf.mxu0
      %v1734 = vadd.f32 0.0, %v1733
      %1735 = vmatmul.bf16.gmra.mxu0 %v1645
      %v1736 = vpop.f32.mrf.mxu0
      %v1737 = vadd.f32 0.0, %v1736
      %v1738 = vpop.f32.mrf.mxu0
      %v1739 = vadd.f32 0.0, %v1738
      %1740 = vmatmul.bf16.gmra.mxu0 %v1648
      %v1741 = vpop.f32.mrf.mxu0
      %v1742 = vadd.f32 0.0, %v1741
      %v1743 = vpop.f32.mrf.mxu0
      %v1744 = vadd.f32 0.0, %v1743
      %1745 = vmatmul.bf16.gmra.mxu0 %v1651
      %v1746 = vpop.f32.mrf.mxu0
      %v1747 = vadd.f32 0.0, %v1746
      %v1748 = vpop.f32.mrf.mxu0
      %v1749 = vadd.f32 0.0, %v1748
      %1750 = vmatmul.bf16.gmra.mxu0 %v1654
      %v1751 = vpop.f32.mrf.mxu0
      %v1752 = vadd.f32 0.0, %v1751
      %v1753 = vpop.f32.mrf.mxu0
      %v1754 = vadd.f32 0.0, %v1753
      %1755 = vmatmul.bf16.gmra.mxu0 %v1657
      %v1756 = vpop.f32.mrf.mxu0
      %v1757 = vadd.f32 0.0, %v1756
      %v1758 = vpop.f32.mrf.mxu0
      %v1759 = vadd.f32 0.0, %v1758
      %1760 = vdwg.mxu0
      %v1761 = vadd.f32 %v1392, %v1672
      %v1762 = vadd.f32 %v1393, %v1674
      %v1763 = vadd.f32 %v1394, %v1677
      %v1764 = vadd.f32 %v1395, %v1679
      %v1765 = vadd.f32 %v1396, %v1682
      %v1766 = vadd.f32 %v1397, %v1684
      %v1767 = vadd.f32 %v1398, %v1687
      %v1768 = vadd.f32 %v1399, %v1689
      %v1769 = vadd.f32 %v1400, %v1692
      %v1770 = vadd.f32 %v1401, %v1694
      %v1771 = vadd.f32 %v1402, %v1697
      %v1772 = vadd.f32 %v1403, %v1699
      %v1773 = vadd.f32 %v1404, %v1702
      %v1774 = vadd.f32 %v1405, %v1704
      %v1775 = vadd.f32 %v1406, %v1707
      %v1776 = vadd.f32 %v1407, %v1709
      %v1777 = vadd.f32 %v1408, %v1712
      %v1778 = vadd.f32 %v1409, %v1714
      %v1779 = vadd.f32 %v1410, %v1717
      %v1780 = vadd.f32 %v1411, %v1719
      %v1781 = vadd.f32 %v1412, %v1722
      %v1782 = vadd.f32 %v1413, %v1724
      %v1783 = vadd.f32 %v1414, %v1727
      %v1784 = vadd.f32 %v1415, %v1729
      %v1785 = vadd.f32 %v1416, %v1732
      %v1786 = vadd.f32 %v1417, %v1734
      %v1787 = vadd.f32 %v1418, %v1737
      %v1788 = vadd.f32 %v1419, %v1739
      %v1789 = vadd.f32 %v1420, %v1742
      %v1790 = vadd.f32 %v1421, %v1744
      %v1791 = vadd.f32 %v1422, %v1747
      %v1792 = vadd.f32 %v1423, %v1749
      %v1793 = vadd.f32 %v1424, %v1752
      %v1794 = vadd.f32 %v1425, %v1754
      %v1795 = vadd.f32 %v1426, %v1757
      %v1796 = vadd.f32 %v1427, %v1759
      %v1797 = vld [vmem:[%s246 + $0x8] sm:$0xc]
      %s1798 = scalar_lea.vmem %s2, 10
      %v1799 = vld [vmem:[%s1798] sm:$0x3]
      %v1801 = vunpack.c.l.b16 %v1797
      %v1802 = vpack.c.b16 %v1144, %v1801
      %vm1803 = vcmask 1045504
      %v1804 = vrot.slane %v1802, 2
      %v1805 = vrot.slane %v1181, 2
      %v1806 = vsel %vm1803, %v1804, %v1805
      %v1807 = vrot.slane %v1182, 2
      %v1808 = vsel %vm1803, %v1805, %v1807
      %v1809 = vrot.slane %v1183, 2
      %v1810 = vsel %vm1803, %v1807, %v1809
      %v1811 = vrot.slane %v1184, 2
      %v1812 = vsel %vm1803, %v1809, %v1811
      %v1813 = vrot.slane %v1185, 2
      %v1814 = vsel %vm1803, %v1811, %v1813
      %v1815 = vrot.slane %v1186, 2
      %v1816 = vsel %vm1803, %v1813, %v1815
      %v1817 = vrot.slane %v1187, 2
      %v1818 = vsel %vm1803, %v1815, %v1817
      %v1819 = vrot.slane %v1188, 2
      %v1820 = vsel %vm1803, %v1817, %v1819
      %v1821 = vrot.slane %v1189, 2
      %v1822 = vsel %vm1803, %v1819, %v1821
      %v1823 = vrot.slane %v1190, 2
      %v1824 = vsel %vm1803, %v1821, %v1823
      %v1825 = vrot.slane %v1191, 2
      %v1826 = vsel %vm1803, %v1823, %v1825
      %v1827 = vrot.slane %v1192, 2
      %v1828 = vsel %vm1803, %v1825, %v1827
      %v1829 = vrot.slane %v1193, 2
      %v1830 = vsel %vm1803, %v1827, %v1829
      %v1831 = vrot.slane %v1194, 2
      %v1832 = vsel %vm1803, %v1829, %v1831
      %v1833 = vrot.slane %v1195, 2
      %v1834 = vsel %vm1803, %v1831, %v1833
      %v1835 = vrot.slane %v1196, 2
      %v1836 = vsel %vm1803, %v1833, %v1835
      %v1837 = vrot.slane %v1197, 2
      %v1838 = vsel %vm1803, %v1835, %v1837
      %v1839 = vrot.slane %v1433, 2
      %v1840 = vsel %vm1803, %v1837, %v1839
      %v1842 = vsel %vm535, %v1806, 0
      %v1845 = vsel %vm535, %v1808, 0
      %v1848 = vsel %vm535, %v1810, 0
      %v1851 = vsel %vm535, %v1812, 0
      %v1854 = vsel %vm535, %v1814, 0
      %v1857 = vsel %vm535, %v1816, 0
      %v1860 = vsel %vm535, %v1818, 0
      %v1863 = vsel %vm535, %v1820, 0
      %v1866 = vsel %vm535, %v1822, 0
      %v1869 = vsel %vm535, %v1824, 0
      %v1872 = vsel %vm535, %v1826, 0
      %v1875 = vsel %vm535, %v1828, 0
      %v1878 = vsel %vm535, %v1830, 0
      %v1881 = vsel %vm535, %v1832, 0
      %v1884 = vsel %vm535, %v1834, 0
      %v1887 = vsel %vm535, %v1836, 0
      %v1890 = vsel %vm535, %v1838, 0
      %v1893 = vsel %vm535, %v1840, 0
      %v1896 = vsel %vm590, %v1799, 0
      %1898 = vmatpush.bf16.msra.mxu0 0
      %1899 = vmatpush.bf16.msra.mxu0 0
      %1900 = vmatpush.bf16.msra.mxu0 0
      %1901 = vmatpush.bf16.msra.mxu0 0
      %1902 = vmatpush.bf16.msra.mxu0 0
      %1903 = vmatpush.bf16.msra.mxu0 0
      %1904 = vmatpush.bf16.msra.mxu0 0
      %1905 = vmatpush.bf16.msra.mxu0 %v1896
      %1906 = vmatmul.bf16.gmra.mxu0 %v1842
      %v1907 = vpop.f32.mrf.mxu0
      %v1908 = vadd.f32 0.0, %v1907
      %v1909 = vpop.f32.mrf.mxu0
      %v1910 = vadd.f32 0.0, %v1909
      %1911 = vmatmul.bf16.gmra.mxu0 %v1845
      %v1912 = vpop.f32.mrf.mxu0
      %v1913 = vadd.f32 0.0, %v1912
      %v1914 = vpop.f32.mrf.mxu0
      %v1915 = vadd.f32 0.0, %v1914
      %1916 = vmatmul.bf16.gmra.mxu0 %v1848
      %v1917 = vpop.f32.mrf.mxu0
      %v1918 = vadd.f32 0.0, %v1917
      %v1919 = vpop.f32.mrf.mxu0
      %v1920 = vadd.f32 0.0, %v1919
      %1921 = vmatmul.bf16.gmra.mxu0 %v1851
      %v1922 = vpop.f32.mrf.mxu0
      %v1923 = vadd.f32 0.0, %v1922
      %v1924 = vpop.f32.mrf.mxu0
      %v1925 = vadd.f32 0.0, %v1924
      %1926 = vmatmul.bf16.gmra.mxu0 %v1854
      %v1927 = vpop.f32.mrf.mxu0
      %v1928 = vadd.f32 0.0, %v1927
      %v1929 = vpop.f32.mrf.mxu0
      %v1930 = vadd.f32 0.0, %v1929
      %1931 = vmatmul.bf16.gmra.mxu0 %v1857
      %v1932 = vpop.f32.mrf.mxu0
      %v1933 = vadd.f32 0.0, %v1932
      %v1934 = vpop.f32.mrf.mxu0
      %v1935 = vadd.f32 0.0, %v1934
      %1936 = vmatmul.bf16.gmra.mxu0 %v1860
      %v1937 = vpop.f32.mrf.mxu0
      %v1938 = vadd.f32 0.0, %v1937
      %v1939 = vpop.f32.mrf.mxu0
      %v1940 = vadd.f32 0.0, %v1939
      %1941 = vmatmul.bf16.gmra.mxu0 %v1863
      %v1942 = vpop.f32.mrf.mxu0
      %v1943 = vadd.f32 0.0, %v1942
      %v1944 = vpop.f32.mrf.mxu0
      %v1945 = vadd.f32 0.0, %v1944
      %1946 = vmatmul.bf16.gmra.mxu0 %v1866
      %v1947 = vpop.f32.mrf.mxu0
      %v1948 = vadd.f32 0.0, %v1947
      %v1949 = vpop.f32.mrf.mxu0
      %v1950 = vadd.f32 0.0, %v1949
      %1951 = vmatmul.bf16.gmra.mxu0 %v1869
      %v1952 = vpop.f32.mrf.mxu0
      %v1953 = vadd.f32 0.0, %v1952
      %v1954 = vpop.f32.mrf.mxu0
      %v1955 = vadd.f32 0.0, %v1954
      %1956 = vmatmul.bf16.gmra.mxu0 %v1872
      %v1957 = vpop.f32.mrf.mxu0
      %v1958 = vadd.f32 0.0, %v1957
      %v1959 = vpop.f32.mrf.mxu0
      %v1960 = vadd.f32 0.0, %v1959
      %1961 = vmatmul.bf16.gmra.mxu0 %v1875
      %v1962 = vpop.f32.mrf.mxu0
      %v1963 = vadd.f32 0.0, %v1962
      %v1964 = vpop.f32.mrf.mxu0
      %v1965 = vadd.f32 0.0, %v1964
      %1966 = vmatmul.bf16.gmra.mxu0 %v1878
      %v1967 = vpop.f32.mrf.mxu0
      %v1968 = vadd.f32 0.0, %v1967
      %v1969 = vpop.f32.mrf.mxu0
      %v1970 = vadd.f32 0.0, %v1969
      %1971 = vmatmul.bf16.gmra.mxu0 %v1881
      %v1972 = vpop.f32.mrf.mxu0
      %v1973 = vadd.f32 0.0, %v1972
      %v1974 = vpop.f32.mrf.mxu0
      %v1975 = vadd.f32 0.0, %v1974
      %1976 = vmatmul.bf16.gmra.mxu0 %v1884
      %v1977 = vpop.f32.mrf.mxu0
      %v1978 = vadd.f32 0.0, %v1977
      %v1979 = vpop.f32.mrf.mxu0
      %v1980 = vadd.f32 0.0, %v1979
      %1981 = vmatmul.bf16.gmra.mxu0 %v1887
      %v1982 = vpop.f32.mrf.mxu0
      %v1983 = vadd.f32 0.0, %v1982
      %v1984 = vpop.f32.mrf.mxu0
      %v1985 = vadd.f32 0.0, %v1984
      %1986 = vmatmul.bf16.gmra.mxu0 %v1890
      %v1987 = vpop.f32.mrf.mxu0
      %v1988 = vadd.f32 0.0, %v1987
      %v1989 = vpop.f32.mrf.mxu0
      %v1990 = vadd.f32 0.0, %v1989
      %1991 = vmatmul.bf16.gmra.mxu0 %v1893
      %v1992 = vpop.f32.mrf.mxu0
      %v1993 = vadd.f32 0.0, %v1992
      %v1994 = vpop.f32.mrf.mxu0
      %v1995 = vadd.f32 0.0, %v1994
      %1996 = vdwg.mxu0
      %v1997 = vadd.f32 %v1761, %v1908
      %v1998 = vadd.f32 %v1762, %v1910
      %v1999 = vadd.f32 %v1763, %v1913
      %v2000 = vadd.f32 %v1764, %v1915
      %v2001 = vadd.f32 %v1765, %v1918
      %v2002 = vadd.f32 %v1766, %v1920
      %v2003 = vadd.f32 %v1767, %v1923
      %v2004 = vadd.f32 %v1768, %v1925
      %v2005 = vadd.f32 %v1769, %v1928
      %v2006 = vadd.f32 %v1770, %v1930
      %v2007 = vadd.f32 %v1771, %v1933
      %v2008 = vadd.f32 %v1772, %v1935
      %v2009 = vadd.f32 %v1773, %v1938
      %v2010 = vadd.f32 %v1774, %v1940
      %v2011 = vadd.f32 %v1775, %v1943
      %v2012 = vadd.f32 %v1776, %v1945
      %v2013 = vadd.f32 %v1777, %v1948
      %v2014 = vadd.f32 %v1778, %v1950
      %v2015 = vadd.f32 %v1779, %v1953
      %v2016 = vadd.f32 %v1780, %v1955
      %v2017 = vadd.f32 %v1781, %v1958
      %v2018 = vadd.f32 %v1782, %v1960
      %v2019 = vadd.f32 %v1783, %v1963
      %v2020 = vadd.f32 %v1784, %v1965
      %v2021 = vadd.f32 %v1785, %v1968
      %v2022 = vadd.f32 %v1786, %v1970
      %v2023 = vadd.f32 %v1787, %v1973
      %v2024 = vadd.f32 %v1788, %v1975
      %v2025 = vadd.f32 %v1789, %v1978
      %v2026 = vadd.f32 %v1790, %v1980
      %v2027 = vadd.f32 %v1791, %v1983
      %v2028 = vadd.f32 %v1792, %v1985
      %v2029 = vadd.f32 %v1793, %v1988
      %v2030 = vadd.f32 %v1794, %v1990
      %v2031 = vadd.f32 %v1795, %v1993
      %v2032 = vadd.f32 %v1796, %v1995
      %v2033 = vld [vmem:[%s246 + $0x10] sm:$0xc]
      %v2034 = vld [vmem:[%s246 + $0x14] sm:$0xf]
      %v2035 = vld [vmem:[%s246 + $0x18] sm:$0xf]
      %v2036 = vld [vmem:[%s246 + $0x1c] sm:$0xf]
      %v2037 = vld [vmem:[%s246 + $0x20] sm:$0xf]
      %v2038 = vld [vmem:[%s246 + $0x24] sm:$0xf]
      %v2039 = vld [vmem:[%s246 + $0x28] sm:$0xf]
      %v2040 = vld [vmem:[%s246 + $0x2c] sm:$0xf]
      %v2041 = vld [vmem:[%s246 + $0x30] sm:$0xf]
      %v2042 = vld [vmem:[%s246 + $0x34] sm:$0xf]
      %v2043 = vld [vmem:[%s246 + $0x38] sm:$0xf]
      %v2044 = vld [vmem:[%s246 + $0x3c] sm:$0xf]
      %v2045 = vld [vmem:[%s246 + $0x40] sm:$0xf]
      %v2046 = vld [vmem:[%s246 + $0x44] sm:$0xf]
      %v2047 = vld [vmem:[%s246 + $0x48] sm:$0xf]
      %v2048 = vld [vmem:[%s246 + $0x4c] sm:$0xf]
      %v2049 = vld [vmem:[%s246 + $0x50] sm:$0xf]
      %v2050 = vld [vmem:[%s246 + $0x54] sm:$0xf]
      %v2051 = vld [vmem:[%s246 + $0x58] sm:$0xf]
      %v2052 = vld [vmem:[%s246 + $0x5c] sm:$0xf]
      %v2053 = vld [vmem:[%s246 + $0x60] sm:$0xf]
      %v2054 = vld [vmem:[%s246 + $0x64] sm:$0xf]
      %v2055 = vld [vmem:[%s246 + $0x68] sm:$0xf]
      %v2056 = vld [vmem:[%s246 + $0x6c] sm:$0xf]
      %v2057 = vld [vmem:[%s246 + $0x70] sm:$0xf]
      %v2058 = vld [vmem:[%s246 + $0x74] sm:$0xf]
      %v2059 = vld [vmem:[%s246 + $0x78] sm:$0xf]
      %v2060 = vld [vmem:[%s246 + $0x7c] sm:$0xf]
      %v2061 = vld [vmem:[%s246 + $0x80] sm:$0xf]
      %v2062 = vld [vmem:[%s246 + $0x84] sm:$0xf]
      %v2063 = vld [vmem:[%s246 + $0x88] sm:$0xf]
      %v2064 = vld [vmem:[%s246 + $0x8c] sm:$0xf]
      %v2065 = vld [vmem:[%s246 + $0x90] sm:$0xf]
      %v2066 = vld [vmem:[%s246 + $0x94] sm:$0xf]
      %v2067 = vld [vmem:[%s246 + $0x98] sm:$0xf]
      %v2068 = vld [vmem:[%s246 + $0x9c] sm:$0xf]
      %v2069 = vld [vmem:[%s246 + $0xa0] sm:$0x3]
      %s2070 = scalar_lea.vmem %s2, 12
      %v2071 = vld [vmem:[%s2070] sm:$0x3]
      %v2109 = vunpack.c.l.b16 %v2033
      %v2110 = vunpack.c.l.b16 %v2034
      %v2111 = vunpack.c.l.b16 %v2035
      %v2112 = vunpack.c.l.b16 %v2036
      %v2113 = vunpack.c.l.b16 %v2037
      %v2114 = vunpack.c.l.b16 %v2038
      %v2115 = vunpack.c.l.b16 %v2039
      %v2116 = vunpack.c.l.b16 %v2040
      %v2117 = vunpack.c.l.b16 %v2041
      %v2118 = vunpack.c.l.b16 %v2042
      %v2119 = vunpack.c.l.b16 %v2043
      %v2120 = vunpack.c.l.b16 %v2044
      %v2121 = vunpack.c.l.b16 %v2045
      %v2122 = vunpack.c.l.b16 %v2046
      %v2123 = vunpack.c.l.b16 %v2047
      %v2124 = vunpack.c.l.b16 %v2048
      %v2125 = vunpack.c.l.b16 %v2049
      %v2126 = vunpack.c.l.b16 %v2050
      %v2127 = vunpack.c.l.b16 %v2051
      %v2128 = vunpack.c.l.b16 %v2052
      %v2129 = vunpack.c.l.b16 %v2053
      %v2130 = vunpack.c.l.b16 %v2054
      %v2131 = vunpack.c.l.b16 %v2055
      %v2132 = vunpack.c.l.b16 %v2056
      %v2133 = vunpack.c.l.b16 %v2057
      %v2134 = vunpack.c.l.b16 %v2058
      %v2135 = vunpack.c.l.b16 %v2059
      %v2136 = vunpack.c.l.b16 %v2060
      %v2137 = vunpack.c.l.b16 %v2061
      %v2138 = vunpack.c.l.b16 %v2062
      %v2139 = vunpack.c.l.b16 %v2063
      %v2140 = vunpack.c.l.b16 %v2064
      %v2141 = vunpack.c.l.b16 %v2065
      %v2142 = vunpack.c.l.b16 %v2066
      %v2143 = vunpack.c.l.b16 %v2067
      %v2144 = vunpack.c.l.b16 %v2068
      %v2145 = vunpack.c.l.b16 %v2069
      %v2146 = vpack.c.b16 %v2110, %v2109
      %v2147 = vpack.c.b16 %v2112, %v2111
      %v2148 = vpack.c.b16 %v2114, %v2113
      %v2149 = vpack.c.b16 %v2116, %v2115
      %v2150 = vpack.c.b16 %v2118, %v2117
      %v2151 = vpack.c.b16 %v2120, %v2119
      %v2152 = vpack.c.b16 %v2122, %v2121
      %v2153 = vpack.c.b16 %v2124, %v2123
      %v2154 = vpack.c.b16 %v2126, %v2125
      %v2155 = vpack.c.b16 %v2128, %v2127
      %v2156 = vpack.c.b16 %v2130, %v2129
      %v2157 = vpack.c.b16 %v2132, %v2131
      %v2158 = vpack.c.b16 %v2134, %v2133
      %v2159 = vpack.c.b16 %v2136, %v2135
      %v2160 = vpack.c.b16 %v2138, %v2137
      %v2161 = vpack.c.b16 %v2140, %v2139
      %v2162 = vpack.c.b16 %v2142, %v2141
      %v2163 = vpack.c.b16 %v2144, %v2143
      %v2164 = vpack.c.b16 %v2145, %v2145
      %v2165 = vrot.slane %v2146, 2
      %v2166 = vrot.slane %v2147, 2
      %v2167 = vsel %vm1803, %v2165, %v2166
      %v2168 = vrot.slane %v2148, 2
      %v2169 = vsel %vm1803, %v2166, %v2168
      %v2170 = vrot.slane %v2149, 2
      %v2171 = vsel %vm1803, %v2168, %v2170
      %v2172 = vrot.slane %v2150, 2
      %v2173 = vsel %vm1803, %v2170, %v2172
      %v2174 = vrot.slane %v2151, 2
      %v2175 = vsel %vm1803, %v2172, %v2174
      %v2176 = vrot.slane %v2152, 2
      %v2177 = vsel %vm1803, %v2174, %v2176
      %v2178 = vrot.slane %v2153, 2
      %v2179 = vsel %vm1803, %v2176, %v2178
      %v2180 = vrot.slane %v2154, 2
      %v2181 = vsel %vm1803, %v2178, %v2180
      %v2182 = vrot.slane %v2155, 2
      %v2183 = vsel %vm1803, %v2180, %v2182
      %v2184 = vrot.slane %v2156, 2
      %v2185 = vsel %vm1803, %v2182, %v2184
      %v2186 = vrot.slane %v2157, 2
      %v2187 = vsel %vm1803, %v2184, %v2186
      %v2188 = vrot.slane %v2158, 2
      %v2189 = vsel %vm1803, %v2186, %v2188
      %v2190 = vrot.slane %v2159, 2
      %v2191 = vsel %vm1803, %v2188, %v2190
      %v2192 = vrot.slane %v2160, 2
      %v2193 = vsel %vm1803, %v2190, %v2192
      %v2194 = vrot.slane %v2161, 2
      %v2195 = vsel %vm1803, %v2192, %v2194
      %v2196 = vrot.slane %v2162, 2
      %v2197 = vsel %vm1803, %v2194, %v2196
      %v2198 = vrot.slane %v2163, 2
      %v2199 = vsel %vm1803, %v2196, %v2198
      %v2200 = vrot.slane %v2164, 2
      %v2201 = vsel %vm1803, %v2198, %v2200
      %v2203 = vsel %vm535, %v2167, 0
      %v2206 = vsel %vm535, %v2169, 0
      %v2209 = vsel %vm535, %v2171, 0
      %v2212 = vsel %vm535, %v2173, 0
      %v2215 = vsel %vm535, %v2175, 0
      %v2218 = vsel %vm535, %v2177, 0
      %v2221 = vsel %vm535, %v2179, 0
      %v2224 = vsel %vm535, %v2181, 0
      %v2227 = vsel %vm535, %v2183, 0
      %v2230 = vsel %vm535, %v2185, 0
      %v2233 = vsel %vm535, %v2187, 0
      %v2236 = vsel %vm535, %v2189, 0
      %v2239 = vsel %vm535, %v2191, 0
      %v2242 = vsel %vm535, %v2193, 0
      %v2245 = vsel %vm535, %v2195, 0
      %v2248 = vsel %vm535, %v2197, 0
      %v2251 = vsel %vm535, %v2199, 0
      %v2254 = vsel %vm535, %v2201, 0
      %v2257 = vsel %vm590, %v2071, 0
      %2259 = vmatpush.bf16.msra.mxu0 0
      %2260 = vmatpush.bf16.msra.mxu0 0
      %2261 = vmatpush.bf16.msra.mxu0 0
      %2262 = vmatpush.bf16.msra.mxu0 0
      %2263 = vmatpush.bf16.msra.mxu0 0
      %2264 = vmatpush.bf16.msra.mxu0 0
      %2265 = vmatpush.bf16.msra.mxu0 0
      %2266 = vmatpush.bf16.msra.mxu0 %v2257
      %2267 = vmatmul.bf16.gmra.mxu0 %v2203
      %v2268 = vpop.f32.mrf.mxu0
      %v2269 = vadd.f32 0.0, %v2268
      %v2270 = vpop.f32.mrf.mxu0
      %v2271 = vadd.f32 0.0, %v2270
      %2272 = vmatmul.bf16.gmra.mxu0 %v2206
      %v2273 = vpop.f32.mrf.mxu0
      %v2274 = vadd.f32 0.0, %v2273
      %v2275 = vpop.f32.mrf.mxu0
      %v2276 = vadd.f32 0.0, %v2275
      %2277 = vmatmul.bf16.gmra.mxu0 %v2209
      %v2278 = vpop.f32.mrf.mxu0
      %v2279 = vadd.f32 0.0, %v2278
      %v2280 = vpop.f32.mrf.mxu0
      %v2281 = vadd.f32 0.0, %v2280
      %2282 = vmatmul.bf16.gmra.mxu0 %v2212
      %v2283 = vpop.f32.mrf.mxu0
      %v2284 = vadd.f32 0.0, %v2283
      %v2285 = vpop.f32.mrf.mxu0
      %v2286 = vadd.f32 0.0, %v2285
      %2287 = vmatmul.bf16.gmra.mxu0 %v2215
      %v2288 = vpop.f32.mrf.mxu0
      %v2289 = vadd.f32 0.0, %v2288
      %v2290 = vpop.f32.mrf.mxu0
      %v2291 = vadd.f32 0.0, %v2290
      %2292 = vmatmul.bf16.gmra.mxu0 %v2218
      %v2293 = vpop.f32.mrf.mxu0
      %v2294 = vadd.f32 0.0, %v2293
      %v2295 = vpop.f32.mrf.mxu0
      %v2296 = vadd.f32 0.0, %v2295
      %2297 = vmatmul.bf16.gmra.mxu0 %v2221
      %v2298 = vpop.f32.mrf.mxu0
      %v2299 = vadd.f32 0.0, %v2298
      %v2300 = vpop.f32.mrf.mxu0
      %v2301 = vadd.f32 0.0, %v2300
      %2302 = vmatmul.bf16.gmra.mxu0 %v2224
      %v2303 = vpop.f32.mrf.mxu0
      %v2304 = vadd.f32 0.0, %v2303
      %v2305 = vpop.f32.mrf.mxu0
      %v2306 = vadd.f32 0.0, %v2305
      %2307 = vmatmul.bf16.gmra.mxu0 %v2227
      %v2308 = vpop.f32.mrf.mxu0
      %v2309 = vadd.f32 0.0, %v2308
      %v2310 = vpop.f32.mrf.mxu0
      %v2311 = vadd.f32 0.0, %v2310
      %2312 = vmatmul.bf16.gmra.mxu0 %v2230
      %v2313 = vpop.f32.mrf.mxu0
      %v2314 = vadd.f32 0.0, %v2313
      %v2315 = vpop.f32.mrf.mxu0
      %v2316 = vadd.f32 0.0, %v2315
      %2317 = vmatmul.bf16.gmra.mxu0 %v2233
      %v2318 = vpop.f32.mrf.mxu0
      %v2319 = vadd.f32 0.0, %v2318
      %v2320 = vpop.f32.mrf.mxu0
      %v2321 = vadd.f32 0.0, %v2320
      %2322 = vmatmul.bf16.gmra.mxu0 %v2236
      %v2323 = vpop.f32.mrf.mxu0
      %v2324 = vadd.f32 0.0, %v2323
      %v2325 = vpop.f32.mrf.mxu0
      %v2326 = vadd.f32 0.0, %v2325
      %2327 = vmatmul.bf16.gmra.mxu0 %v2239
      %v2328 = vpop.f32.mrf.mxu0
      %v2329 = vadd.f32 0.0, %v2328
      %v2330 = vpop.f32.mrf.mxu0
      %v2331 = vadd.f32 0.0, %v2330
      %2332 = vmatmul.bf16.gmra.mxu0 %v2242
      %v2333 = vpop.f32.mrf.mxu0
      %v2334 = vadd.f32 0.0, %v2333
      %v2335 = vpop.f32.mrf.mxu0
      %v2336 = vadd.f32 0.0, %v2335
      %2337 = vmatmul.bf16.gmra.mxu0 %v2245
      %v2338 = vpop.f32.mrf.mxu0
      %v2339 = vadd.f32 0.0, %v2338
      %v2340 = vpop.f32.mrf.mxu0
      %v2341 = vadd.f32 0.0, %v2340
      %2342 = vmatmul.bf16.gmra.mxu0 %v2248
      %v2343 = vpop.f32.mrf.mxu0
      %v2344 = vadd.f32 0.0, %v2343
      %v2345 = vpop.f32.mrf.mxu0
      %v2346 = vadd.f32 0.0, %v2345
      %2347 = vmatmul.bf16.gmra.mxu0 %v2251
      %v2348 = vpop.f32.mrf.mxu0
      %v2349 = vadd.f32 0.0, %v2348
      %v2350 = vpop.f32.mrf.mxu0
      %v2351 = vadd.f32 0.0, %v2350
      %2352 = vmatmul.bf16.gmra.mxu0 %v2254
      %v2353 = vpop.f32.mrf.mxu0
      %v2354 = vadd.f32 0.0, %v2353
      %v2355 = vpop.f32.mrf.mxu0
      %v2356 = vadd.f32 0.0, %v2355
      %2357 = vdwg.mxu0
      %v2358 = vadd.f32 %v1997, %v2269
      %v2359 = vadd.f32 %v1998, %v2271
      %v2360 = vadd.f32 %v1999, %v2274
      %v2361 = vadd.f32 %v2000, %v2276
      %v2362 = vadd.f32 %v2001, %v2279
      %v2363 = vadd.f32 %v2002, %v2281
      %v2364 = vadd.f32 %v2003, %v2284
      %v2365 = vadd.f32 %v2004, %v2286
      %v2366 = vadd.f32 %v2005, %v2289
      %v2367 = vadd.f32 %v2006, %v2291
      %v2368 = vadd.f32 %v2007, %v2294
      %v2369 = vadd.f32 %v2008, %v2296
      %v2370 = vadd.f32 %v2009, %v2299
      %v2371 = vadd.f32 %v2010, %v2301
      %v2372 = vadd.f32 %v2011, %v2304
      %v2373 = vadd.f32 %v2012, %v2306
      %v2374 = vadd.f32 %v2013, %v2309
      %v2375 = vadd.f32 %v2014, %v2311
      %v2376 = vadd.f32 %v2015, %v2314
      %v2377 = vadd.f32 %v2016, %v2316
      %v2378 = vadd.f32 %v2017, %v2319
      %v2379 = vadd.f32 %v2018, %v2321
      %v2380 = vadd.f32 %v2019, %v2324
      %v2381 = vadd.f32 %v2020, %v2326
      %v2382 = vadd.f32 %v2021, %v2329
      %v2383 = vadd.f32 %v2022, %v2331
      %v2384 = vadd.f32 %v2023, %v2334
      %v2385 = vadd.f32 %v2024, %v2336
      %v2386 = vadd.f32 %v2025, %v2339
      %v2387 = vadd.f32 %v2026, %v2341
      %v2388 = vadd.f32 %v2027, %v2344
      %v2389 = vadd.f32 %v2028, %v2346
      %v2390 = vadd.f32 %v2029, %v2349
      %v2391 = vadd.f32 %v2030, %v2351
      %v2392 = vadd.f32 %v2031, %v2354
      %v2393 = vadd.f32 %v2032, %v2356
      %v2394 = vld [vmem:[%s246 + $0xa0] sm:$0x7]
      %s2395 = scalar_lea.vmem %s2, 14
      %v2396 = vld [vmem:[%s2395] sm:$0x3]
      %v2398 = vunpack.c.l.b16 %v2394
      %v2399 = vpack.c.b16 %v2398, %v2398
      %vm2400 = vsmask.f32 5376
      %v2402 = vshrl.u32 %v2146, 16
      %v2404 = vrot.slane %v2402, 2
      %v2405 = vshll.u32 %v2146, 16
      %v2407 = vrot.slane %v2405, 3
      %v2408 = vor.u32 %v2404, %v2407
      %v2410 = vshrl.u32 %v2147, 16
      %v2412 = vrot.slane %v2410, 2
      %v2413 = vshll.u32 %v2147, 16
      %v2415 = vrot.slane %v2413, 3
      %v2416 = vor.u32 %v2412, %v2415
      %v2417 = vsel %vm2400, %v2408, %v2416
      %v2419 = vshrl.u32 %v2148, 16
      %v2421 = vrot.slane %v2419, 2
      %v2422 = vshll.u32 %v2148, 16
      %v2424 = vrot.slane %v2422, 3
      %v2425 = vor.u32 %v2421, %v2424
      %v2426 = vsel %vm2400, %v2416, %v2425
      %v2428 = vshrl.u32 %v2149, 16
      %v2430 = vrot.slane %v2428, 2
      %v2431 = vshll.u32 %v2149, 16
      %v2433 = vrot.slane %v2431, 3
      %v2434 = vor.u32 %v2430, %v2433
      %v2435 = vsel %vm2400, %v2425, %v2434
      %v2437 = vshrl.u32 %v2150, 16
      %v2439 = vrot.slane %v2437, 2
      %v2440 = vshll.u32 %v2150, 16
      %v2442 = vrot.slane %v2440, 3
      %v2443 = vor.u32 %v2439, %v2442
      %v2444 = vsel %vm2400, %v2434, %v2443
      %v2446 = vshrl.u32 %v2151, 16
      %v2448 = vrot.slane %v2446, 2
      %v2449 = vshll.u32 %v2151, 16
      %v2451 = vrot.slane %v2449, 3
      %v2452 = vor.u32 %v2448, %v2451
      %v2453 = vsel %vm2400, %v2443, %v2452
      %v2455 = vshrl.u32 %v2152, 16
      %v2457 = vrot.slane %v2455, 2
      %v2458 = vshll.u32 %v2152, 16
      %v2460 = vrot.slane %v2458, 3
      %v2461 = vor.u32 %v2457, %v2460
      %v2462 = vsel %vm2400, %v2452, %v2461
      %v2464 = vshrl.u32 %v2153, 16
      %v2466 = vrot.slane %v2464, 2
      %v2467 = vshll.u32 %v2153, 16
      %v2469 = vrot.slane %v2467, 3
      %v2470 = vor.u32 %v2466, %v2469
      %v2471 = vsel %vm2400, %v2461, %v2470
      %v2473 = vshrl.u32 %v2154, 16
      %v2475 = vrot.slane %v2473, 2
      %v2476 = vshll.u32 %v2154, 16
      %v2478 = vrot.slane %v2476, 3
      %v2479 = vor.u32 %v2475, %v2478
      %v2480 = vsel %vm2400, %v2470, %v2479
      %v2482 = vshrl.u32 %v2155, 16
      %v2484 = vrot.slane %v2482, 2
      %v2485 = vshll.u32 %v2155, 16
      %v2487 = vrot.slane %v2485, 3
      %v2488 = vor.u32 %v2484, %v2487
      %v2489 = vsel %vm2400, %v2479, %v2488
      %v2491 = vshrl.u32 %v2156, 16
      %v2493 = vrot.slane %v2491, 2
      %v2494 = vshll.u32 %v2156, 16
      %v2496 = vrot.slane %v2494, 3
      %v2497 = vor.u32 %v2493, %v2496
      %v2498 = vsel %vm2400, %v2488, %v2497
      %v2500 = vshrl.u32 %v2157, 16
      %v2502 = vrot.slane %v2500, 2
      %v2503 = vshll.u32 %v2157, 16
      %v2505 = vrot.slane %v2503, 3
      %v2506 = vor.u32 %v2502, %v2505
      %v2507 = vsel %vm2400, %v2497, %v2506
      %v2509 = vshrl.u32 %v2158, 16
      %v2511 = vrot.slane %v2509, 2
      %v2512 = vshll.u32 %v2158, 16
      %v2514 = vrot.slane %v2512, 3
      %v2515 = vor.u32 %v2511, %v2514
      %v2516 = vsel %vm2400, %v2506, %v2515
      %v2518 = vshrl.u32 %v2159, 16
      %v2520 = vrot.slane %v2518, 2
      %v2521 = vshll.u32 %v2159, 16
      %v2523 = vrot.slane %v2521, 3
      %v2524 = vor.u32 %v2520, %v2523
      %v2525 = vsel %vm2400, %v2515, %v2524
      %v2527 = vshrl.u32 %v2160, 16
      %v2529 = vrot.slane %v2527, 2
      %v2530 = vshll.u32 %v2160, 16
      %v2532 = vrot.slane %v2530, 3
      %v2533 = vor.u32 %v2529, %v2532
      %v2534 = vsel %vm2400, %v2524, %v2533
      %v2536 = vshrl.u32 %v2161, 16
      %v2538 = vrot.slane %v2536, 2
      %v2539 = vshll.u32 %v2161, 16
      %v2541 = vrot.slane %v2539, 3
      %v2542 = vor.u32 %v2538, %v2541
      %v2543 = vsel %vm2400, %v2533, %v2542
      %v2545 = vshrl.u32 %v2162, 16
      %v2547 = vrot.slane %v2545, 2
      %v2548 = vshll.u32 %v2162, 16
      %v2550 = vrot.slane %v2548, 3
      %v2551 = vor.u32 %v2547, %v2550
      %v2552 = vsel %vm2400, %v2542, %v2551
      %v2554 = vshrl.u32 %v2163, 16
      %v2556 = vrot.slane %v2554, 2
      %v2557 = vshll.u32 %v2163, 16
      %v2559 = vrot.slane %v2557, 3
      %v2560 = vor.u32 %v2556, %v2559
      %v2561 = vsel %vm2400, %v2551, %v2560
      %v2563 = vshrl.u32 %v2399, 16
      %v2565 = vrot.slane %v2563, 2
      %v2566 = vshll.u32 %v2399, 16
      %v2568 = vrot.slane %v2566, 3
      %v2569 = vor.u32 %v2565, %v2568
      %v2570 = vsel %vm2400, %v2560, %v2569
      %v2572 = vsel %vm535, %v2417, 0
      %v2575 = vsel %vm535, %v2426, 0
      %v2578 = vsel %vm535, %v2435, 0
      %v2581 = vsel %vm535, %v2444, 0
      %v2584 = vsel %vm535, %v2453, 0
      %v2587 = vsel %vm535, %v2462, 0
      %v2590 = vsel %vm535, %v2471, 0
      %v2593 = vsel %vm535, %v2480, 0
      %v2596 = vsel %vm535, %v2489, 0
      %v2599 = vsel %vm535, %v2498, 0
      %v2602 = vsel %vm535, %v2507, 0
      %v2605 = vsel %vm535, %v2516, 0
      %v2608 = vsel %vm535, %v2525, 0
      %v2611 = vsel %vm535, %v2534, 0
      %v2614 = vsel %vm535, %v2543, 0
      %v2617 = vsel %vm535, %v2552, 0
      %v2620 = vsel %vm535, %v2561, 0
      %v2623 = vsel %vm535, %v2570, 0
      %v2626 = vsel %vm590, %v2396, 0
      %2628 = vmatpush.bf16.msra.mxu0 0
      %2629 = vmatpush.bf16.msra.mxu0 0
      %2630 = vmatpush.bf16.msra.mxu0 0
      %2631 = vmatpush.bf16.msra.mxu0 0
      %2632 = vmatpush.bf16.msra.mxu0 0
      %2633 = vmatpush.bf16.msra.mxu0 0
      %2634 = vmatpush.bf16.msra.mxu0 0
      %2635 = vmatpush.bf16.msra.mxu0 %v2626
      %2636 = vmatmul.bf16.gmra.mxu0 %v2572
      %v2637 = vpop.f32.mrf.mxu0
      %v2638 = vadd.f32 0.0, %v2637
      %v2639 = vpop.f32.mrf.mxu0
      %v2640 = vadd.f32 0.0, %v2639
      %2641 = vmatmul.bf16.gmra.mxu0 %v2575
      %v2642 = vpop.f32.mrf.mxu0
      %v2643 = vadd.f32 0.0, %v2642
      %v2644 = vpop.f32.mrf.mxu0
      %v2645 = vadd.f32 0.0, %v2644
      %2646 = vmatmul.bf16.gmra.mxu0 %v2578
      %v2647 = vpop.f32.mrf.mxu0
      %v2648 = vadd.f32 0.0, %v2647
      %v2649 = vpop.f32.mrf.mxu0
      %v2650 = vadd.f32 0.0, %v2649
      %2651 = vmatmul.bf16.gmra.mxu0 %v2581
      %v2652 = vpop.f32.mrf.mxu0
      %v2653 = vadd.f32 0.0, %v2652
      %v2654 = vpop.f32.mrf.mxu0
      %v2655 = vadd.f32 0.0, %v2654
      %2656 = vmatmul.bf16.gmra.mxu0 %v2584
      %v2657 = vpop.f32.mrf.mxu0
      %v2658 = vadd.f32 0.0, %v2657
      %v2659 = vpop.f32.mrf.mxu0
      %v2660 = vadd.f32 0.0, %v2659
      %2661 = vmatmul.bf16.gmra.mxu0 %v2587
      %v2662 = vpop.f32.mrf.mxu0
      %v2663 = vadd.f32 0.0, %v2662
      %v2664 = vpop.f32.mrf.mxu0
      %v2665 = vadd.f32 0.0, %v2664
      %2666 = vmatmul.bf16.gmra.mxu0 %v2590
      %v2667 = vpop.f32.mrf.mxu0
      %v2668 = vadd.f32 0.0, %v2667
      %v2669 = vpop.f32.mrf.mxu0
      %v2670 = vadd.f32 0.0, %v2669
      %2671 = vmatmul.bf16.gmra.mxu0 %v2593
      %v2672 = vpop.f32.mrf.mxu0
      %v2673 = vadd.f32 0.0, %v2672
      %v2674 = vpop.f32.mrf.mxu0
      %v2675 = vadd.f32 0.0, %v2674
      %2676 = vmatmul.bf16.gmra.mxu0 %v2596
      %v2677 = vpop.f32.mrf.mxu0
      %v2678 = vadd.f32 0.0, %v2677
      %v2679 = vpop.f32.mrf.mxu0
      %v2680 = vadd.f32 0.0, %v2679
      %2681 = vmatmul.bf16.gmra.mxu0 %v2599
      %v2682 = vpop.f32.mrf.mxu0
      %v2683 = vadd.f32 0.0, %v2682
      %v2684 = vpop.f32.mrf.mxu0
      %v2685 = vadd.f32 0.0, %v2684
      %2686 = vmatmul.bf16.gmra.mxu0 %v2602
      %v2687 = vpop.f32.mrf.mxu0
      %v2688 = vadd.f32 0.0, %v2687
      %v2689 = vpop.f32.mrf.mxu0
      %v2690 = vadd.f32 0.0, %v2689
      %2691 = vmatmul.bf16.gmra.mxu0 %v2605
      %v2692 = vpop.f32.mrf.mxu0
      %v2693 = vadd.f32 0.0, %v2692
      %v2694 = vpop.f32.mrf.mxu0
      %v2695 = vadd.f32 0.0, %v2694
      %2696 = vmatmul.bf16.gmra.mxu0 %v2608
      %v2697 = vpop.f32.mrf.mxu0
      %v2698 = vadd.f32 0.0, %v2697
      %v2699 = vpop.f32.mrf.mxu0
      %v2700 = vadd.f32 0.0, %v2699
      %2701 = vmatmul.bf16.gmra.mxu0 %v2611
      %v2702 = vpop.f32.mrf.mxu0
      %v2703 = vadd.f32 0.0, %v2702
      %v2704 = vpop.f32.mrf.mxu0
      %v2705 = vadd.f32 0.0, %v2704
      %2706 = vmatmul.bf16.gmra.mxu0 %v2614
      %v2707 = vpop.f32.mrf.mxu0
      %v2708 = vadd.f32 0.0, %v2707
      %v2709 = vpop.f32.mrf.mxu0
      %v2710 = vadd.f32 0.0, %v2709
      %2711 = vmatmul.bf16.gmra.mxu0 %v2617
      %v2712 = vpop.f32.mrf.mxu0
      %v2713 = vadd.f32 0.0, %v2712
      %v2714 = vpop.f32.mrf.mxu0
      %v2715 = vadd.f32 0.0, %v2714
      %2716 = vmatmul.bf16.gmra.mxu0 %v2620
      %v2717 = vpop.f32.mrf.mxu0
      %v2718 = vadd.f32 0.0, %v2717
      %v2719 = vpop.f32.mrf.mxu0
      %v2720 = vadd.f32 0.0, %v2719
      %2721 = vmatmul.bf16.gmra.mxu0 %v2623
      %v2722 = vpop.f32.mrf.mxu0
      %v2723 = vadd.f32 0.0, %v2722
      %v2724 = vpop.f32.mrf.mxu0
      %v2725 = vadd.f32 0.0, %v2724
      %2726 = vdwg.mxu0
      %v2727 = vadd.f32 %v2358, %v2638
      %v2728 = vadd.f32 %v2359, %v2640
      %v2729 = vadd.f32 %v2360, %v2643
      %v2730 = vadd.f32 %v2361, %v2645
      %v2731 = vadd.f32 %v2362, %v2648
      %v2732 = vadd.f32 %v2363, %v2650
      %v2733 = vadd.f32 %v2364, %v2653
      %v2734 = vadd.f32 %v2365, %v2655
      %v2735 = vadd.f32 %v2366, %v2658
      %v2736 = vadd.f32 %v2367, %v2660
      %v2737 = vadd.f32 %v2368, %v2663
      %v2738 = vadd.f32 %v2369, %v2665
      %v2739 = vadd.f32 %v2370, %v2668
      %v2740 = vadd.f32 %v2371, %v2670
      %v2741 = vadd.f32 %v2372, %v2673
      %v2742 = vadd.f32 %v2373, %v2675
      %v2743 = vadd.f32 %v2374, %v2678
      %v2744 = vadd.f32 %v2375, %v2680
      %v2745 = vadd.f32 %v2376, %v2683
      %v2746 = vadd.f32 %v2377, %v2685
      %v2747 = vadd.f32 %v2378, %v2688
      %v2748 = vadd.f32 %v2379, %v2690
      %v2749 = vadd.f32 %v2380, %v2693
      %v2750 = vadd.f32 %v2381, %v2695
      %v2751 = vadd.f32 %v2382, %v2698
      %v2752 = vadd.f32 %v2383, %v2700
      %v2753 = vadd.f32 %v2384, %v2703
      %v2754 = vadd.f32 %v2385, %v2705
      %v2755 = vadd.f32 %v2386, %v2708
      %v2756 = vadd.f32 %v2387, %v2710
      %v2757 = vadd.f32 %v2388, %v2713
      %v2758 = vadd.f32 %v2389, %v2715
      %v2759 = vadd.f32 %v2390, %v2718
      %v2760 = vadd.f32 %v2391, %v2720
      %v2761 = vadd.f32 %v2392, %v2723
      %v2762 = vadd.f32 %v2393, %v2725
      %v2763 = vld [vmem:[%s246 + $0x10] sm:$0x8]
      %s2764 = scalar_lea.vmem %s2, 16
      %v2765 = vld [vmem:[%s2764] sm:$0x3]
      %v2767 = vunpack.c.l.b16 %v2763
      %v2768 = vpack.c.b16 %v2110, %v2767
      %vm2769 = vcmask 1044480
      %v2770 = vrot.slane %v2768, 3
      %v2771 = vrot.slane %v2147, 3
      %v2772 = vsel %vm2769, %v2770, %v2771
      %v2773 = vrot.slane %v2148, 3
      %v2774 = vsel %vm2769, %v2771, %v2773
      %v2775 = vrot.slane %v2149, 3
      %v2776 = vsel %vm2769, %v2773, %v2775
      %v2777 = vrot.slane %v2150, 3
      %v2778 = vsel %vm2769, %v2775, %v2777
      %v2779 = vrot.slane %v2151, 3
      %v2780 = vsel %vm2769, %v2777, %v2779
      %v2781 = vrot.slane %v2152, 3
      %v2782 = vsel %vm2769, %v2779, %v2781
      %v2783 = vrot.slane %v2153, 3
      %v2784 = vsel %vm2769, %v2781, %v2783
      %v2785 = vrot.slane %v2154, 3
      %v2786 = vsel %vm2769, %v2783, %v2785
      %v2787 = vrot.slane %v2155, 3
      %v2788 = vsel %vm2769, %v2785, %v2787
      %v2789 = vrot.slane %v2156, 3
      %v2790 = vsel %vm2769, %v2787, %v2789
      %v2791 = vrot.slane %v2157, 3
      %v2792 = vsel %vm2769, %v2789, %v2791
      %v2793 = vrot.slane %v2158, 3
      %v2794 = vsel %vm2769, %v2791, %v2793
      %v2795 = vrot.slane %v2159, 3
      %v2796 = vsel %vm2769, %v2793, %v2795
      %v2797 = vrot.slane %v2160, 3
      %v2798 = vsel %vm2769, %v2795, %v2797
      %v2799 = vrot.slane %v2161, 3
      %v2800 = vsel %vm2769, %v2797, %v2799
      %v2801 = vrot.slane %v2162, 3
      %v2802 = vsel %vm2769, %v2799, %v2801
      %v2803 = vrot.slane %v2163, 3
      %v2804 = vsel %vm2769, %v2801, %v2803
      %v2805 = vrot.slane %v2399, 3
      %v2806 = vsel %vm2769, %v2803, %v2805
      %v2808 = vsel %vm535, %v2772, 0
      %v2811 = vsel %vm535, %v2774, 0
      %v2814 = vsel %vm535, %v2776, 0
      %v2817 = vsel %vm535, %v2778, 0
      %v2820 = vsel %vm535, %v2780, 0
      %v2823 = vsel %vm535, %v2782, 0
      %v2826 = vsel %vm535, %v2784, 0
      %v2829 = vsel %vm535, %v2786, 0
      %v2832 = vsel %vm535, %v2788, 0
      %v2835 = vsel %vm535, %v2790, 0
      %v2838 = vsel %vm535, %v2792, 0
      %v2841 = vsel %vm535, %v2794, 0
      %v2844 = vsel %vm535, %v2796, 0
      %v2847 = vsel %vm535, %v2798, 0
      %v2850 = vsel %vm535, %v2800, 0
      %v2853 = vsel %vm535, %v2802, 0
      %v2856 = vsel %vm535, %v2804, 0
      %v2859 = vsel %vm535, %v2806, 0
      %v2862 = vsel %vm590, %v2765, 0
      %2864 = vmatpush.bf16.msra.mxu0 0
      %2865 = vmatpush.bf16.msra.mxu0 0
      %2866 = vmatpush.bf16.msra.mxu0 0
      %2867 = vmatpush.bf16.msra.mxu0 0
      %2868 = vmatpush.bf16.msra.mxu0 0
      %2869 = vmatpush.bf16.msra.mxu0 0
      %2870 = vmatpush.bf16.msra.mxu0 0
      %2871 = vmatpush.bf16.msra.mxu0 %v2862
      %2872 = vmatmul.bf16.gmra.mxu0 %v2808
      %v2873 = vpop.f32.mrf.mxu0
      %v2874 = vadd.f32 0.0, %v2873
      %v2875 = vpop.f32.mrf.mxu0
      %v2876 = vadd.f32 0.0, %v2875
      %2877 = vmatmul.bf16.gmra.mxu0 %v2811
      %v2878 = vpop.f32.mrf.mxu0
      %v2879 = vadd.f32 0.0, %v2878
      %v2880 = vpop.f32.mrf.mxu0
      %v2881 = vadd.f32 0.0, %v2880
      %2882 = vmatmul.bf16.gmra.mxu0 %v2814
      %v2883 = vpop.f32.mrf.mxu0
      %v2884 = vadd.f32 0.0, %v2883
      %v2885 = vpop.f32.mrf.mxu0
      %v2886 = vadd.f32 0.0, %v2885
      %2887 = vmatmul.bf16.gmra.mxu0 %v2817
      %v2888 = vpop.f32.mrf.mxu0
      %v2889 = vadd.f32 0.0, %v2888
      %v2890 = vpop.f32.mrf.mxu0
      %v2891 = vadd.f32 0.0, %v2890
      %2892 = vmatmul.bf16.gmra.mxu0 %v2820
      %v2893 = vpop.f32.mrf.mxu0
      %v2894 = vadd.f32 0.0, %v2893
      %v2895 = vpop.f32.mrf.mxu0
      %v2896 = vadd.f32 0.0, %v2895
      %2897 = vmatmul.bf16.gmra.mxu0 %v2823
      %v2898 = vpop.f32.mrf.mxu0
      %v2899 = vadd.f32 0.0, %v2898
      %v2900 = vpop.f32.mrf.mxu0
      %v2901 = vadd.f32 0.0, %v2900
      %2902 = vmatmul.bf16.gmra.mxu0 %v2826
      %v2903 = vpop.f32.mrf.mxu0
      %v2904 = vadd.f32 0.0, %v2903
      %v2905 = vpop.f32.mrf.mxu0
      %v2906 = vadd.f32 0.0, %v2905
      %2907 = vmatmul.bf16.gmra.mxu0 %v2829
      %v2908 = vpop.f32.mrf.mxu0
      %v2909 = vadd.f32 0.0, %v2908
      %v2910 = vpop.f32.mrf.mxu0
      %v2911 = vadd.f32 0.0, %v2910
      %2912 = vmatmul.bf16.gmra.mxu0 %v2832
      %v2913 = vpop.f32.mrf.mxu0
      %v2914 = vadd.f32 0.0, %v2913
      %v2915 = vpop.f32.mrf.mxu0
      %v2916 = vadd.f32 0.0, %v2915
      %2917 = vmatmul.bf16.gmra.mxu0 %v2835
      %v2918 = vpop.f32.mrf.mxu0
      %v2919 = vadd.f32 0.0, %v2918
      %v2920 = vpop.f32.mrf.mxu0
      %v2921 = vadd.f32 0.0, %v2920
      %2922 = vmatmul.bf16.gmra.mxu0 %v2838
      %v2923 = vpop.f32.mrf.mxu0
      %v2924 = vadd.f32 0.0, %v2923
      %v2925 = vpop.f32.mrf.mxu0
      %v2926 = vadd.f32 0.0, %v2925
      %2927 = vmatmul.bf16.gmra.mxu0 %v2841
      %v2928 = vpop.f32.mrf.mxu0
      %v2929 = vadd.f32 0.0, %v2928
      %v2930 = vpop.f32.mrf.mxu0
      %v2931 = vadd.f32 0.0, %v2930
      %2932 = vmatmul.bf16.gmra.mxu0 %v2844
      %v2933 = vpop.f32.mrf.mxu0
      %v2934 = vadd.f32 0.0, %v2933
      %v2935 = vpop.f32.mrf.mxu0
      %v2936 = vadd.f32 0.0, %v2935
      %2937 = vmatmul.bf16.gmra.mxu0 %v2847
      %v2938 = vpop.f32.mrf.mxu0
      %v2939 = vadd.f32 0.0, %v2938
      %v2940 = vpop.f32.mrf.mxu0
      %v2941 = vadd.f32 0.0, %v2940
      %2942 = vmatmul.bf16.gmra.mxu0 %v2850
      %v2943 = vpop.f32.mrf.mxu0
      %v2944 = vadd.f32 0.0, %v2943
      %v2945 = vpop.f32.mrf.mxu0
      %v2946 = vadd.f32 0.0, %v2945
      %2947 = vmatmul.bf16.gmra.mxu0 %v2853
      %v2948 = vpop.f32.mrf.mxu0
      %v2949 = vadd.f32 0.0, %v2948
      %v2950 = vpop.f32.mrf.mxu0
      %v2951 = vadd.f32 0.0, %v2950
      %2952 = vmatmul.bf16.gmra.mxu0 %v2856
      %v2953 = vpop.f32.mrf.mxu0
      %v2954 = vadd.f32 0.0, %v2953
      %v2955 = vpop.f32.mrf.mxu0
      %v2956 = vadd.f32 0.0, %v2955
      %2957 = vmatmul.bf16.gmra.mxu0 %v2859
      %v2958 = vpop.f32.mrf.mxu0
      %v2959 = vadd.f32 0.0, %v2958
      %v2960 = vpop.f32.mrf.mxu0
      %v2961 = vadd.f32 0.0, %v2960
      %2962 = vdwg.mxu0
      %v2963 = vadd.f32 %v2727, %v2874
      %v2964 = vadd.f32 %v2728, %v2876
      %v2965 = vadd.f32 %v2729, %v2879
      %v2966 = vadd.f32 %v2730, %v2881
      %v2967 = vadd.f32 %v2731, %v2884
      %v2968 = vadd.f32 %v2732, %v2886
      %v2969 = vadd.f32 %v2733, %v2889
      %v2970 = vadd.f32 %v2734, %v2891
      %v2971 = vadd.f32 %v2735, %v2894
      %v2972 = vadd.f32 %v2736, %v2896
      %v2973 = vadd.f32 %v2737, %v2899
      %v2974 = vadd.f32 %v2738, %v2901
      %v2975 = vadd.f32 %v2739, %v2904
      %v2976 = vadd.f32 %v2740, %v2906
      %v2977 = vadd.f32 %v2741, %v2909
      %v2978 = vadd.f32 %v2742, %v2911
      %v2979 = vadd.f32 %v2743, %v2914
      %v2980 = vadd.f32 %v2744, %v2916
      %v2981 = vadd.f32 %v2745, %v2919
      %v2982 = vadd.f32 %v2746, %v2921
      %v2983 = vadd.f32 %v2747, %v2924
      %v2984 = vadd.f32 %v2748, %v2926
      %v2985 = vadd.f32 %v2749, %v2929
      %v2986 = vadd.f32 %v2750, %v2931
      %v2987 = vadd.f32 %v2751, %v2934
      %v2988 = vadd.f32 %v2752, %v2936
      %v2989 = vadd.f32 %v2753, %v2939
      %v2990 = vadd.f32 %v2754, %v2941
      %v2991 = vadd.f32 %v2755, %v2944
      %v2992 = vadd.f32 %v2756, %v2946
      %v2993 = vadd.f32 %v2757, %v2949
      %v2994 = vadd.f32 %v2758, %v2951
      %v2995 = vadd.f32 %v2759, %v2954
      %v2996 = vadd.f32 %v2760, %v2956
      %v2997 = vadd.f32 %v2761, %v2959
      %v2998 = vadd.f32 %v2762, %v2961
      %v2999 = vld [vmem:[%s4] sm:$0x1]
      %v3001 = vperm.slane %v2999, 0
      %v3003 = vadd.f32 %v2963, %v3001
      %v3004 = vadd.f32 %v2964, %v3001
      %v3005 = vadd.f32 %v2965, %v3001
      %v3006 = vadd.f32 %v2966, %v3001
      %v3007 = vadd.f32 %v2967, %v3001
      %v3008 = vadd.f32 %v2968, %v3001
      %v3009 = vadd.f32 %v2969, %v3001
      %v3010 = vadd.f32 %v2970, %v3001
      %v3011 = vadd.f32 %v2971, %v3001
      %v3012 = vadd.f32 %v2972, %v3001
      %v3013 = vadd.f32 %v2973, %v3001
      %v3014 = vadd.f32 %v2974, %v3001
      %v3015 = vadd.f32 %v2975, %v3001
      %v3016 = vadd.f32 %v2976, %v3001
      %v3017 = vadd.f32 %v2977, %v3001
      %v3018 = vadd.f32 %v2978, %v3001
      %v3019 = vadd.f32 %v2979, %v3001
      %v3020 = vadd.f32 %v2980, %v3001
      %v3021 = vadd.f32 %v2981, %v3001
      %v3022 = vadd.f32 %v2982, %v3001
      %v3023 = vadd.f32 %v2983, %v3001
      %v3024 = vadd.f32 %v2984, %v3001
      %v3025 = vadd.f32 %v2985, %v3001
      %v3026 = vadd.f32 %v2986, %v3001
      %v3027 = vadd.f32 %v2987, %v3001
      %v3028 = vadd.f32 %v2988, %v3001
      %v3029 = vadd.f32 %v2989, %v3001
      %v3030 = vadd.f32 %v2990, %v3001
      %v3031 = vadd.f32 %v2991, %v3001
      %v3032 = vadd.f32 %v2992, %v3001
      %v3033 = vadd.f32 %v2993, %v3001
      %v3034 = vadd.f32 %v2994, %v3001
      %v3035 = vadd.f32 %v2995, %v3001
      %v3036 = vadd.f32 %v2996, %v3001
      %v3037 = vadd.f32 %v2997, %v3001
      %v3038 = vadd.f32 %v2998, %v3001
      %v3039 = vmax.f32 %v3003, 0.0
      %v3040 = vmax.f32 %v3004, 0.0
      %v3041 = vmax.f32 %v3005, 0.0
      %v3042 = vmax.f32 %v3006, 0.0
      %v3043 = vmax.f32 %v3007, 0.0
      %v3044 = vmax.f32 %v3008, 0.0
      %v3045 = vmax.f32 %v3009, 0.0
      %v3046 = vmax.f32 %v3010, 0.0
      %v3047 = vmax.f32 %v3011, 0.0
      %v3048 = vmax.f32 %v3012, 0.0
      %v3049 = vmax.f32 %v3013, 0.0
      %v3050 = vmax.f32 %v3014, 0.0
      %v3051 = vmax.f32 %v3015, 0.0
      %v3052 = vmax.f32 %v3016, 0.0
      %v3053 = vmax.f32 %v3017, 0.0
      %v3054 = vmax.f32 %v3018, 0.0
      %v3055 = vmax.f32 %v3019, 0.0
      %v3056 = vmax.f32 %v3020, 0.0
      %v3057 = vmax.f32 %v3021, 0.0
      %v3058 = vmax.f32 %v3022, 0.0
      %v3059 = vmax.f32 %v3023, 0.0
      %v3060 = vmax.f32 %v3024, 0.0
      %v3061 = vmax.f32 %v3025, 0.0
      %v3062 = vmax.f32 %v3026, 0.0
      %v3063 = vmax.f32 %v3027, 0.0
      %v3064 = vmax.f32 %v3028, 0.0
      %v3065 = vmax.f32 %v3029, 0.0
      %v3066 = vmax.f32 %v3030, 0.0
      %v3067 = vmax.f32 %v3031, 0.0
      %v3068 = vmax.f32 %v3032, 0.0
      %v3069 = vmax.f32 %v3033, 0.0
      %v3070 = vmax.f32 %v3034, 0.0
      %v3071 = vmax.f32 %v3035, 0.0
      %v3072 = vmax.f32 %v3036, 0.0
      %v3073 = vmax.f32 %v3037, 0.0
      %v3074 = vmax.f32 %v3038, 0.0
      %v3075 = vld [vmem:[%s1] sm:$0xff]
      %v3076 = vld [vmem:[%s1 + $0x8] sm:$0xff]
      %v3077 = vld [vmem:[%s1 + $0x10] sm:$0xff]
      %v3078 = vld [vmem:[%s1 + $0x18] sm:$0xff]
      %v3079 = vld [vmem:[%s1 + $0x20] sm:$0xff]
      %v3080 = vld [vmem:[%s1 + $0x28] sm:$0xff]
      %v3081 = vld [vmem:[%s1 + $0x30] sm:$0xff]
      %v3082 = vld [vmem:[%s1 + $0x38] sm:$0xff]
      %v3083 = vld [vmem:[%s1 + $0x40] sm:$0xff]
      %v3084 = vld [vmem:[%s1 + $0x48] sm:$0xff]
      %v3085 = vld [vmem:[%s1 + $0x50] sm:$0xff]
      %v3086 = vld [vmem:[%s1 + $0x58] sm:$0xff]
      %v3087 = vld [vmem:[%s1 + $0x60] sm:$0xff]
      %v3088 = vld [vmem:[%s1 + $0x68] sm:$0xff]
      %v3089 = vld [vmem:[%s1 + $0x70] sm:$0xff]
      %v3090 = vld [vmem:[%s1 + $0x78] sm:$0xff]
      %v3091 = vld [vmem:[%s1 + $0x80] sm:$0xff]
      %v3092 = vld [vmem:[%s1 + $0x88] sm:$0xff]
      %v3093 = vld [vmem:[%s1 + $0x90] sm:$0xff]
      %v3094 = vld [vmem:[%s1 + $0x98] sm:$0xff]
      %v3095 = vld [vmem:[%s1 + $0xa0] sm:$0xff]
      %v3096 = vld [vmem:[%s1 + $0xa8] sm:$0xff]
      %v3097 = vld [vmem:[%s1 + $0xb0] sm:$0xff]
      %v3098 = vld [vmem:[%s1 + $0xb8] sm:$0xff]
      %v3099 = vld [vmem:[%s1 + $0xc0] sm:$0xff]
      %v3100 = vld [vmem:[%s1 + $0xc8] sm:$0xff]
      %v3101 = vld [vmem:[%s1 + $0xd0] sm:$0xff]
      %v3102 = vld [vmem:[%s1 + $0xd8] sm:$0xff]
      %v3103 = vld [vmem:[%s1 + $0xe0] sm:$0xff]
      %v3104 = vld [vmem:[%s1 + $0xe8] sm:$0xff]
      %v3105 = vld [vmem:[%s1 + $0xf0] sm:$0xff]
      %v3106 = vld [vmem:[%s1 + $0xf8] sm:$0xff]
      %v3107 = vld [vmem:[%s1 + $0x100] sm:$0xff]
      %v3108 = vld [vmem:[%s1 + $0x108] sm:$0xff]
      %v3109 = vld [vmem:[%s1 + $0x110] sm:$0xff]
      %v3110 = vld [vmem:[%s1 + $0x118] sm:$0xff]
      %3112 = vset.pattern.permute.xlu0 0
      %3113 = vperm.xlu0 %3112, %v3075
      %v3114 = vpop.permute.xlu0 %3113
      %3117 = vset.pattern.permute.xlu0 0
      %3118 = vperm.xlu0 %3117, %v3076
      %v3119 = vpop.permute.xlu0 %3118
      %3122 = vset.pattern.permute.xlu0 0
      %3123 = vperm.xlu0 %3122, %v3077
      %v3124 = vpop.permute.xlu0 %3123
      %3127 = vset.pattern.permute.xlu0 0
      %3128 = vperm.xlu0 %3127, %v3078
      %v3129 = vpop.permute.xlu0 %3128
      %3132 = vset.pattern.permute.xlu0 0
      %3133 = vperm.xlu0 %3132, %v3079
      %v3134 = vpop.permute.xlu0 %3133
      %3137 = vset.pattern.permute.xlu0 0
      %3138 = vperm.xlu0 %3137, %v3080
      %v3139 = vpop.permute.xlu0 %3138
      %3142 = vset.pattern.permute.xlu0 0
      %3143 = vperm.xlu0 %3142, %v3081
      %v3144 = vpop.permute.xlu0 %3143
      %3147 = vset.pattern.permute.xlu0 0
      %3148 = vperm.xlu0 %3147, %v3082
      %v3149 = vpop.permute.xlu0 %3148
      %3152 = vset.pattern.permute.xlu0 0
      %3153 = vperm.xlu0 %3152, %v3083
      %v3154 = vpop.permute.xlu0 %3153
      %3157 = vset.pattern.permute.xlu0 0
      %3158 = vperm.xlu0 %3157, %v3084
      %v3159 = vpop.permute.xlu0 %3158
      %3162 = vset.pattern.permute.xlu0 0
      %3163 = vperm.xlu0 %3162, %v3085
      %v3164 = vpop.permute.xlu0 %3163
      %3167 = vset.pattern.permute.xlu0 0
      %3168 = vperm.xlu0 %3167, %v3086
      %v3169 = vpop.permute.xlu0 %3168
      %3172 = vset.pattern.permute.xlu0 0
      %3173 = vperm.xlu0 %3172, %v3087
      %v3174 = vpop.permute.xlu0 %3173
      %3177 = vset.pattern.permute.xlu0 0
      %3178 = vperm.xlu0 %3177, %v3088
      %v3179 = vpop.permute.xlu0 %3178
      %3182 = vset.pattern.permute.xlu0 0
      %3183 = vperm.xlu0 %3182, %v3089
      %v3184 = vpop.permute.xlu0 %3183
      %3187 = vset.pattern.permute.xlu0 0
      %3188 = vperm.xlu0 %3187, %v3090
      %v3189 = vpop.permute.xlu0 %3188
      %3192 = vset.pattern.permute.xlu0 0
      %3193 = vperm.xlu0 %3192, %v3091
      %v3194 = vpop.permute.xlu0 %3193
      %3197 = vset.pattern.permute.xlu0 0
      %3198 = vperm.xlu0 %3197, %v3092
      %v3199 = vpop.permute.xlu0 %3198
      %3202 = vset.pattern.permute.xlu0 0
      %3203 = vperm.xlu0 %3202, %v3093
      %v3204 = vpop.permute.xlu0 %3203
      %3207 = vset.pattern.permute.xlu0 0
      %3208 = vperm.xlu0 %3207, %v3094
      %v3209 = vpop.permute.xlu0 %3208
      %3212 = vset.pattern.permute.xlu0 0
      %3213 = vperm.xlu0 %3212, %v3095
      %v3214 = vpop.permute.xlu0 %3213
      %3217 = vset.pattern.permute.xlu0 0
      %3218 = vperm.xlu0 %3217, %v3096
      %v3219 = vpop.permute.xlu0 %3218
      %3222 = vset.pattern.permute.xlu0 0
      %3223 = vperm.xlu0 %3222, %v3097
      %v3224 = vpop.permute.xlu0 %3223
      %3227 = vset.pattern.permute.xlu0 0
      %3228 = vperm.xlu0 %3227, %v3098
      %v3229 = vpop.permute.xlu0 %3228
      %3232 = vset.pattern.permute.xlu0 0
      %3233 = vperm.xlu0 %3232, %v3099
      %v3234 = vpop.permute.xlu0 %3233
      %3237 = vset.pattern.permute.xlu0 0
      %3238 = vperm.xlu0 %3237, %v3100
      %v3239 = vpop.permute.xlu0 %3238
      %3242 = vset.pattern.permute.xlu0 0
      %3243 = vperm.xlu0 %3242, %v3101
      %v3244 = vpop.permute.xlu0 %3243
      %3247 = vset.pattern.permute.xlu0 0
      %3248 = vperm.xlu0 %3247, %v3102
      %v3249 = vpop.permute.xlu0 %3248
      %3252 = vset.pattern.permute.xlu0 0
      %3253 = vperm.xlu0 %3252, %v3103
      %v3254 = vpop.permute.xlu0 %3253
      %3257 = vset.pattern.permute.xlu0 0
      %3258 = vperm.xlu0 %3257, %v3104
      %v3259 = vpop.permute.xlu0 %3258
      %3262 = vset.pattern.permute.xlu0 0
      %3263 = vperm.xlu0 %3262, %v3105
      %v3264 = vpop.permute.xlu0 %3263
      %3267 = vset.pattern.permute.xlu0 0
      %3268 = vperm.xlu0 %3267, %v3106
      %v3269 = vpop.permute.xlu0 %3268
      %3272 = vset.pattern.permute.xlu0 0
      %3273 = vperm.xlu0 %3272, %v3107
      %v3274 = vpop.permute.xlu0 %3273
      %3277 = vset.pattern.permute.xlu0 0
      %3278 = vperm.xlu0 %3277, %v3108
      %v3279 = vpop.permute.xlu0 %3278
      %3282 = vset.pattern.permute.xlu0 0
      %3283 = vperm.xlu0 %3282, %v3109
      %v3284 = vpop.permute.xlu0 %3283
      %3287 = vset.pattern.permute.xlu0 0
      %3288 = vperm.xlu0 %3287, %v3110
      %v3289 = vpop.permute.xlu0 %3288
      %v3291 = vmul.f32 %v3039, %v3114
      %v3292 = vmul.f32 %v3040, %v3119
      %v3293 = vmul.f32 %v3041, %v3124
      %v3294 = vmul.f32 %v3042, %v3129
      %v3295 = vmul.f32 %v3043, %v3134
      %v3296 = vmul.f32 %v3044, %v3139
      %v3297 = vmul.f32 %v3045, %v3144
      %v3298 = vmul.f32 %v3046, %v3149
      %v3299 = vmul.f32 %v3047, %v3154
      %v3300 = vmul.f32 %v3048, %v3159
      %v3301 = vmul.f32 %v3049, %v3164
      %v3302 = vmul.f32 %v3050, %v3169
      %v3303 = vmul.f32 %v3051, %v3174
      %v3304 = vmul.f32 %v3052, %v3179
      %v3305 = vmul.f32 %v3053, %v3184
      %v3306 = vmul.f32 %v3054, %v3189
      %v3307 = vmul.f32 %v3055, %v3194
      %v3308 = vmul.f32 %v3056, %v3199
      %v3309 = vmul.f32 %v3057, %v3204
      %v3310 = vmul.f32 %v3058, %v3209
      %v3311 = vmul.f32 %v3059, %v3214
      %v3312 = vmul.f32 %v3060, %v3219
      %v3313 = vmul.f32 %v3061, %v3224
      %v3314 = vmul.f32 %v3062, %v3229
      %v3315 = vmul.f32 %v3063, %v3234
      %v3316 = vmul.f32 %v3064, %v3239
      %v3317 = vmul.f32 %v3065, %v3244
      %v3318 = vmul.f32 %v3066, %v3249
      %v3319 = vmul.f32 %v3067, %v3254
      %v3320 = vmul.f32 %v3068, %v3259
      %v3321 = vmul.f32 %v3069, %v3264
      %v3322 = vmul.f32 %v3070, %v3269
      %v3323 = vmul.f32 %v3071, %v3274
      %v3324 = vmul.f32 %v3072, %v3279
      %v3325 = vmul.f32 %v3073, %v3284
      %v3326 = vmul.f32 %v3074, %v3289
      %vm3327 = vcmask 27648
      %3328 = vst.msk [vmem:[#allocation2] sm:$0xf] %vm3327, 0
      %3329 = vst.msk [vmem:[#allocation2 + $0x4] sm:$0xf] %vm3327, 0
      %vm3330 = vcmask 25600
      %vm3331 = vsmask.f32 1280
      %vm3332 = vmand %vm3330, %vm3331
      %v3333 = vld [vmem:[#allocation2 + $0x8] sm:$0x3]
      %v3334 = vsel %vm3332, 0, %v3333
      %3335 = vst [vmem:[#allocation2 + $0x8] sm:$0x3] %v3334
      %v3336 = vpack.c.bf16 %v3291, %v3291
      %v3337 = vpack.c.bf16 %v3292, %v3292
      %v3338 = vpack.c.bf16 %v3293, %v3293
      %v3339 = vpack.c.bf16 %v3294, %v3294
      %v3340 = vpack.c.bf16 %v3295, %v3295
      %v3341 = vpack.c.bf16 %v3296, %v3296
      %v3342 = vpack.c.bf16 %v3297, %v3297
      %v3343 = vpack.c.bf16 %v3298, %v3298
      %v3344 = vpack.c.bf16 %v3299, %v3299
      %v3345 = vpack.c.bf16 %v3300, %v3300
      %v3346 = vpack.c.bf16 %v3301, %v3301
      %v3347 = vpack.c.bf16 %v3302, %v3302
      %v3348 = vpack.c.bf16 %v3303, %v3303
      %v3349 = vpack.c.bf16 %v3304, %v3304
      %v3350 = vpack.c.bf16 %v3305, %v3305
      %v3351 = vpack.c.bf16 %v3306, %v3306
      %v3352 = vpack.c.bf16 %v3307, %v3307
      %v3353 = vpack.c.bf16 %v3308, %v3308
      %v3354 = vpack.c.bf16 %v3309, %v3309
      %v3355 = vpack.c.bf16 %v3310, %v3310
      %v3356 = vpack.c.bf16 %v3311, %v3311
      %v3357 = vpack.c.bf16 %v3312, %v3312
      %v3358 = vpack.c.bf16 %v3313, %v3313
      %v3359 = vpack.c.bf16 %v3314, %v3314
      %v3360 = vpack.c.bf16 %v3315, %v3315
      %v3361 = vpack.c.bf16 %v3316, %v3316
      %v3362 = vpack.c.bf16 %v3317, %v3317
      %v3363 = vpack.c.bf16 %v3318, %v3318
      %v3364 = vpack.c.bf16 %v3319, %v3319
      %v3365 = vpack.c.bf16 %v3320, %v3320
      %v3366 = vpack.c.bf16 %v3321, %v3321
      %v3367 = vpack.c.bf16 %v3322, %v3322
      %v3368 = vpack.c.bf16 %v3323, %v3323
      %v3369 = vpack.c.bf16 %v3324, %v3324
      %v3370 = vpack.c.bf16 %v3325, %v3325
      %v3371 = vpack.c.bf16 %v3326, %v3326
      %vm3372 = vsmask.f32 5392
      %vm3373 = vmor %vm3331, %vm3372
      %v3375 = vshrl.u32 %v3336, 16
      %v3377 = vrot.slane %v3375, 6
      %v3378 = vshll.u32 %v3336, 16
      %v3380 = vrot.slane %v3378, 7
      %v3381 = vor.u32 %v3377, %v3380
      %v3382 = vrot.slane %v3381, 4
      %v3384 = vshrl.u32 %v3337, 16
      %v3386 = vrot.slane %v3384, 6
      %v3387 = vshll.u32 %v3337, 16
      %v3389 = vrot.slane %v3387, 7
      %v3390 = vor.u32 %v3386, %v3389
      %v3391 = vsel %vm3373, %v3382, %v3390
      %v3392 = vrot.slane %v3390, 4
      %v3394 = vshrl.u32 %v3338, 16
      %v3396 = vrot.slane %v3394, 6
      %v3397 = vshll.u32 %v3338, 16
      %v3399 = vrot.slane %v3397, 7
      %v3400 = vor.u32 %v3396, %v3399
      %v3401 = vsel %vm3373, %v3392, %v3400
      %v3402 = vrot.slane %v3400, 4
      %v3404 = vshrl.u32 %v3339, 16
      %v3406 = vrot.slane %v3404, 6
      %v3407 = vshll.u32 %v3339, 16
      %v3409 = vrot.slane %v3407, 7
      %v3410 = vor.u32 %v3406, %v3409
      %v3411 = vsel %vm3373, %v3402, %v3410
      %v3412 = vrot.slane %v3410, 4
      %v3414 = vshrl.u32 %v3340, 16
      %v3416 = vrot.slane %v3414, 6
      %v3417 = vshll.u32 %v3340, 16
      %v3419 = vrot.slane %v3417, 7
      %v3420 = vor.u32 %v3416, %v3419
      %v3421 = vsel %vm3373, %v3412, %v3420
      %v3422 = vrot.slane %v3420, 4
      %v3424 = vshrl.u32 %v3341, 16
      %v3426 = vrot.slane %v3424, 6
      %v3427 = vshll.u32 %v3341, 16
      %v3429 = vrot.slane %v3427, 7
      %v3430 = vor.u32 %v3426, %v3429
      %v3431 = vsel %vm3373, %v3422, %v3430
      %v3432 = vrot.slane %v3430, 4
      %v3434 = vshrl.u32 %v3342, 16
      %v3436 = vrot.slane %v3434, 6
      %v3437 = vshll.u32 %v3342, 16
      %v3439 = vrot.slane %v3437, 7
      %v3440 = vor.u32 %v3436, %v3439
      %v3441 = vsel %vm3373, %v3432, %v3440
      %v3442 = vrot.slane %v3440, 4
      %v3444 = vshrl.u32 %v3343, 16
      %v3446 = vrot.slane %v3444, 6
      %v3447 = vshll.u32 %v3343, 16
      %v3449 = vrot.slane %v3447, 7
      %v3450 = vor.u32 %v3446, %v3449
      %v3451 = vsel %vm3373, %v3442, %v3450
      %v3452 = vrot.slane %v3450, 4
      %v3454 = vshrl.u32 %v3344, 16
      %v3456 = vrot.slane %v3454, 6
      %v3457 = vshll.u32 %v3344, 16
      %v3459 = vrot.slane %v3457, 7
      %v3460 = vor.u32 %v3456, %v3459
      %v3461 = vsel %vm3373, %v3452, %v3460
      %v3462 = vrot.slane %v3460, 4
      %v3464 = vshrl.u32 %v3345, 16
      %v3466 = vrot.slane %v3464, 6
      %v3467 = vshll.u32 %v3345, 16
      %v3469 = vrot.slane %v3467, 7
      %v3470 = vor.u32 %v3466, %v3469
      %v3471 = vsel %vm3373, %v3462, %v3470
      %v3472 = vrot.slane %v3470, 4
      %v3474 = vshrl.u32 %v3346, 16
      %v3476 = vrot.slane %v3474, 6
      %v3477 = vshll.u32 %v3346, 16
      %v3479 = vrot.slane %v3477, 7
      %v3480 = vor.u32 %v3476, %v3479
      %v3481 = vsel %vm3373, %v3472, %v3480
      %v3482 = vrot.slane %v3480, 4
      %v3484 = vshrl.u32 %v3347, 16
      %v3486 = vrot.slane %v3484, 6
      %v3487 = vshll.u32 %v3347, 16
      %v3489 = vrot.slane %v3487, 7
      %v3490 = vor.u32 %v3486, %v3489
      %v3491 = vsel %vm3373, %v3482, %v3490
      %v3492 = vrot.slane %v3490, 4
      %v3494 = vshrl.u32 %v3348, 16
      %v3496 = vrot.slane %v3494, 6
      %v3497 = vshll.u32 %v3348, 16
      %v3499 = vrot.slane %v3497, 7
      %v3500 = vor.u32 %v3496, %v3499
      %v3501 = vsel %vm3373, %v3492, %v3500
      %v3502 = vrot.slane %v3500, 4
      %v3504 = vshrl.u32 %v3349, 16
      %v3506 = vrot.slane %v3504, 6
      %v3507 = vshll.u32 %v3349, 16
      %v3509 = vrot.slane %v3507, 7
      %v3510 = vor.u32 %v3506, %v3509
      %v3511 = vsel %vm3373, %v3502, %v3510
      %v3512 = vrot.slane %v3510, 4
      %v3514 = vshrl.u32 %v3350, 16
      %v3516 = vrot.slane %v3514, 6
      %v3517 = vshll.u32 %v3350, 16
      %v3519 = vrot.slane %v3517, 7
      %v3520 = vor.u32 %v3516, %v3519
      %v3521 = vsel %vm3373, %v3512, %v3520
      %v3522 = vrot.slane %v3520, 4
      %v3524 = vshrl.u32 %v3351, 16
      %v3526 = vrot.slane %v3524, 6
      %v3527 = vshll.u32 %v3351, 16
      %v3529 = vrot.slane %v3527, 7
      %v3530 = vor.u32 %v3526, %v3529
      %v3531 = vsel %vm3373, %v3522, %v3530
      %v3532 = vrot.slane %v3530, 4
      %v3534 = vshrl.u32 %v3352, 16
      %v3536 = vrot.slane %v3534, 6
      %v3537 = vshll.u32 %v3352, 16
      %v3539 = vrot.slane %v3537, 7
      %v3540 = vor.u32 %v3536, %v3539
      %v3541 = vsel %vm3373, %v3532, %v3540
      %v3542 = vrot.slane %v3540, 4
      %v3544 = vshrl.u32 %v3353, 16
      %v3546 = vrot.slane %v3544, 6
      %v3547 = vshll.u32 %v3353, 16
      %v3549 = vrot.slane %v3547, 7
      %v3550 = vor.u32 %v3546, %v3549
      %v3551 = vsel %vm3373, %v3542, %v3550
      %v3552 = vrot.slane %v3550, 4
      %v3554 = vshrl.u32 %v3354, 16
      %v3556 = vrot.slane %v3554, 6
      %v3557 = vshll.u32 %v3354, 16
      %v3559 = vrot.slane %v3557, 7
      %v3560 = vor.u32 %v3556, %v3559
      %v3561 = vsel %vm3373, %v3552, %v3560
      %v3562 = vrot.slane %v3560, 4
      %v3564 = vshrl.u32 %v3355, 16
      %v3566 = vrot.slane %v3564, 6
      %v3567 = vshll.u32 %v3355, 16
      %v3569 = vrot.slane %v3567, 7
      %v3570 = vor.u32 %v3566, %v3569
      %v3571 = vsel %vm3373, %v3562, %v3570
      %v3572 = vrot.slane %v3570, 4
      %v3574 = vshrl.u32 %v3356, 16
      %v3576 = vrot.slane %v3574, 6
      %v3577 = vshll.u32 %v3356, 16
      %v3579 = vrot.slane %v3577, 7
      %v3580 = vor.u32 %v3576, %v3579
      %v3581 = vsel %vm3373, %v3572, %v3580
      %v3582 = vrot.slane %v3580, 4
      %v3584 = vshrl.u32 %v3357, 16
      %v3586 = vrot.slane %v3584, 6
      %v3587 = vshll.u32 %v3357, 16
      %v3589 = vrot.slane %v3587, 7
      %v3590 = vor.u32 %v3586, %v3589
      %v3591 = vsel %vm3373, %v3582, %v3590
      %v3592 = vrot.slane %v3590, 4
      %v3594 = vshrl.u32 %v3358, 16
      %v3596 = vrot.slane %v3594, 6
      %v3597 = vshll.u32 %v3358, 16
      %v3599 = vrot.slane %v3597, 7
      %v3600 = vor.u32 %v3596, %v3599
      %v3601 = vsel %vm3373, %v3592, %v3600
      %v3602 = vrot.slane %v3600, 4
      %v3604 = vshrl.u32 %v3359, 16
      %v3606 = vrot.slane %v3604, 6
      %v3607 = vshll.u32 %v3359, 16
      %v3609 = vrot.slane %v3607, 7
      %v3610 = vor.u32 %v3606, %v3609
      %v3611 = vsel %vm3373, %v3602, %v3610
      %v3612 = vrot.slane %v3610, 4
      %v3614 = vshrl.u32 %v3360, 16
      %v3616 = vrot.slane %v3614, 6
      %v3617 = vshll.u32 %v3360, 16
      %v3619 = vrot.slane %v3617, 7
      %v3620 = vor.u32 %v3616, %v3619
      %v3621 = vsel %vm3373, %v3612, %v3620
      %v3622 = vrot.slane %v3620, 4
      %v3624 = vshrl.u32 %v3361, 16
      %v3626 = vrot.slane %v3624, 6
      %v3627 = vshll.u32 %v3361, 16
      %v3629 = vrot.slane %v3627, 7
      %v3630 = vor.u32 %v3626, %v3629
      %v3631 = vsel %vm3373, %v3622, %v3630
      %v3632 = vrot.slane %v3630, 4
      %v3634 = vshrl.u32 %v3362, 16
      %v3636 = vrot.slane %v3634, 6
      %v3637 = vshll.u32 %v3362, 16
      %v3639 = vrot.slane %v3637, 7
      %v3640 = vor.u32 %v3636, %v3639
      %v3641 = vsel %vm3373, %v3632, %v3640
      %v3642 = vrot.slane %v3640, 4
      %v3644 = vshrl.u32 %v3363, 16
      %v3646 = vrot.slane %v3644, 6
      %v3647 = vshll.u32 %v3363, 16
      %v3649 = vrot.slane %v3647, 7
      %v3650 = vor.u32 %v3646, %v3649
      %v3651 = vsel %vm3373, %v3642, %v3650
      %v3652 = vrot.slane %v3650, 4
      %v3654 = vshrl.u32 %v3364, 16
      %v3656 = vrot.slane %v3654, 6
      %v3657 = vshll.u32 %v3364, 16
      %v3659 = vrot.slane %v3657, 7
      %v3660 = vor.u32 %v3656, %v3659
      %v3661 = vsel %vm3373, %v3652, %v3660
      %v3662 = vrot.slane %v3660, 4
      %v3664 = vshrl.u32 %v3365, 16
      %v3666 = vrot.slane %v3664, 6
      %v3667 = vshll.u32 %v3365, 16
      %v3669 = vrot.slane %v3667, 7
      %v3670 = vor.u32 %v3666, %v3669
      %v3671 = vsel %vm3373, %v3662, %v3670
      %v3672 = vrot.slane %v3670, 4
      %v3674 = vshrl.u32 %v3366, 16
      %v3676 = vrot.slane %v3674, 6
      %v3677 = vshll.u32 %v3366, 16
      %v3679 = vrot.slane %v3677, 7
      %v3680 = vor.u32 %v3676, %v3679
      %v3681 = vsel %vm3373, %v3672, %v3680
      %v3682 = vrot.slane %v3680, 4
      %v3684 = vshrl.u32 %v3367, 16
      %v3686 = vrot.slane %v3684, 6
      %v3687 = vshll.u32 %v3367, 16
      %v3689 = vrot.slane %v3687, 7
      %v3690 = vor.u32 %v3686, %v3689
      %v3691 = vsel %vm3373, %v3682, %v3690
      %v3692 = vrot.slane %v3690, 4
      %v3694 = vshrl.u32 %v3368, 16
      %v3696 = vrot.slane %v3694, 6
      %v3697 = vshll.u32 %v3368, 16
      %v3699 = vrot.slane %v3697, 7
      %v3700 = vor.u32 %v3696, %v3699
      %v3701 = vsel %vm3373, %v3692, %v3700
      %v3702 = vrot.slane %v3700, 4
      %v3704 = vshrl.u32 %v3369, 16
      %v3706 = vrot.slane %v3704, 6
      %v3707 = vshll.u32 %v3369, 16
      %v3709 = vrot.slane %v3707, 7
      %v3710 = vor.u32 %v3706, %v3709
      %v3711 = vsel %vm3373, %v3702, %v3710
      %v3712 = vrot.slane %v3710, 4
      %v3714 = vshrl.u32 %v3370, 16
      %v3716 = vrot.slane %v3714, 6
      %v3717 = vshll.u32 %v3370, 16
      %v3719 = vrot.slane %v3717, 7
      %v3720 = vor.u32 %v3716, %v3719
      %v3721 = vsel %vm3373, %v3712, %v3720
      %v3722 = vrot.slane %v3720, 4
      %v3724 = vshrl.u32 %v3371, 16
      %v3726 = vrot.slane %v3724, 6
      %v3727 = vshll.u32 %v3371, 16
      %v3729 = vrot.slane %v3727, 7
      %v3730 = vor.u32 %v3726, %v3729
      %v3731 = vsel %vm3373, %v3722, %v3730
      %v3732 = vrot.slane %v3730, 4
      %vm3770 = vcmask 27649
      %vm3771 = vsmask.f32 7942
      %vm3772 = vmand %vm3770, %vm3771
      %v3773 = vld [vmem:[#allocation2 + $0x8] sm:$0xe]
      %v3774 = vsel %vm3772, %v3381, %v3773
      %3775 = vst [vmem:[#allocation2 + $0x8] sm:$0xe] %v3774
      %3776 = vst.msk [vmem:[#allocation2 + $0xc] sm:$0xf] %vm3327, %v3391
      %3777 = vst.msk [vmem:[#allocation2 + $0x10] sm:$0xf] %vm3327, %v3401
      %3778 = vst.msk [vmem:[#allocation2 + $0x14] sm:$0xf] %vm3327, %v3411
      %3779 = vst.msk [vmem:[#allocation2 + $0x18] sm:$0xf] %vm3327, %v3421
      %3780 = vst.msk [vmem:[#allocation2 + $0x1c] sm:$0xf] %vm3327, %v3431
      %3781 = vst.msk [vmem:[#allocation2 + $0x20] sm:$0xf] %vm3327, %v3441
      %3782 = vst.msk [vmem:[#allocation2 + $0x24] sm:$0xf] %vm3327, %v3451
      %3783 = vst.msk [vmem:[#allocation2 + $0x28] sm:$0xf] %vm3327, %v3461
      %3784 = vst.msk [vmem:[#allocation2 + $0x2c] sm:$0xf] %vm3327, %v3471
      %3785 = vst.msk [vmem:[#allocation2 + $0x30] sm:$0xf] %vm3327, %v3481
      %3786 = vst.msk [vmem:[#allocation2 + $0x34] sm:$0xf] %vm3327, %v3491
      %3787 = vst.msk [vmem:[#allocation2 + $0x38] sm:$0xf] %vm3327, %v3501
      %3788 = vst.msk [vmem:[#allocation2 + $0x3c] sm:$0xf] %vm3327, %v3511
      %3789 = vst.msk [vmem:[#allocation2 + $0x40] sm:$0xf] %vm3327, %v3521
      %3790 = vst.msk [vmem:[#allocation2 + $0x44] sm:$0xf] %vm3327, %v3531
      %3791 = vst.msk [vmem:[#allocation2 + $0x48] sm:$0xf] %vm3327, %v3541
      %3792 = vst.msk [vmem:[#allocation2 + $0x4c] sm:$0xf] %vm3327, %v3551
      %3793 = vst.msk [vmem:[#allocation2 + $0x50] sm:$0xf] %vm3327, %v3561
      %3794 = vst.msk [vmem:[#allocation2 + $0x54] sm:$0xf] %vm3327, %v3571
      %3795 = vst.msk [vmem:[#allocation2 + $0x58] sm:$0xf] %vm3327, %v3581
      %3796 = vst.msk [vmem:[#allocation2 + $0x5c] sm:$0xf] %vm3327, %v3591
      %3797 = vst.msk [vmem:[#allocation2 + $0x60] sm:$0xf] %vm3327, %v3601
      %3798 = vst.msk [vmem:[#allocation2 + $0x64] sm:$0xf] %vm3327, %v3611
      %3799 = vst.msk [vmem:[#allocation2 + $0x68] sm:$0xf] %vm3327, %v3621
      %3800 = vst.msk [vmem:[#allocation2 + $0x6c] sm:$0xf] %vm3327, %v3631
      %3801 = vst.msk [vmem:[#allocation2 + $0x70] sm:$0xf] %vm3327, %v3641
      %3802 = vst.msk [vmem:[#allocation2 + $0x74] sm:$0xf] %vm3327, %v3651
      %3803 = vst.msk [vmem:[#allocation2 + $0x78] sm:$0xf] %vm3327, %v3661
      %3804 = vst.msk [vmem:[#allocation2 + $0x7c] sm:$0xf] %vm3327, %v3671
      %3805 = vst.msk [vmem:[#allocation2 + $0x80] sm:$0xf] %vm3327, %v3681
      %3806 = vst.msk [vmem:[#allocation2 + $0x84] sm:$0xf] %vm3327, %v3691
      %3807 = vst.msk [vmem:[#allocation2 + $0x88] sm:$0xf] %vm3327, %v3701
      %3808 = vst.msk [vmem:[#allocation2 + $0x8c] sm:$0xf] %vm3327, %v3711
      %3809 = vst.msk [vmem:[#allocation2 + $0x90] sm:$0xf] %vm3327, %v3721
      %3810 = vst.msk [vmem:[#allocation2 + $0x94] sm:$0xf] %vm3327, %v3731
      %v3811 = vld [vmem:[#allocation2 + $0x98] sm:$0x3]
      %v3812 = vsel %vm3332, %v3732, %v3811
      %3813 = vst [vmem:[#allocation2 + $0x98] sm:$0x3] %v3812
      %v3814 = vld [vmem:[#allocation2 + $0x98] sm:$0xe]
      %v3815 = vsel %vm3772, 0, %v3814
      %3816 = vst [vmem:[#allocation2 + $0x98] sm:$0xe] %v3815
      %3817 = vst.msk [vmem:[#allocation2 + $0x9c] sm:$0xf] %vm3327, 0
      %vm3818 = vcmask 26624
      %3819 = vst.msk [vmem:[#allocation2 + $0xa0] sm:$0x7] %vm3818, 0
      %v3820 = vld [vmem:[#allocation2] sm:$0xf]
      %v3821 = vld [vmem:[#allocation2 + $0x4] sm:$0xf]
      %v3822 = vld [vmem:[#allocation2 + $0x8] sm:$0xf]
      %v3823 = vld [vmem:[#allocation2 + $0xc] sm:$0xf]
      %v3824 = vld [vmem:[#allocation2 + $0x10] sm:$0xf]
      %v3825 = vld [vmem:[#allocation2 + $0x14] sm:$0xf]
      %v3826 = vld [vmem:[#allocation2 + $0x18] sm:$0xf]
      %v3827 = vld [vmem:[#allocation2 + $0x1c] sm:$0xf]
      %v3828 = vld [vmem:[#allocation2 + $0x20] sm:$0xf]
      %v3829 = vld [vmem:[#allocation2 + $0x24] sm:$0xf]
      %v3830 = vld [vmem:[#allocation2 + $0x28] sm:$0xf]
      %v3831 = vld [vmem:[#allocation2 + $0x2c] sm:$0xf]
      %v3832 = vld [vmem:[#allocation2 + $0x30] sm:$0xf]
      %v3833 = vld [vmem:[#allocation2 + $0x34] sm:$0xf]
      %v3834 = vld [vmem:[#allocation2 + $0x38] sm:$0xf]
      %v3835 = vld [vmem:[#allocation2 + $0x3c] sm:$0xf]
      %v3836 = vld [vmem:[#allocation2 + $0x40] sm:$0xf]
      %v3837 = vld [vmem:[#allocation2 + $0x44] sm:$0xf]
      %v3838 = vld [vmem:[#allocation2 + $0x48] sm:$0xf]
      %v3839 = vld [vmem:[#allocation2 + $0x4c] sm:$0xf]
      %v3840 = vld [vmem:[#allocation2 + $0x50] sm:$0xf]
      %v3841 = vld [vmem:[#allocation2 + $0x54] sm:$0xf]
      %v3842 = vld [vmem:[#allocation2 + $0x58] sm:$0xf]
      %v3843 = vld [vmem:[#allocation2 + $0x5c] sm:$0xf]
      %v3844 = vld [vmem:[#allocation2 + $0x60] sm:$0xf]
      %v3845 = vld [vmem:[#allocation2 + $0x64] sm:$0xf]
      %v3846 = vld [vmem:[#allocation2 + $0x68] sm:$0xf]
      %v3847 = vld [vmem:[#allocation2 + $0x6c] sm:$0xf]
      %v3848 = vld [vmem:[#allocation2 + $0x70] sm:$0xf]
      %v3849 = vld [vmem:[#allocation2 + $0x74] sm:$0xf]
      %v3850 = vld [vmem:[#allocation2 + $0x78] sm:$0xf]
      %v3851 = vld [vmem:[#allocation2 + $0x7c] sm:$0xf]
      %v3852 = vld [vmem:[#allocation2 + $0x80] sm:$0xf]
      %v3853 = vld [vmem:[#allocation2 + $0x84] sm:$0xf]
      %v3854 = vld [vmem:[#allocation2 + $0x88] sm:$0xf]
      %v3855 = vld [vmem:[#allocation2 + $0x8c] sm:$0xf]
      %v3856 = vld [vmem:[%s3] sm:$0x3]
      %v3857 = vld [vmem:[#allocation2 + $0x90] sm:$0x1]
      %s3858 = scalar_lea.vmem %s3, 2
      %v3859 = vld [vmem:[%s3858] sm:$0x3]
      %v3897 = vunpack.c.l.b16 %v3820
      %v3898 = vunpack.c.l.b16 %v3821
      %v3899 = vunpack.c.l.b16 %v3822
      %v3900 = vunpack.c.l.b16 %v3823
      %v3901 = vunpack.c.l.b16 %v3824
      %v3902 = vunpack.c.l.b16 %v3825
      %v3903 = vunpack.c.l.b16 %v3826
      %v3904 = vunpack.c.l.b16 %v3827
      %v3905 = vunpack.c.l.b16 %v3828
      %v3906 = vunpack.c.l.b16 %v3829
      %v3907 = vunpack.c.l.b16 %v3830
      %v3908 = vunpack.c.l.b16 %v3831
      %v3909 = vunpack.c.l.b16 %v3832
      %v3910 = vunpack.c.l.b16 %v3833
      %v3911 = vunpack.c.l.b16 %v3834
      %v3912 = vunpack.c.l.b16 %v3835
      %v3913 = vunpack.c.l.b16 %v3836
      %v3914 = vunpack.c.l.b16 %v3837
      %v3915 = vunpack.c.l.b16 %v3838
      %v3916 = vunpack.c.l.b16 %v3839
      %v3917 = vunpack.c.l.b16 %v3840
      %v3918 = vunpack.c.l.b16 %v3841
      %v3919 = vunpack.c.l.b16 %v3842
      %v3920 = vunpack.c.l.b16 %v3843
      %v3921 = vunpack.c.l.b16 %v3844
      %v3922 = vunpack.c.l.b16 %v3845
      %v3923 = vunpack.c.l.b16 %v3846
      %v3924 = vunpack.c.l.b16 %v3847
      %v3925 = vunpack.c.l.b16 %v3848
      %v3926 = vunpack.c.l.b16 %v3849
      %v3927 = vunpack.c.l.b16 %v3850
      %v3928 = vunpack.c.l.b16 %v3851
      %v3929 = vunpack.c.l.b16 %v3852
      %v3930 = vunpack.c.l.b16 %v3853
      %v3931 = vunpack.c.l.b16 %v3854
      %v3932 = vunpack.c.l.b16 %v3855
      %v3933 = vunpack.c.l.b16 %v3857
      %v3934 = vpack.c.b16 %v3898, %v3897
      %v3935 = vpack.c.b16 %v3900, %v3899
      %v3936 = vpack.c.b16 %v3902, %v3901
      %v3937 = vpack.c.b16 %v3904, %v3903
      %v3938 = vpack.c.b16 %v3906, %v3905
      %v3939 = vpack.c.b16 %v3908, %v3907
      %v3940 = vpack.c.b16 %v3910, %v3909
      %v3941 = vpack.c.b16 %v3912, %v3911
      %v3942 = vpack.c.b16 %v3914, %v3913
      %v3943 = vpack.c.b16 %v3916, %v3915
      %v3944 = vpack.c.b16 %v3918, %v3917
      %v3945 = vpack.c.b16 %v3920, %v3919
      %v3946 = vpack.c.b16 %v3922, %v3921
      %v3947 = vpack.c.b16 %v3924, %v3923
      %v3948 = vpack.c.b16 %v3926, %v3925
      %v3949 = vpack.c.b16 %v3928, %v3927
      %v3950 = vpack.c.b16 %v3930, %v3929
      %v3951 = vpack.c.b16 %v3932, %v3931
      %v3952 = vpack.c.b16 %v3933, %v3933
      %v3954 = vshrl.u32 %v3934, 16
      %v3956 = vshll.u32 %v3934, 16
      %v3958 = vrot.slane %v3956, 1
      %v3959 = vor.u32 %v3954, %v3958
      %v3961 = vshll.u32 %v3935, 16
      %v3963 = vrot.slane %v3961, 1
      %v3964 = vsel %vm386, %v3959, %v3963
      %v3965 = vshrl.u32 %v3935, 16
      %v3967 = vor.u32 %v3965, %v3963
      %v3969 = vshll.u32 %v3936, 16
      %v3971 = vrot.slane %v3969, 1
      %v3972 = vsel %vm386, %v3967, %v3971
      %v3973 = vshrl.u32 %v3936, 16
      %v3975 = vor.u32 %v3973, %v3971
      %v3977 = vshll.u32 %v3937, 16
      %v3979 = vrot.slane %v3977, 1
      %v3980 = vsel %vm386, %v3975, %v3979
      %v3981 = vshrl.u32 %v3937, 16
      %v3983 = vor.u32 %v3981, %v3979
      %v3985 = vshll.u32 %v3938, 16
      %v3987 = vrot.slane %v3985, 1
      %v3988 = vsel %vm386, %v3983, %v3987
      %v3989 = vshrl.u32 %v3938, 16
      %v3991 = vor.u32 %v3989, %v3987
      %v3993 = vshll.u32 %v3939, 16
      %v3995 = vrot.slane %v3993, 1
      %v3996 = vsel %vm386, %v3991, %v3995
      %v3997 = vshrl.u32 %v3939, 16
      %v3999 = vor.u32 %v3997, %v3995
      %v4001 = vshll.u32 %v3940, 16
      %v4003 = vrot.slane %v4001, 1
      %v4004 = vsel %vm386, %v3999, %v4003
      %v4005 = vshrl.u32 %v3940, 16
      %v4007 = vor.u32 %v4005, %v4003
      %v4009 = vshll.u32 %v3941, 16
      %v4011 = vrot.slane %v4009, 1
      %v4012 = vsel %vm386, %v4007, %v4011
      %v4013 = vshrl.u32 %v3941, 16
      %v4015 = vor.u32 %v4013, %v4011
      %v4017 = vshll.u32 %v3942, 16
      %v4019 = vrot.slane %v4017, 1
      %v4020 = vsel %vm386, %v4015, %v4019
      %v4021 = vshrl.u32 %v3942, 16
      %v4023 = vor.u32 %v4021, %v4019
      %v4025 = vshll.u32 %v3943, 16
      %v4027 = vrot.slane %v4025, 1
      %v4028 = vsel %vm386, %v4023, %v4027
      %v4029 = vshrl.u32 %v3943, 16
      %v4031 = vor.u32 %v4029, %v4027
      %v4033 = vshll.u32 %v3944, 16
      %v4035 = vrot.slane %v4033, 1
      %v4036 = vsel %vm386, %v4031, %v4035
      %v4037 = vshrl.u32 %v3944, 16
      %v4039 = vor.u32 %v4037, %v4035
      %v4041 = vshll.u32 %v3945, 16
      %v4043 = vrot.slane %v4041, 1
      %v4044 = vsel %vm386, %v4039, %v4043
      %v4045 = vshrl.u32 %v3945, 16
      %v4047 = vor.u32 %v4045, %v4043
      %v4049 = vshll.u32 %v3946, 16
      %v4051 = vrot.slane %v4049, 1
      %v4052 = vsel %vm386, %v4047, %v4051
      %v4053 = vshrl.u32 %v3946, 16
      %v4055 = vor.u32 %v4053, %v4051
      %v4057 = vshll.u32 %v3947, 16
      %v4059 = vrot.slane %v4057, 1
      %v4060 = vsel %vm386, %v4055, %v4059
      %v4061 = vshrl.u32 %v3947, 16
      %v4063 = vor.u32 %v4061, %v4059
      %v4065 = vshll.u32 %v3948, 16
      %v4067 = vrot.slane %v4065, 1
      %v4068 = vsel %vm386, %v4063, %v4067
      %v4069 = vshrl.u32 %v3948, 16
      %v4071 = vor.u32 %v4069, %v4067
      %v4073 = vshll.u32 %v3949, 16
      %v4075 = vrot.slane %v4073, 1
      %v4076 = vsel %vm386, %v4071, %v4075
      %v4077 = vshrl.u32 %v3949, 16
      %v4079 = vor.u32 %v4077, %v4075
      %v4081 = vshll.u32 %v3950, 16
      %v4083 = vrot.slane %v4081, 1
      %v4084 = vsel %vm386, %v4079, %v4083
      %v4085 = vshrl.u32 %v3950, 16
      %v4087 = vor.u32 %v4085, %v4083
      %v4089 = vshll.u32 %v3951, 16
      %v4091 = vrot.slane %v4089, 1
      %v4092 = vsel %vm386, %v4087, %v4091
      %v4093 = vshrl.u32 %v3951, 16
      %v4095 = vor.u32 %v4093, %v4091
      %v4097 = vshll.u32 %v3952, 16
      %v4099 = vrot.slane %v4097, 1
      %v4100 = vsel %vm386, %v4095, %v4099
      %v4102 = vsel %vm535, %v3964, 0
      %v4105 = vsel %vm535, %v3972, 0
      %v4108 = vsel %vm535, %v3980, 0
      %v4111 = vsel %vm535, %v3988, 0
      %v4114 = vsel %vm535, %v3996, 0
      %v4117 = vsel %vm535, %v4004, 0
      %v4120 = vsel %vm535, %v4012, 0
      %v4123 = vsel %vm535, %v4020, 0
      %v4126 = vsel %vm535, %v4028, 0
      %v4129 = vsel %vm535, %v4036, 0
      %v4132 = vsel %vm535, %v4044, 0
      %v4135 = vsel %vm535, %v4052, 0
      %v4138 = vsel %vm535, %v4060, 0
      %v4141 = vsel %vm535, %v4068, 0
      %v4144 = vsel %vm535, %v4076, 0
      %v4147 = vsel %vm535, %v4084, 0
      %v4150 = vsel %vm535, %v4092, 0
      %v4153 = vsel %vm535, %v4100, 0
      %v4156 = vsel %vm590, %v3859, 0
      %4158 = vmatpush.bf16.msra.mxu0 0
      %4159 = vmatpush.bf16.msra.mxu0 0
      %4160 = vmatpush.bf16.msra.mxu0 0
      %4161 = vmatpush.bf16.msra.mxu0 0
      %4162 = vmatpush.bf16.msra.mxu0 0
      %4163 = vmatpush.bf16.msra.mxu0 0
      %4164 = vmatpush.bf16.msra.mxu0 0
      %4165 = vmatpush.bf16.msra.mxu0 %v4156
      %4166 = vmatmul.bf16.gmra.mxu0 %v4102
      %v4167 = vpop.f32.mrf.mxu0
      %v4168 = vadd.f32 0.0, %v4167
      %v4169 = vpop.f32.mrf.mxu0
      %v4170 = vadd.f32 0.0, %v4169
      %4171 = vmatmul.bf16.gmra.mxu0 %v4105
      %v4172 = vpop.f32.mrf.mxu0
      %v4173 = vadd.f32 0.0, %v4172
      %v4174 = vpop.f32.mrf.mxu0
      %v4175 = vadd.f32 0.0, %v4174
      %4176 = vmatmul.bf16.gmra.mxu0 %v4108
      %v4177 = vpop.f32.mrf.mxu0
      %v4178 = vadd.f32 0.0, %v4177
      %v4179 = vpop.f32.mrf.mxu0
      %v4180 = vadd.f32 0.0, %v4179
      %4181 = vmatmul.bf16.gmra.mxu0 %v4111
      %v4182 = vpop.f32.mrf.mxu0
      %v4183 = vadd.f32 0.0, %v4182
      %v4184 = vpop.f32.mrf.mxu0
      %v4185 = vadd.f32 0.0, %v4184
      %4186 = vmatmul.bf16.gmra.mxu0 %v4114
      %v4187 = vpop.f32.mrf.mxu0
      %v4188 = vadd.f32 0.0, %v4187
      %v4189 = vpop.f32.mrf.mxu0
      %v4190 = vadd.f32 0.0, %v4189
      %4191 = vmatmul.bf16.gmra.mxu0 %v4117
      %v4192 = vpop.f32.mrf.mxu0
      %v4193 = vadd.f32 0.0, %v4192
      %v4194 = vpop.f32.mrf.mxu0
      %v4195 = vadd.f32 0.0, %v4194
      %4196 = vmatmul.bf16.gmra.mxu0 %v4120
      %v4197 = vpop.f32.mrf.mxu0
      %v4198 = vadd.f32 0.0, %v4197
      %v4199 = vpop.f32.mrf.mxu0
      %v4200 = vadd.f32 0.0, %v4199
      %4201 = vmatmul.bf16.gmra.mxu0 %v4123
      %v4202 = vpop.f32.mrf.mxu0
      %v4203 = vadd.f32 0.0, %v4202
      %v4204 = vpop.f32.mrf.mxu0
      %v4205 = vadd.f32 0.0, %v4204
      %4206 = vmatmul.bf16.gmra.mxu0 %v4126
      %v4207 = vpop.f32.mrf.mxu0
      %v4208 = vadd.f32 0.0, %v4207
      %v4209 = vpop.f32.mrf.mxu0
      %v4210 = vadd.f32 0.0, %v4209
      %4211 = vmatmul.bf16.gmra.mxu0 %v4129
      %v4212 = vpop.f32.mrf.mxu0
      %v4213 = vadd.f32 0.0, %v4212
      %v4214 = vpop.f32.mrf.mxu0
      %v4215 = vadd.f32 0.0, %v4214
      %4216 = vmatmul.bf16.gmra.mxu0 %v4132
      %v4217 = vpop.f32.mrf.mxu0
      %v4218 = vadd.f32 0.0, %v4217
      %v4219 = vpop.f32.mrf.mxu0
      %v4220 = vadd.f32 0.0, %v4219
      %4221 = vmatmul.bf16.gmra.mxu0 %v4135
      %v4222 = vpop.f32.mrf.mxu0
      %v4223 = vadd.f32 0.0, %v4222
      %v4224 = vpop.f32.mrf.mxu0
      %v4225 = vadd.f32 0.0, %v4224
      %4226 = vmatmul.bf16.gmra.mxu0 %v4138
      %v4227 = vpop.f32.mrf.mxu0
      %v4228 = vadd.f32 0.0, %v4227
      %v4229 = vpop.f32.mrf.mxu0
      %v4230 = vadd.f32 0.0, %v4229
      %4231 = vmatmul.bf16.gmra.mxu0 %v4141
      %v4232 = vpop.f32.mrf.mxu0
      %v4233 = vadd.f32 0.0, %v4232
      %v4234 = vpop.f32.mrf.mxu0
      %v4235 = vadd.f32 0.0, %v4234
      %4236 = vmatmul.bf16.gmra.mxu0 %v4144
      %v4237 = vpop.f32.mrf.mxu0
      %v4238 = vadd.f32 0.0, %v4237
      %v4239 = vpop.f32.mrf.mxu0
      %v4240 = vadd.f32 0.0, %v4239
      %4241 = vmatmul.bf16.gmra.mxu0 %v4147
      %v4242 = vpop.f32.mrf.mxu0
      %v4243 = vadd.f32 0.0, %v4242
      %v4244 = vpop.f32.mrf.mxu0
      %v4245 = vadd.f32 0.0, %v4244
      %4246 = vmatmul.bf16.gmra.mxu0 %v4150
      %v4247 = vpop.f32.mrf.mxu0
      %v4248 = vadd.f32 0.0, %v4247
      %v4249 = vpop.f32.mrf.mxu0
      %v4250 = vadd.f32 0.0, %v4249
      %4251 = vmatmul.bf16.gmra.mxu0 %v4153
      %v4252 = vpop.f32.mrf.mxu0
      %v4253 = vadd.f32 0.0, %v4252
      %v4254 = vpop.f32.mrf.mxu0
      %v4255 = vadd.f32 0.0, %v4254
      %4256 = vdwg.mxu0
      %v4257 = vsel %vm535, %v3934, 0
      %v4259 = vsel %vm535, %v3935, 0
      %v4261 = vsel %vm535, %v3936, 0
      %v4263 = vsel %vm535, %v3937, 0
      %v4265 = vsel %vm535, %v3938, 0
      %v4267 = vsel %vm535, %v3939, 0
      %v4269 = vsel %vm535, %v3940, 0
      %v4271 = vsel %vm535, %v3941, 0
      %v4273 = vsel %vm535, %v3942, 0
      %v4275 = vsel %vm535, %v3943, 0
      %v4277 = vsel %vm535, %v3944, 0
      %v4279 = vsel %vm535, %v3945, 0
      %v4281 = vsel %vm535, %v3946, 0
      %v4283 = vsel %vm535, %v3947, 0
      %v4285 = vsel %vm535, %v3948, 0
      %v4287 = vsel %vm535, %v3949, 0
      %v4289 = vsel %vm535, %v3950, 0
      %v4291 = vsel %vm535, %v3951, 0
      %v4294 = vsel %vm590, %v3856, 0
      %4296 = vmatpush.bf16.msra.mxu0 0
      %4297 = vmatpush.bf16.msra.mxu0 0
      %4298 = vmatpush.bf16.msra.mxu0 0
      %4299 = vmatpush.bf16.msra.mxu0 0
      %4300 = vmatpush.bf16.msra.mxu0 0
      %4301 = vmatpush.bf16.msra.mxu0 0
      %4302 = vmatpush.bf16.msra.mxu0 0
      %4303 = vmatpush.bf16.msra.mxu0 %v4294
      %4304 = vmatmul.bf16.gmra.mxu0 %v4257
      %v4305 = vpop.f32.mrf.mxu0
      %v4306 = vadd.f32 %v4168, %v4305
      %v4307 = vpop.f32.mrf.mxu0
      %v4308 = vadd.f32 %v4170, %v4307
      %4309 = vmatmul.bf16.gmra.mxu0 %v4259
      %v4310 = vpop.f32.mrf.mxu0
      %v4311 = vadd.f32 %v4173, %v4310
      %v4312 = vpop.f32.mrf.mxu0
      %v4313 = vadd.f32 %v4175, %v4312
      %4314 = vmatmul.bf16.gmra.mxu0 %v4261
      %v4315 = vpop.f32.mrf.mxu0
      %v4316 = vadd.f32 %v4178, %v4315
      %v4317 = vpop.f32.mrf.mxu0
      %v4318 = vadd.f32 %v4180, %v4317
      %4319 = vmatmul.bf16.gmra.mxu0 %v4263
      %v4320 = vpop.f32.mrf.mxu0
      %v4321 = vadd.f32 %v4183, %v4320
      %v4322 = vpop.f32.mrf.mxu0
      %v4323 = vadd.f32 %v4185, %v4322
      %4324 = vmatmul.bf16.gmra.mxu0 %v4265
      %v4325 = vpop.f32.mrf.mxu0
      %v4326 = vadd.f32 %v4188, %v4325
      %v4327 = vpop.f32.mrf.mxu0
      %v4328 = vadd.f32 %v4190, %v4327
      %4329 = vmatmul.bf16.gmra.mxu0 %v4267
      %v4330 = vpop.f32.mrf.mxu0
      %v4331 = vadd.f32 %v4193, %v4330
      %v4332 = vpop.f32.mrf.mxu0
      %v4333 = vadd.f32 %v4195, %v4332
      %4334 = vmatmul.bf16.gmra.mxu0 %v4269
      %v4335 = vpop.f32.mrf.mxu0
      %v4336 = vadd.f32 %v4198, %v4335
      %v4337 = vpop.f32.mrf.mxu0
      %v4338 = vadd.f32 %v4200, %v4337
      %4339 = vmatmul.bf16.gmra.mxu0 %v4271
      %v4340 = vpop.f32.mrf.mxu0
      %v4341 = vadd.f32 %v4203, %v4340
      %v4342 = vpop.f32.mrf.mxu0
      %v4343 = vadd.f32 %v4205, %v4342
      %4344 = vmatmul.bf16.gmra.mxu0 %v4273
      %v4345 = vpop.f32.mrf.mxu0
      %v4346 = vadd.f32 %v4208, %v4345
      %v4347 = vpop.f32.mrf.mxu0
      %v4348 = vadd.f32 %v4210, %v4347
      %4349 = vmatmul.bf16.gmra.mxu0 %v4275
      %v4350 = vpop.f32.mrf.mxu0
      %v4351 = vadd.f32 %v4213, %v4350
      %v4352 = vpop.f32.mrf.mxu0
      %v4353 = vadd.f32 %v4215, %v4352
      %4354 = vmatmul.bf16.gmra.mxu0 %v4277
      %v4355 = vpop.f32.mrf.mxu0
      %v4356 = vadd.f32 %v4218, %v4355
      %v4357 = vpop.f32.mrf.mxu0
      %v4358 = vadd.f32 %v4220, %v4357
      %4359 = vmatmul.bf16.gmra.mxu0 %v4279
      %v4360 = vpop.f32.mrf.mxu0
      %v4361 = vadd.f32 %v4223, %v4360
      %v4362 = vpop.f32.mrf.mxu0
      %v4363 = vadd.f32 %v4225, %v4362
      %4364 = vmatmul.bf16.gmra.mxu0 %v4281
      %v4365 = vpop.f32.mrf.mxu0
      %v4366 = vadd.f32 %v4228, %v4365
      %v4367 = vpop.f32.mrf.mxu0
      %v4368 = vadd.f32 %v4230, %v4367
      %4369 = vmatmul.bf16.gmra.mxu0 %v4283
      %v4370 = vpop.f32.mrf.mxu0
      %v4371 = vadd.f32 %v4233, %v4370
      %v4372 = vpop.f32.mrf.mxu0
      %v4373 = vadd.f32 %v4235, %v4372
      %4374 = vmatmul.bf16.gmra.mxu0 %v4285
      %v4375 = vpop.f32.mrf.mxu0
      %v4376 = vadd.f32 %v4238, %v4375
      %v4377 = vpop.f32.mrf.mxu0
      %v4378 = vadd.f32 %v4240, %v4377
      %4379 = vmatmul.bf16.gmra.mxu0 %v4287
      %v4380 = vpop.f32.mrf.mxu0
      %v4381 = vadd.f32 %v4243, %v4380
      %v4382 = vpop.f32.mrf.mxu0
      %v4383 = vadd.f32 %v4245, %v4382
      %4384 = vmatmul.bf16.gmra.mxu0 %v4289
      %v4385 = vpop.f32.mrf.mxu0
      %v4386 = vadd.f32 %v4248, %v4385
      %v4387 = vpop.f32.mrf.mxu0
      %v4388 = vadd.f32 %v4250, %v4387
      %4389 = vmatmul.bf16.gmra.mxu0 %v4291
      %v4390 = vpop.f32.mrf.mxu0
      %v4391 = vadd.f32 %v4253, %v4390
      %v4392 = vpop.f32.mrf.mxu0
      %v4393 = vadd.f32 %v4255, %v4392
      %4394 = vdwg.mxu0
      %v4395 = vld [vmem:[#allocation2] sm:$0xe]
      %s4396 = scalar_lea.vmem %s3, 4
      %v4397 = vld [vmem:[%s4396] sm:$0x3]
      %v4399 = vunpack.c.l.b16 %v4395
      %v4400 = vpack.c.b16 %v3898, %v4399
      %v4401 = vrot.slane %v4400, 1
      %v4402 = vrot.slane %v3935, 1
      %v4403 = vsel %vm837, %v4401, %v4402
      %v4404 = vrot.slane %v3936, 1
      %v4405 = vsel %vm837, %v4402, %v4404
      %v4406 = vrot.slane %v3937, 1
      %v4407 = vsel %vm837, %v4404, %v4406
      %v4408 = vrot.slane %v3938, 1
      %v4409 = vsel %vm837, %v4406, %v4408
      %v4410 = vrot.slane %v3939, 1
      %v4411 = vsel %vm837, %v4408, %v4410
      %v4412 = vrot.slane %v3940, 1
      %v4413 = vsel %vm837, %v4410, %v4412
      %v4414 = vrot.slane %v3941, 1
      %v4415 = vsel %vm837, %v4412, %v4414
      %v4416 = vrot.slane %v3942, 1
      %v4417 = vsel %vm837, %v4414, %v4416
      %v4418 = vrot.slane %v3943, 1
      %v4419 = vsel %vm837, %v4416, %v4418
      %v4420 = vrot.slane %v3944, 1
      %v4421 = vsel %vm837, %v4418, %v4420
      %v4422 = vrot.slane %v3945, 1
      %v4423 = vsel %vm837, %v4420, %v4422
      %v4424 = vrot.slane %v3946, 1
      %v4425 = vsel %vm837, %v4422, %v4424
      %v4426 = vrot.slane %v3947, 1
      %v4427 = vsel %vm837, %v4424, %v4426
      %v4428 = vrot.slane %v3948, 1
      %v4429 = vsel %vm837, %v4426, %v4428
      %v4430 = vrot.slane %v3949, 1
      %v4431 = vsel %vm837, %v4428, %v4430
      %v4432 = vrot.slane %v3950, 1
      %v4433 = vsel %vm837, %v4430, %v4432
      %v4434 = vrot.slane %v3951, 1
      %v4435 = vsel %vm837, %v4432, %v4434
      %v4436 = vrot.slane %v3952, 1
      %v4437 = vsel %vm837, %v4434, %v4436
      %v4439 = vsel %vm535, %v4403, 0
      %v4442 = vsel %vm535, %v4405, 0
      %v4445 = vsel %vm535, %v4407, 0
      %v4448 = vsel %vm535, %v4409, 0
      %v4451 = vsel %vm535, %v4411, 0
      %v4454 = vsel %vm535, %v4413, 0
      %v4457 = vsel %vm535, %v4415, 0
      %v4460 = vsel %vm535, %v4417, 0
      %v4463 = vsel %vm535, %v4419, 0
      %v4466 = vsel %vm535, %v4421, 0
      %v4469 = vsel %vm535, %v4423, 0
      %v4472 = vsel %vm535, %v4425, 0
      %v4475 = vsel %vm535, %v4427, 0
      %v4478 = vsel %vm535, %v4429, 0
      %v4481 = vsel %vm535, %v4431, 0
      %v4484 = vsel %vm535, %v4433, 0
      %v4487 = vsel %vm535, %v4435, 0
      %v4490 = vsel %vm535, %v4437, 0
      %v4493 = vsel %vm590, %v4397, 0
      %4495 = vmatpush.bf16.msra.mxu0 0
      %4496 = vmatpush.bf16.msra.mxu0 0
      %4497 = vmatpush.bf16.msra.mxu0 0
      %4498 = vmatpush.bf16.msra.mxu0 0
      %4499 = vmatpush.bf16.msra.mxu0 0
      %4500 = vmatpush.bf16.msra.mxu0 0
      %4501 = vmatpush.bf16.msra.mxu0 0
      %4502 = vmatpush.bf16.msra.mxu0 %v4493
      %4503 = vmatmul.bf16.gmra.mxu0 %v4439
      %v4504 = vpop.f32.mrf.mxu0
      %v4505 = vadd.f32 0.0, %v4504
      %v4506 = vpop.f32.mrf.mxu0
      %v4507 = vadd.f32 0.0, %v4506
      %4508 = vmatmul.bf16.gmra.mxu0 %v4442
      %v4509 = vpop.f32.mrf.mxu0
      %v4510 = vadd.f32 0.0, %v4509
      %v4511 = vpop.f32.mrf.mxu0
      %v4512 = vadd.f32 0.0, %v4511
      %4513 = vmatmul.bf16.gmra.mxu0 %v4445
      %v4514 = vpop.f32.mrf.mxu0
      %v4515 = vadd.f32 0.0, %v4514
      %v4516 = vpop.f32.mrf.mxu0
      %v4517 = vadd.f32 0.0, %v4516
      %4518 = vmatmul.bf16.gmra.mxu0 %v4448
      %v4519 = vpop.f32.mrf.mxu0
      %v4520 = vadd.f32 0.0, %v4519
      %v4521 = vpop.f32.mrf.mxu0
      %v4522 = vadd.f32 0.0, %v4521
      %4523 = vmatmul.bf16.gmra.mxu0 %v4451
      %v4524 = vpop.f32.mrf.mxu0
      %v4525 = vadd.f32 0.0, %v4524
      %v4526 = vpop.f32.mrf.mxu0
      %v4527 = vadd.f32 0.0, %v4526
      %4528 = vmatmul.bf16.gmra.mxu0 %v4454
      %v4529 = vpop.f32.mrf.mxu0
      %v4530 = vadd.f32 0.0, %v4529
      %v4531 = vpop.f32.mrf.mxu0
      %v4532 = vadd.f32 0.0, %v4531
      %4533 = vmatmul.bf16.gmra.mxu0 %v4457
      %v4534 = vpop.f32.mrf.mxu0
      %v4535 = vadd.f32 0.0, %v4534
      %v4536 = vpop.f32.mrf.mxu0
      %v4537 = vadd.f32 0.0, %v4536
      %4538 = vmatmul.bf16.gmra.mxu0 %v4460
      %v4539 = vpop.f32.mrf.mxu0
      %v4540 = vadd.f32 0.0, %v4539
      %v4541 = vpop.f32.mrf.mxu0
      %v4542 = vadd.f32 0.0, %v4541
      %4543 = vmatmul.bf16.gmra.mxu0 %v4463
      %v4544 = vpop.f32.mrf.mxu0
      %v4545 = vadd.f32 0.0, %v4544
      %v4546 = vpop.f32.mrf.mxu0
      %v4547 = vadd.f32 0.0, %v4546
      %4548 = vmatmul.bf16.gmra.mxu0 %v4466
      %v4549 = vpop.f32.mrf.mxu0
      %v4550 = vadd.f32 0.0, %v4549
      %v4551 = vpop.f32.mrf.mxu0
      %v4552 = vadd.f32 0.0, %v4551
      %4553 = vmatmul.bf16.gmra.mxu0 %v4469
      %v4554 = vpop.f32.mrf.mxu0
      %v4555 = vadd.f32 0.0, %v4554
      %v4556 = vpop.f32.mrf.mxu0
      %v4557 = vadd.f32 0.0, %v4556
      %4558 = vmatmul.bf16.gmra.mxu0 %v4472
      %v4559 = vpop.f32.mrf.mxu0
      %v4560 = vadd.f32 0.0, %v4559
      %v4561 = vpop.f32.mrf.mxu0
      %v4562 = vadd.f32 0.0, %v4561
      %4563 = vmatmul.bf16.gmra.mxu0 %v4475
      %v4564 = vpop.f32.mrf.mxu0
      %v4565 = vadd.f32 0.0, %v4564
      %v4566 = vpop.f32.mrf.mxu0
      %v4567 = vadd.f32 0.0, %v4566
      %4568 = vmatmul.bf16.gmra.mxu0 %v4478
      %v4569 = vpop.f32.mrf.mxu0
      %v4570 = vadd.f32 0.0, %v4569
      %v4571 = vpop.f32.mrf.mxu0
      %v4572 = vadd.f32 0.0, %v4571
      %4573 = vmatmul.bf16.gmra.mxu0 %v4481
      %v4574 = vpop.f32.mrf.mxu0
      %v4575 = vadd.f32 0.0, %v4574
      %v4576 = vpop.f32.mrf.mxu0
      %v4577 = vadd.f32 0.0, %v4576
      %4578 = vmatmul.bf16.gmra.mxu0 %v4484
      %v4579 = vpop.f32.mrf.mxu0
      %v4580 = vadd.f32 0.0, %v4579
      %v4581 = vpop.f32.mrf.mxu0
      %v4582 = vadd.f32 0.0, %v4581
      %4583 = vmatmul.bf16.gmra.mxu0 %v4487
      %v4584 = vpop.f32.mrf.mxu0
      %v4585 = vadd.f32 0.0, %v4584
      %v4586 = vpop.f32.mrf.mxu0
      %v4587 = vadd.f32 0.0, %v4586
      %4588 = vmatmul.bf16.gmra.mxu0 %v4490
      %v4589 = vpop.f32.mrf.mxu0
      %v4590 = vadd.f32 0.0, %v4589
      %v4591 = vpop.f32.mrf.mxu0
      %v4592 = vadd.f32 0.0, %v4591
      %4593 = vdwg.mxu0
      %v4594 = vadd.f32 %v4306, %v4505
      %v4595 = vadd.f32 %v4308, %v4507
      %v4596 = vadd.f32 %v4311, %v4510
      %v4597 = vadd.f32 %v4313, %v4512
      %v4598 = vadd.f32 %v4316, %v4515
      %v4599 = vadd.f32 %v4318, %v4517
      %v4600 = vadd.f32 %v4321, %v4520
      %v4601 = vadd.f32 %v4323, %v4522
      %v4602 = vadd.f32 %v4326, %v4525
      %v4603 = vadd.f32 %v4328, %v4527
      %v4604 = vadd.f32 %v4331, %v4530
      %v4605 = vadd.f32 %v4333, %v4532
      %v4606 = vadd.f32 %v4336, %v4535
      %v4607 = vadd.f32 %v4338, %v4537
      %v4608 = vadd.f32 %v4341, %v4540
      %v4609 = vadd.f32 %v4343, %v4542
      %v4610 = vadd.f32 %v4346, %v4545
      %v4611 = vadd.f32 %v4348, %v4547
      %v4612 = vadd.f32 %v4351, %v4550
      %v4613 = vadd.f32 %v4353, %v4552
      %v4614 = vadd.f32 %v4356, %v4555
      %v4615 = vadd.f32 %v4358, %v4557
      %v4616 = vadd.f32 %v4361, %v4560
      %v4617 = vadd.f32 %v4363, %v4562
      %v4618 = vadd.f32 %v4366, %v4565
      %v4619 = vadd.f32 %v4368, %v4567
      %v4620 = vadd.f32 %v4371, %v4570
      %v4621 = vadd.f32 %v4373, %v4572
      %v4622 = vadd.f32 %v4376, %v4575
      %v4623 = vadd.f32 %v4378, %v4577
      %v4624 = vadd.f32 %v4381, %v4580
      %v4625 = vadd.f32 %v4383, %v4582
      %v4626 = vadd.f32 %v4386, %v4585
      %v4627 = vadd.f32 %v4388, %v4587
      %v4628 = vadd.f32 %v4391, %v4590
      %v4629 = vadd.f32 %v4393, %v4592
      %v4630 = vld [vmem:[#allocation2 + $0x8] sm:$0xe]
      %v4631 = vld [vmem:[#allocation2 + $0xc] sm:$0xf]
      %v4632 = vld [vmem:[#allocation2 + $0x10] sm:$0xf]
      %v4633 = vld [vmem:[#allocation2 + $0x14] sm:$0xf]
      %v4634 = vld [vmem:[#allocation2 + $0x18] sm:$0xf]
      %v4635 = vld [vmem:[#allocation2 + $0x1c] sm:$0xf]
      %v4636 = vld [vmem:[#allocation2 + $0x20] sm:$0xf]
      %v4637 = vld [vmem:[#allocation2 + $0x24] sm:$0xf]
      %v4638 = vld [vmem:[#allocation2 + $0x28] sm:$0xf]
      %v4639 = vld [vmem:[#allocation2 + $0x2c] sm:$0xf]
      %v4640 = vld [vmem:[#allocation2 + $0x30] sm:$0xf]
      %v4641 = vld [vmem:[#allocation2 + $0x34] sm:$0xf]
      %v4642 = vld [vmem:[#allocation2 + $0x38] sm:$0xf]
      %v4643 = vld [vmem:[#allocation2 + $0x3c] sm:$0xf]
      %v4644 = vld [vmem:[#allocation2 + $0x40] sm:$0xf]
      %v4645 = vld [vmem:[#allocation2 + $0x44] sm:$0xf]
      %v4646 = vld [vmem:[#allocation2 + $0x48] sm:$0xf]
      %v4647 = vld [vmem:[#allocation2 + $0x4c] sm:$0xf]
      %v4648 = vld [vmem:[#allocation2 + $0x50] sm:$0xf]
      %v4649 = vld [vmem:[#allocation2 + $0x54] sm:$0xf]
      %v4650 = vld [vmem:[#allocation2 + $0x58] sm:$0xf]
      %v4651 = vld [vmem:[#allocation2 + $0x5c] sm:$0xf]
      %v4652 = vld [vmem:[#allocation2 + $0x60] sm:$0xf]
      %v4653 = vld [vmem:[#allocation2 + $0x64] sm:$0xf]
      %v4654 = vld [vmem:[#allocation2 + $0x68] sm:$0xf]
      %v4655 = vld [vmem:[#allocation2 + $0x6c] sm:$0xf]
      %v4656 = vld [vmem:[#allocation2 + $0x70] sm:$0xf]
      %v4657 = vld [vmem:[#allocation2 + $0x74] sm:$0xf]
      %v4658 = vld [vmem:[#allocation2 + $0x78] sm:$0xf]
      %v4659 = vld [vmem:[#allocation2 + $0x7c] sm:$0xf]
      %v4660 = vld [vmem:[#allocation2 + $0x80] sm:$0xf]
      %v4661 = vld [vmem:[#allocation2 + $0x84] sm:$0xf]
      %v4662 = vld [vmem:[#allocation2 + $0x88] sm:$0xf]
      %v4663 = vld [vmem:[#allocation2 + $0x8c] sm:$0xf]
      %v4664 = vld [vmem:[#allocation2 + $0x90] sm:$0xf]
      %v4665 = vld [vmem:[#allocation2 + $0x94] sm:$0xf]
      %v4666 = vld [vmem:[#allocation2 + $0x98] sm:$0x1]
      %s4667 = scalar_lea.vmem %s3, 6
      %v4668 = vld [vmem:[%s4667] sm:$0x3]
      %v4706 = vunpack.c.l.b16 %v4630
      %v4707 = vunpack.c.l.b16 %v4631
      %v4708 = vunpack.c.l.b16 %v4632
      %v4709 = vunpack.c.l.b16 %v4633
      %v4710 = vunpack.c.l.b16 %v4634
      %v4711 = vunpack.c.l.b16 %v4635
      %v4712 = vunpack.c.l.b16 %v4636
      %v4713 = vunpack.c.l.b16 %v4637
      %v4714 = vunpack.c.l.b16 %v4638
      %v4715 = vunpack.c.l.b16 %v4639
      %v4716 = vunpack.c.l.b16 %v4640
      %v4717 = vunpack.c.l.b16 %v4641
      %v4718 = vunpack.c.l.b16 %v4642
      %v4719 = vunpack.c.l.b16 %v4643
      %v4720 = vunpack.c.l.b16 %v4644
      %v4721 = vunpack.c.l.b16 %v4645
      %v4722 = vunpack.c.l.b16 %v4646
      %v4723 = vunpack.c.l.b16 %v4647
      %v4724 = vunpack.c.l.b16 %v4648
      %v4725 = vunpack.c.l.b16 %v4649
      %v4726 = vunpack.c.l.b16 %v4650
      %v4727 = vunpack.c.l.b16 %v4651
      %v4728 = vunpack.c.l.b16 %v4652
      %v4729 = vunpack.c.l.b16 %v4653
      %v4730 = vunpack.c.l.b16 %v4654
      %v4731 = vunpack.c.l.b16 %v4655
      %v4732 = vunpack.c.l.b16 %v4656
      %v4733 = vunpack.c.l.b16 %v4657
      %v4734 = vunpack.c.l.b16 %v4658
      %v4735 = vunpack.c.l.b16 %v4659
      %v4736 = vunpack.c.l.b16 %v4660
      %v4737 = vunpack.c.l.b16 %v4661
      %v4738 = vunpack.c.l.b16 %v4662
      %v4739 = vunpack.c.l.b16 %v4663
      %v4740 = vunpack.c.l.b16 %v4664
      %v4741 = vunpack.c.l.b16 %v4665
      %v4742 = vunpack.c.l.b16 %v4666
      %v4743 = vpack.c.b16 %v4707, %v4706
      %v4744 = vpack.c.b16 %v4709, %v4708
      %v4745 = vpack.c.b16 %v4711, %v4710
      %v4746 = vpack.c.b16 %v4713, %v4712
      %v4747 = vpack.c.b16 %v4715, %v4714
      %v4748 = vpack.c.b16 %v4717, %v4716
      %v4749 = vpack.c.b16 %v4719, %v4718
      %v4750 = vpack.c.b16 %v4721, %v4720
      %v4751 = vpack.c.b16 %v4723, %v4722
      %v4752 = vpack.c.b16 %v4725, %v4724
      %v4753 = vpack.c.b16 %v4727, %v4726
      %v4754 = vpack.c.b16 %v4729, %v4728
      %v4755 = vpack.c.b16 %v4731, %v4730
      %v4756 = vpack.c.b16 %v4733, %v4732
      %v4757 = vpack.c.b16 %v4735, %v4734
      %v4758 = vpack.c.b16 %v4737, %v4736
      %v4759 = vpack.c.b16 %v4739, %v4738
      %v4760 = vpack.c.b16 %v4741, %v4740
      %v4761 = vpack.c.b16 %v4742, %v4742
      %v4762 = vrot.slane %v4743, 1
      %v4763 = vrot.slane %v4744, 1
      %v4764 = vsel %vm837, %v4762, %v4763
      %v4765 = vrot.slane %v4745, 1
      %v4766 = vsel %vm837, %v4763, %v4765
      %v4767 = vrot.slane %v4746, 1
      %v4768 = vsel %vm837, %v4765, %v4767
      %v4769 = vrot.slane %v4747, 1
      %v4770 = vsel %vm837, %v4767, %v4769
      %v4771 = vrot.slane %v4748, 1
      %v4772 = vsel %vm837, %v4769, %v4771
      %v4773 = vrot.slane %v4749, 1
      %v4774 = vsel %vm837, %v4771, %v4773
      %v4775 = vrot.slane %v4750, 1
      %v4776 = vsel %vm837, %v4773, %v4775
      %v4777 = vrot.slane %v4751, 1
      %v4778 = vsel %vm837, %v4775, %v4777
      %v4779 = vrot.slane %v4752, 1
      %v4780 = vsel %vm837, %v4777, %v4779
      %v4781 = vrot.slane %v4753, 1
      %v4782 = vsel %vm837, %v4779, %v4781
      %v4783 = vrot.slane %v4754, 1
      %v4784 = vsel %vm837, %v4781, %v4783
      %v4785 = vrot.slane %v4755, 1
      %v4786 = vsel %vm837, %v4783, %v4785
      %v4787 = vrot.slane %v4756, 1
      %v4788 = vsel %vm837, %v4785, %v4787
      %v4789 = vrot.slane %v4757, 1
      %v4790 = vsel %vm837, %v4787, %v4789
      %v4791 = vrot.slane %v4758, 1
      %v4792 = vsel %vm837, %v4789, %v4791
      %v4793 = vrot.slane %v4759, 1
      %v4794 = vsel %vm837, %v4791, %v4793
      %v4795 = vrot.slane %v4760, 1
      %v4796 = vsel %vm837, %v4793, %v4795
      %v4797 = vrot.slane %v4761, 1
      %v4798 = vsel %vm837, %v4795, %v4797
      %v4800 = vsel %vm535, %v4764, 0
      %v4803 = vsel %vm535, %v4766, 0
      %v4806 = vsel %vm535, %v4768, 0
      %v4809 = vsel %vm535, %v4770, 0
      %v4812 = vsel %vm535, %v4772, 0
      %v4815 = vsel %vm535, %v4774, 0
      %v4818 = vsel %vm535, %v4776, 0
      %v4821 = vsel %vm535, %v4778, 0
      %v4824 = vsel %vm535, %v4780, 0
      %v4827 = vsel %vm535, %v4782, 0
      %v4830 = vsel %vm535, %v4784, 0
      %v4833 = vsel %vm535, %v4786, 0
      %v4836 = vsel %vm535, %v4788, 0
      %v4839 = vsel %vm535, %v4790, 0
      %v4842 = vsel %vm535, %v4792, 0
      %v4845 = vsel %vm535, %v4794, 0
      %v4848 = vsel %vm535, %v4796, 0
      %v4851 = vsel %vm535, %v4798, 0
      %v4854 = vsel %vm590, %v4668, 0
      %4856 = vmatpush.bf16.msra.mxu0 0
      %4857 = vmatpush.bf16.msra.mxu0 0
      %4858 = vmatpush.bf16.msra.mxu0 0
      %4859 = vmatpush.bf16.msra.mxu0 0
      %4860 = vmatpush.bf16.msra.mxu0 0
      %4861 = vmatpush.bf16.msra.mxu0 0
      %4862 = vmatpush.bf16.msra.mxu0 0
      %4863 = vmatpush.bf16.msra.mxu0 %v4854
      %4864 = vmatmul.bf16.gmra.mxu0 %v4800
      %v4865 = vpop.f32.mrf.mxu0
      %v4866 = vadd.f32 0.0, %v4865
      %v4867 = vpop.f32.mrf.mxu0
      %v4868 = vadd.f32 0.0, %v4867
      %4869 = vmatmul.bf16.gmra.mxu0 %v4803
      %v4870 = vpop.f32.mrf.mxu0
      %v4871 = vadd.f32 0.0, %v4870
      %v4872 = vpop.f32.mrf.mxu0
      %v4873 = vadd.f32 0.0, %v4872
      %4874 = vmatmul.bf16.gmra.mxu0 %v4806
      %v4875 = vpop.f32.mrf.mxu0
      %v4876 = vadd.f32 0.0, %v4875
      %v4877 = vpop.f32.mrf.mxu0
      %v4878 = vadd.f32 0.0, %v4877
      %4879 = vmatmul.bf16.gmra.mxu0 %v4809
      %v4880 = vpop.f32.mrf.mxu0
      %v4881 = vadd.f32 0.0, %v4880
      %v4882 = vpop.f32.mrf.mxu0
      %v4883 = vadd.f32 0.0, %v4882
      %4884 = vmatmul.bf16.gmra.mxu0 %v4812
      %v4885 = vpop.f32.mrf.mxu0
      %v4886 = vadd.f32 0.0, %v4885
      %v4887 = vpop.f32.mrf.mxu0
      %v4888 = vadd.f32 0.0, %v4887
      %4889 = vmatmul.bf16.gmra.mxu0 %v4815
      %v4890 = vpop.f32.mrf.mxu0
      %v4891 = vadd.f32 0.0, %v4890
      %v4892 = vpop.f32.mrf.mxu0
      %v4893 = vadd.f32 0.0, %v4892
      %4894 = vmatmul.bf16.gmra.mxu0 %v4818
      %v4895 = vpop.f32.mrf.mxu0
      %v4896 = vadd.f32 0.0, %v4895
      %v4897 = vpop.f32.mrf.mxu0
      %v4898 = vadd.f32 0.0, %v4897
      %4899 = vmatmul.bf16.gmra.mxu0 %v4821
      %v4900 = vpop.f32.mrf.mxu0
      %v4901 = vadd.f32 0.0, %v4900
      %v4902 = vpop.f32.mrf.mxu0
      %v4903 = vadd.f32 0.0, %v4902
      %4904 = vmatmul.bf16.gmra.mxu0 %v4824
      %v4905 = vpop.f32.mrf.mxu0
      %v4906 = vadd.f32 0.0, %v4905
      %v4907 = vpop.f32.mrf.mxu0
      %v4908 = vadd.f32 0.0, %v4907
      %4909 = vmatmul.bf16.gmra.mxu0 %v4827
      %v4910 = vpop.f32.mrf.mxu0
      %v4911 = vadd.f32 0.0, %v4910
      %v4912 = vpop.f32.mrf.mxu0
      %v4913 = vadd.f32 0.0, %v4912
      %4914 = vmatmul.bf16.gmra.mxu0 %v4830
      %v4915 = vpop.f32.mrf.mxu0
      %v4916 = vadd.f32 0.0, %v4915
      %v4917 = vpop.f32.mrf.mxu0
      %v4918 = vadd.f32 0.0, %v4917
      %4919 = vmatmul.bf16.gmra.mxu0 %v4833
      %v4920 = vpop.f32.mrf.mxu0
      %v4921 = vadd.f32 0.0, %v4920
      %v4922 = vpop.f32.mrf.mxu0
      %v4923 = vadd.f32 0.0, %v4922
      %4924 = vmatmul.bf16.gmra.mxu0 %v4836
      %v4925 = vpop.f32.mrf.mxu0
      %v4926 = vadd.f32 0.0, %v4925
      %v4927 = vpop.f32.mrf.mxu0
      %v4928 = vadd.f32 0.0, %v4927
      %4929 = vmatmul.bf16.gmra.mxu0 %v4839
      %v4930 = vpop.f32.mrf.mxu0
      %v4931 = vadd.f32 0.0, %v4930
      %v4932 = vpop.f32.mrf.mxu0
      %v4933 = vadd.f32 0.0, %v4932
      %4934 = vmatmul.bf16.gmra.mxu0 %v4842
      %v4935 = vpop.f32.mrf.mxu0
      %v4936 = vadd.f32 0.0, %v4935
      %v4937 = vpop.f32.mrf.mxu0
      %v4938 = vadd.f32 0.0, %v4937
      %4939 = vmatmul.bf16.gmra.mxu0 %v4845
      %v4940 = vpop.f32.mrf.mxu0
      %v4941 = vadd.f32 0.0, %v4940
      %v4942 = vpop.f32.mrf.mxu0
      %v4943 = vadd.f32 0.0, %v4942
      %4944 = vmatmul.bf16.gmra.mxu0 %v4848
      %v4945 = vpop.f32.mrf.mxu0
      %v4946 = vadd.f32 0.0, %v4945
      %v4947 = vpop.f32.mrf.mxu0
      %v4948 = vadd.f32 0.0, %v4947
      %4949 = vmatmul.bf16.gmra.mxu0 %v4851
      %v4950 = vpop.f32.mrf.mxu0
      %v4951 = vadd.f32 0.0, %v4950
      %v4952 = vpop.f32.mrf.mxu0
      %v4953 = vadd.f32 0.0, %v4952
      %4954 = vdwg.mxu0
      %v4955 = vadd.f32 %v4594, %v4866
      %v4956 = vadd.f32 %v4595, %v4868
      %v4957 = vadd.f32 %v4596, %v4871
      %v4958 = vadd.f32 %v4597, %v4873
      %v4959 = vadd.f32 %v4598, %v4876
      %v4960 = vadd.f32 %v4599, %v4878
      %v4961 = vadd.f32 %v4600, %v4881
      %v4962 = vadd.f32 %v4601, %v4883
      %v4963 = vadd.f32 %v4602, %v4886
      %v4964 = vadd.f32 %v4603, %v4888
      %v4965 = vadd.f32 %v4604, %v4891
      %v4966 = vadd.f32 %v4605, %v4893
      %v4967 = vadd.f32 %v4606, %v4896
      %v4968 = vadd.f32 %v4607, %v4898
      %v4969 = vadd.f32 %v4608, %v4901
      %v4970 = vadd.f32 %v4609, %v4903
      %v4971 = vadd.f32 %v4610, %v4906
      %v4972 = vadd.f32 %v4611, %v4908
      %v4973 = vadd.f32 %v4612, %v4911
      %v4974 = vadd.f32 %v4613, %v4913
      %v4975 = vadd.f32 %v4614, %v4916
      %v4976 = vadd.f32 %v4615, %v4918
      %v4977 = vadd.f32 %v4616, %v4921
      %v4978 = vadd.f32 %v4617, %v4923
      %v4979 = vadd.f32 %v4618, %v4926
      %v4980 = vadd.f32 %v4619, %v4928
      %v4981 = vadd.f32 %v4620, %v4931
      %v4982 = vadd.f32 %v4621, %v4933
      %v4983 = vadd.f32 %v4622, %v4936
      %v4984 = vadd.f32 %v4623, %v4938
      %v4985 = vadd.f32 %v4624, %v4941
      %v4986 = vadd.f32 %v4625, %v4943
      %v4987 = vadd.f32 %v4626, %v4946
      %v4988 = vadd.f32 %v4627, %v4948
      %v4989 = vadd.f32 %v4628, %v4951
      %v4990 = vadd.f32 %v4629, %v4953
      %v4991 = vld [vmem:[#allocation2 + $0x98] sm:$0x3]
      %s4992 = scalar_lea.vmem %s3, 8
      %v4993 = vld [vmem:[%s4992] sm:$0x3]
      %v4995 = vunpack.c.l.b16 %v4991
      %v4996 = vpack.c.b16 %v4995, %v4995
      %v4998 = vshrl.u32 %v4743, 16
      %v5000 = vrot.slane %v4998, 1
      %v5001 = vshll.u32 %v4743, 16
      %v5003 = vrot.slane %v5001, 2
      %v5004 = vor.u32 %v5000, %v5003
      %v5006 = vshrl.u32 %v4744, 16
      %v5008 = vrot.slane %v5006, 1
      %v5009 = vshll.u32 %v4744, 16
      %v5011 = vrot.slane %v5009, 2
      %v5012 = vor.u32 %v5008, %v5011
      %v5013 = vsel %vm1434, %v5004, %v5012
      %v5015 = vshrl.u32 %v4745, 16
      %v5017 = vrot.slane %v5015, 1
      %v5018 = vshll.u32 %v4745, 16
      %v5020 = vrot.slane %v5018, 2
      %v5021 = vor.u32 %v5017, %v5020
      %v5022 = vsel %vm1434, %v5012, %v5021
      %v5024 = vshrl.u32 %v4746, 16
      %v5026 = vrot.slane %v5024, 1
      %v5027 = vshll.u32 %v4746, 16
      %v5029 = vrot.slane %v5027, 2
      %v5030 = vor.u32 %v5026, %v5029
      %v5031 = vsel %vm1434, %v5021, %v5030
      %v5033 = vshrl.u32 %v4747, 16
      %v5035 = vrot.slane %v5033, 1
      %v5036 = vshll.u32 %v4747, 16
      %v5038 = vrot.slane %v5036, 2
      %v5039 = vor.u32 %v5035, %v5038
      %v5040 = vsel %vm1434, %v5030, %v5039
      %v5042 = vshrl.u32 %v4748, 16
      %v5044 = vrot.slane %v5042, 1
      %v5045 = vshll.u32 %v4748, 16
      %v5047 = vrot.slane %v5045, 2
      %v5048 = vor.u32 %v5044, %v5047
      %v5049 = vsel %vm1434, %v5039, %v5048
      %v5051 = vshrl.u32 %v4749, 16
      %v5053 = vrot.slane %v5051, 1
      %v5054 = vshll.u32 %v4749, 16
      %v5056 = vrot.slane %v5054, 2
      %v5057 = vor.u32 %v5053, %v5056
      %v5058 = vsel %vm1434, %v5048, %v5057
      %v5060 = vshrl.u32 %v4750, 16
      %v5062 = vrot.slane %v5060, 1
      %v5063 = vshll.u32 %v4750, 16
      %v5065 = vrot.slane %v5063, 2
      %v5066 = vor.u32 %v5062, %v5065
      %v5067 = vsel %vm1434, %v5057, %v5066
      %v5069 = vshrl.u32 %v4751, 16
      %v5071 = vrot.slane %v5069, 1
      %v5072 = vshll.u32 %v4751, 16
      %v5074 = vrot.slane %v5072, 2
      %v5075 = vor.u32 %v5071, %v5074
      %v5076 = vsel %vm1434, %v5066, %v5075
      %v5078 = vshrl.u32 %v4752, 16
      %v5080 = vrot.slane %v5078, 1
      %v5081 = vshll.u32 %v4752, 16
      %v5083 = vrot.slane %v5081, 2
      %v5084 = vor.u32 %v5080, %v5083
      %v5085 = vsel %vm1434, %v5075, %v5084
      %v5087 = vshrl.u32 %v4753, 16
      %v5089 = vrot.slane %v5087, 1
      %v5090 = vshll.u32 %v4753, 16
      %v5092 = vrot.slane %v5090, 2
      %v5093 = vor.u32 %v5089, %v5092
      %v5094 = vsel %vm1434, %v5084, %v5093
      %v5096 = vshrl.u32 %v4754, 16
      %v5098 = vrot.slane %v5096, 1
      %v5099 = vshll.u32 %v4754, 16
      %v5101 = vrot.slane %v5099, 2
      %v5102 = vor.u32 %v5098, %v5101
      %v5103 = vsel %vm1434, %v5093, %v5102
      %v5105 = vshrl.u32 %v4755, 16
      %v5107 = vrot.slane %v5105, 1
      %v5108 = vshll.u32 %v4755, 16
      %v5110 = vrot.slane %v5108, 2
      %v5111 = vor.u32 %v5107, %v5110
      %v5112 = vsel %vm1434, %v5102, %v5111
      %v5114 = vshrl.u32 %v4756, 16
      %v5116 = vrot.slane %v5114, 1
      %v5117 = vshll.u32 %v4756, 16
      %v5119 = vrot.slane %v5117, 2
      %v5120 = vor.u32 %v5116, %v5119
      %v5121 = vsel %vm1434, %v5111, %v5120
      %v5123 = vshrl.u32 %v4757, 16
      %v5125 = vrot.slane %v5123, 1
      %v5126 = vshll.u32 %v4757, 16
      %v5128 = vrot.slane %v5126, 2
      %v5129 = vor.u32 %v5125, %v5128
      %v5130 = vsel %vm1434, %v5120, %v5129
      %v5132 = vshrl.u32 %v4758, 16
      %v5134 = vrot.slane %v5132, 1
      %v5135 = vshll.u32 %v4758, 16
      %v5137 = vrot.slane %v5135, 2
      %v5138 = vor.u32 %v5134, %v5137
      %v5139 = vsel %vm1434, %v5129, %v5138
      %v5141 = vshrl.u32 %v4759, 16
      %v5143 = vrot.slane %v5141, 1
      %v5144 = vshll.u32 %v4759, 16
      %v5146 = vrot.slane %v5144, 2
      %v5147 = vor.u32 %v5143, %v5146
      %v5148 = vsel %vm1434, %v5138, %v5147
      %v5150 = vshrl.u32 %v4760, 16
      %v5152 = vrot.slane %v5150, 1
      %v5153 = vshll.u32 %v4760, 16
      %v5155 = vrot.slane %v5153, 2
      %v5156 = vor.u32 %v5152, %v5155
      %v5157 = vsel %vm1434, %v5147, %v5156
      %v5159 = vshrl.u32 %v4996, 16
      %v5161 = vrot.slane %v5159, 1
      %v5162 = vshll.u32 %v4996, 16
      %v5164 = vrot.slane %v5162, 2
      %v5165 = vor.u32 %v5161, %v5164
      %v5166 = vsel %vm1434, %v5156, %v5165
      %v5168 = vsel %vm535, %v5013, 0
      %v5171 = vsel %vm535, %v5022, 0
      %v5174 = vsel %vm535, %v5031, 0
      %v5177 = vsel %vm535, %v5040, 0
      %v5180 = vsel %vm535, %v5049, 0
      %v5183 = vsel %vm535, %v5058, 0
      %v5186 = vsel %vm535, %v5067, 0
      %v5189 = vsel %vm535, %v5076, 0
      %v5192 = vsel %vm535, %v5085, 0
      %v5195 = vsel %vm535, %v5094, 0
      %v5198 = vsel %vm535, %v5103, 0
      %v5201 = vsel %vm535, %v5112, 0
      %v5204 = vsel %vm535, %v5121, 0
      %v5207 = vsel %vm535, %v5130, 0
      %v5210 = vsel %vm535, %v5139, 0
      %v5213 = vsel %vm535, %v5148, 0
      %v5216 = vsel %vm535, %v5157, 0
      %v5219 = vsel %vm535, %v5166, 0
      %v5222 = vsel %vm590, %v4993, 0
      %5224 = vmatpush.bf16.msra.mxu0 0
      %5225 = vmatpush.bf16.msra.mxu0 0
      %5226 = vmatpush.bf16.msra.mxu0 0
      %5227 = vmatpush.bf16.msra.mxu0 0
      %5228 = vmatpush.bf16.msra.mxu0 0
      %5229 = vmatpush.bf16.msra.mxu0 0
      %5230 = vmatpush.bf16.msra.mxu0 0
      %5231 = vmatpush.bf16.msra.mxu0 %v5222
      %5232 = vmatmul.bf16.gmra.mxu0 %v5168
      %v5233 = vpop.f32.mrf.mxu0
      %v5234 = vadd.f32 0.0, %v5233
      %v5235 = vpop.f32.mrf.mxu0
      %v5236 = vadd.f32 0.0, %v5235
      %5237 = vmatmul.bf16.gmra.mxu0 %v5171
      %v5238 = vpop.f32.mrf.mxu0
      %v5239 = vadd.f32 0.0, %v5238
      %v5240 = vpop.f32.mrf.mxu0
      %v5241 = vadd.f32 0.0, %v5240
      %5242 = vmatmul.bf16.gmra.mxu0 %v5174
      %v5243 = vpop.f32.mrf.mxu0
      %v5244 = vadd.f32 0.0, %v5243
      %v5245 = vpop.f32.mrf.mxu0
      %v5246 = vadd.f32 0.0, %v5245
      %5247 = vmatmul.bf16.gmra.mxu0 %v5177
      %v5248 = vpop.f32.mrf.mxu0
      %v5249 = vadd.f32 0.0, %v5248
      %v5250 = vpop.f32.mrf.mxu0
      %v5251 = vadd.f32 0.0, %v5250
      %5252 = vmatmul.bf16.gmra.mxu0 %v5180
      %v5253 = vpop.f32.mrf.mxu0
      %v5254 = vadd.f32 0.0, %v5253
      %v5255 = vpop.f32.mrf.mxu0
      %v5256 = vadd.f32 0.0, %v5255
      %5257 = vmatmul.bf16.gmra.mxu0 %v5183
      %v5258 = vpop.f32.mrf.mxu0
      %v5259 = vadd.f32 0.0, %v5258
      %v5260 = vpop.f32.mrf.mxu0
      %v5261 = vadd.f32 0.0, %v5260
      %5262 = vmatmul.bf16.gmra.mxu0 %v5186
      %v5263 = vpop.f32.mrf.mxu0
      %v5264 = vadd.f32 0.0, %v5263
      %v5265 = vpop.f32.mrf.mxu0
      %v5266 = vadd.f32 0.0, %v5265
      %5267 = vmatmul.bf16.gmra.mxu0 %v5189
      %v5268 = vpop.f32.mrf.mxu0
      %v5269 = vadd.f32 0.0, %v5268
      %v5270 = vpop.f32.mrf.mxu0
      %v5271 = vadd.f32 0.0, %v5270
      %5272 = vmatmul.bf16.gmra.mxu0 %v5192
      %v5273 = vpop.f32.mrf.mxu0
      %v5274 = vadd.f32 0.0, %v5273
      %v5275 = vpop.f32.mrf.mxu0
      %v5276 = vadd.f32 0.0, %v5275
      %5277 = vmatmul.bf16.gmra.mxu0 %v5195
      %v5278 = vpop.f32.mrf.mxu0
      %v5279 = vadd.f32 0.0, %v5278
      %v5280 = vpop.f32.mrf.mxu0
      %v5281 = vadd.f32 0.0, %v5280
      %5282 = vmatmul.bf16.gmra.mxu0 %v5198
      %v5283 = vpop.f32.mrf.mxu0
      %v5284 = vadd.f32 0.0, %v5283
      %v5285 = vpop.f32.mrf.mxu0
      %v5286 = vadd.f32 0.0, %v5285
      %5287 = vmatmul.bf16.gmra.mxu0 %v5201
      %v5288 = vpop.f32.mrf.mxu0
      %v5289 = vadd.f32 0.0, %v5288
      %v5290 = vpop.f32.mrf.mxu0
      %v5291 = vadd.f32 0.0, %v5290
      %5292 = vmatmul.bf16.gmra.mxu0 %v5204
      %v5293 = vpop.f32.mrf.mxu0
      %v5294 = vadd.f32 0.0, %v5293
      %v5295 = vpop.f32.mrf.mxu0
      %v5296 = vadd.f32 0.0, %v5295
      %5297 = vmatmul.bf16.gmra.mxu0 %v5207
      %v5298 = vpop.f32.mrf.mxu0
      %v5299 = vadd.f32 0.0, %v5298
      %v5300 = vpop.f32.mrf.mxu0
      %v5301 = vadd.f32 0.0, %v5300
      %5302 = vmatmul.bf16.gmra.mxu0 %v5210
      %v5303 = vpop.f32.mrf.mxu0
      %v5304 = vadd.f32 0.0, %v5303
      %v5305 = vpop.f32.mrf.mxu0
      %v5306 = vadd.f32 0.0, %v5305
      %5307 = vmatmul.bf16.gmra.mxu0 %v5213
      %v5308 = vpop.f32.mrf.mxu0
      %v5309 = vadd.f32 0.0, %v5308
      %v5310 = vpop.f32.mrf.mxu0
      %v5311 = vadd.f32 0.0, %v5310
      %5312 = vmatmul.bf16.gmra.mxu0 %v5216
      %v5313 = vpop.f32.mrf.mxu0
      %v5314 = vadd.f32 0.0, %v5313
      %v5315 = vpop.f32.mrf.mxu0
      %v5316 = vadd.f32 0.0, %v5315
      %5317 = vmatmul.bf16.gmra.mxu0 %v5219
      %v5318 = vpop.f32.mrf.mxu0
      %v5319 = vadd.f32 0.0, %v5318
      %v5320 = vpop.f32.mrf.mxu0
      %v5321 = vadd.f32 0.0, %v5320
      %5322 = vdwg.mxu0
      %v5323 = vadd.f32 %v4955, %v5234
      %v5324 = vadd.f32 %v4956, %v5236
      %v5325 = vadd.f32 %v4957, %v5239
      %v5326 = vadd.f32 %v4958, %v5241
      %v5327 = vadd.f32 %v4959, %v5244
      %v5328 = vadd.f32 %v4960, %v5246
      %v5329 = vadd.f32 %v4961, %v5249
      %v5330 = vadd.f32 %v4962, %v5251
      %v5331 = vadd.f32 %v4963, %v5254
      %v5332 = vadd.f32 %v4964, %v5256
      %v5333 = vadd.f32 %v4965, %v5259
      %v5334 = vadd.f32 %v4966, %v5261
      %v5335 = vadd.f32 %v4967, %v5264
      %v5336 = vadd.f32 %v4968, %v5266
      %v5337 = vadd.f32 %v4969, %v5269
      %v5338 = vadd.f32 %v4970, %v5271
      %v5339 = vadd.f32 %v4971, %v5274
      %v5340 = vadd.f32 %v4972, %v5276
      %v5341 = vadd.f32 %v4973, %v5279
      %v5342 = vadd.f32 %v4974, %v5281
      %v5343 = vadd.f32 %v4975, %v5284
      %v5344 = vadd.f32 %v4976, %v5286
      %v5345 = vadd.f32 %v4977, %v5289
      %v5346 = vadd.f32 %v4978, %v5291
      %v5347 = vadd.f32 %v4979, %v5294
      %v5348 = vadd.f32 %v4980, %v5296
      %v5349 = vadd.f32 %v4981, %v5299
      %v5350 = vadd.f32 %v4982, %v5301
      %v5351 = vadd.f32 %v4983, %v5304
      %v5352 = vadd.f32 %v4984, %v5306
      %v5353 = vadd.f32 %v4985, %v5309
      %v5354 = vadd.f32 %v4986, %v5311
      %v5355 = vadd.f32 %v4987, %v5314
      %v5356 = vadd.f32 %v4988, %v5316
      %v5357 = vadd.f32 %v4989, %v5319
      %v5358 = vadd.f32 %v4990, %v5321
      %v5359 = vld [vmem:[#allocation2 + $0x8] sm:$0xc]
      %s5360 = scalar_lea.vmem %s3, 10
      %v5361 = vld [vmem:[%s5360] sm:$0x3]
      %v5363 = vunpack.c.l.b16 %v5359
      %v5364 = vpack.c.b16 %v4707, %v5363
      %v5365 = vrot.slane %v5364, 2
      %v5366 = vrot.slane %v4744, 2
      %v5367 = vsel %vm1803, %v5365, %v5366
      %v5368 = vrot.slane %v4745, 2
      %v5369 = vsel %vm1803, %v5366, %v5368
      %v5370 = vrot.slane %v4746, 2
      %v5371 = vsel %vm1803, %v5368, %v5370
      %v5372 = vrot.slane %v4747, 2
      %v5373 = vsel %vm1803, %v5370, %v5372
      %v5374 = vrot.slane %v4748, 2
      %v5375 = vsel %vm1803, %v5372, %v5374
      %v5376 = vrot.slane %v4749, 2
      %v5377 = vsel %vm1803, %v5374, %v5376
      %v5378 = vrot.slane %v4750, 2
      %v5379 = vsel %vm1803, %v5376, %v5378
      %v5380 = vrot.slane %v4751, 2
      %v5381 = vsel %vm1803, %v5378, %v5380
      %v5382 = vrot.slane %v4752, 2
      %v5383 = vsel %vm1803, %v5380, %v5382
      %v5384 = vrot.slane %v4753, 2
      %v5385 = vsel %vm1803, %v5382, %v5384
      %v5386 = vrot.slane %v4754, 2
      %v5387 = vsel %vm1803, %v5384, %v5386
      %v5388 = vrot.slane %v4755, 2
      %v5389 = vsel %vm1803, %v5386, %v5388
      %v5390 = vrot.slane %v4756, 2
      %v5391 = vsel %vm1803, %v5388, %v5390
      %v5392 = vrot.slane %v4757, 2
      %v5393 = vsel %vm1803, %v5390, %v5392
      %v5394 = vrot.slane %v4758, 2
      %v5395 = vsel %vm1803, %v5392, %v5394
      %v5396 = vrot.slane %v4759, 2
      %v5397 = vsel %vm1803, %v5394, %v5396
      %v5398 = vrot.slane %v4760, 2
      %v5399 = vsel %vm1803, %v5396, %v5398
      %v5400 = vrot.slane %v4996, 2
      %v5401 = vsel %vm1803, %v5398, %v5400
      %v5403 = vsel %vm535, %v5367, 0
      %v5406 = vsel %vm535, %v5369, 0
      %v5409 = vsel %vm535, %v5371, 0
      %v5412 = vsel %vm535, %v5373, 0
      %v5415 = vsel %vm535, %v5375, 0
      %v5418 = vsel %vm535, %v5377, 0
      %v5421 = vsel %vm535, %v5379, 0
      %v5424 = vsel %vm535, %v5381, 0
      %v5427 = vsel %vm535, %v5383, 0
      %v5430 = vsel %vm535, %v5385, 0
      %v5433 = vsel %vm535, %v5387, 0
      %v5436 = vsel %vm535, %v5389, 0
      %v5439 = vsel %vm535, %v5391, 0
      %v5442 = vsel %vm535, %v5393, 0
      %v5445 = vsel %vm535, %v5395, 0
      %v5448 = vsel %vm535, %v5397, 0
      %v5451 = vsel %vm535, %v5399, 0
      %v5454 = vsel %vm535, %v5401, 0
      %v5457 = vsel %vm590, %v5361, 0
      %5459 = vmatpush.bf16.msra.mxu0 0
      %5460 = vmatpush.bf16.msra.mxu0 0
      %5461 = vmatpush.bf16.msra.mxu0 0
      %5462 = vmatpush.bf16.msra.mxu0 0
      %5463 = vmatpush.bf16.msra.mxu0 0
      %5464 = vmatpush.bf16.msra.mxu0 0
      %5465 = vmatpush.bf16.msra.mxu0 0
      %5466 = vmatpush.bf16.msra.mxu0 %v5457
      %5467 = vmatmul.bf16.gmra.mxu0 %v5403
      %v5468 = vpop.f32.mrf.mxu0
      %v5469 = vadd.f32 0.0, %v5468
      %v5470 = vpop.f32.mrf.mxu0
      %v5471 = vadd.f32 0.0, %v5470
      %5472 = vmatmul.bf16.gmra.mxu0 %v5406
      %v5473 = vpop.f32.mrf.mxu0
      %v5474 = vadd.f32 0.0, %v5473
      %v5475 = vpop.f32.mrf.mxu0
      %v5476 = vadd.f32 0.0, %v5475
      %5477 = vmatmul.bf16.gmra.mxu0 %v5409
      %v5478 = vpop.f32.mrf.mxu0
      %v5479 = vadd.f32 0.0, %v5478
      %v5480 = vpop.f32.mrf.mxu0
      %v5481 = vadd.f32 0.0, %v5480
      %5482 = vmatmul.bf16.gmra.mxu0 %v5412
      %v5483 = vpop.f32.mrf.mxu0
      %v5484 = vadd.f32 0.0, %v5483
      %v5485 = vpop.f32.mrf.mxu0
      %v5486 = vadd.f32 0.0, %v5485
      %5487 = vmatmul.bf16.gmra.mxu0 %v5415
      %v5488 = vpop.f32.mrf.mxu0
      %v5489 = vadd.f32 0.0, %v5488
      %v5490 = vpop.f32.mrf.mxu0
      %v5491 = vadd.f32 0.0, %v5490
      %5492 = vmatmul.bf16.gmra.mxu0 %v5418
      %v5493 = vpop.f32.mrf.mxu0
      %v5494 = vadd.f32 0.0, %v5493
      %v5495 = vpop.f32.mrf.mxu0
      %v5496 = vadd.f32 0.0, %v5495
      %5497 = vmatmul.bf16.gmra.mxu0 %v5421
      %v5498 = vpop.f32.mrf.mxu0
      %v5499 = vadd.f32 0.0, %v5498
      %v5500 = vpop.f32.mrf.mxu0
      %v5501 = vadd.f32 0.0, %v5500
      %5502 = vmatmul.bf16.gmra.mxu0 %v5424
      %v5503 = vpop.f32.mrf.mxu0
      %v5504 = vadd.f32 0.0, %v5503
      %v5505 = vpop.f32.mrf.mxu0
      %v5506 = vadd.f32 0.0, %v5505
      %5507 = vmatmul.bf16.gmra.mxu0 %v5427
      %v5508 = vpop.f32.mrf.mxu0
      %v5509 = vadd.f32 0.0, %v5508
      %v5510 = vpop.f32.mrf.mxu0
      %v5511 = vadd.f32 0.0, %v5510
      %5512 = vmatmul.bf16.gmra.mxu0 %v5430
      %v5513 = vpop.f32.mrf.mxu0
      %v5514 = vadd.f32 0.0, %v5513
      %v5515 = vpop.f32.mrf.mxu0
      %v5516 = vadd.f32 0.0, %v5515
      %5517 = vmatmul.bf16.gmra.mxu0 %v5433
      %v5518 = vpop.f32.mrf.mxu0
      %v5519 = vadd.f32 0.0, %v5518
      %v5520 = vpop.f32.mrf.mxu0
      %v5521 = vadd.f32 0.0, %v5520
      %5522 = vmatmul.bf16.gmra.mxu0 %v5436
      %v5523 = vpop.f32.mrf.mxu0
      %v5524 = vadd.f32 0.0, %v5523
      %v5525 = vpop.f32.mrf.mxu0
      %v5526 = vadd.f32 0.0, %v5525
      %5527 = vmatmul.bf16.gmra.mxu0 %v5439
      %v5528 = vpop.f32.mrf.mxu0
      %v5529 = vadd.f32 0.0, %v5528
      %v5530 = vpop.f32.mrf.mxu0
      %v5531 = vadd.f32 0.0, %v5530
      %5532 = vmatmul.bf16.gmra.mxu0 %v5442
      %v5533 = vpop.f32.mrf.mxu0
      %v5534 = vadd.f32 0.0, %v5533
      %v5535 = vpop.f32.mrf.mxu0
      %v5536 = vadd.f32 0.0, %v5535
      %5537 = vmatmul.bf16.gmra.mxu0 %v5445
      %v5538 = vpop.f32.mrf.mxu0
      %v5539 = vadd.f32 0.0, %v5538
      %v5540 = vpop.f32.mrf.mxu0
      %v5541 = vadd.f32 0.0, %v5540
      %5542 = vmatmul.bf16.gmra.mxu0 %v5448
      %v5543 = vpop.f32.mrf.mxu0
      %v5544 = vadd.f32 0.0, %v5543
      %v5545 = vpop.f32.mrf.mxu0
      %v5546 = vadd.f32 0.0, %v5545
      %5547 = vmatmul.bf16.gmra.mxu0 %v5451
      %v5548 = vpop.f32.mrf.mxu0
      %v5549 = vadd.f32 0.0, %v5548
      %v5550 = vpop.f32.mrf.mxu0
      %v5551 = vadd.f32 0.0, %v5550
      %5552 = vmatmul.bf16.gmra.mxu0 %v5454
      %v5553 = vpop.f32.mrf.mxu0
      %v5554 = vadd.f32 0.0, %v5553
      %v5555 = vpop.f32.mrf.mxu0
      %v5556 = vadd.f32 0.0, %v5555
      %5557 = vdwg.mxu0
      %v5558 = vadd.f32 %v5323, %v5469
      %v5559 = vadd.f32 %v5324, %v5471
      %v5560 = vadd.f32 %v5325, %v5474
      %v5561 = vadd.f32 %v5326, %v5476
      %v5562 = vadd.f32 %v5327, %v5479
      %v5563 = vadd.f32 %v5328, %v5481
      %v5564 = vadd.f32 %v5329, %v5484
      %v5565 = vadd.f32 %v5330, %v5486
      %v5566 = vadd.f32 %v5331, %v5489
      %v5567 = vadd.f32 %v5332, %v5491
      %v5568 = vadd.f32 %v5333, %v5494
      %v5569 = vadd.f32 %v5334, %v5496
      %v5570 = vadd.f32 %v5335, %v5499
      %v5571 = vadd.f32 %v5336, %v5501
      %v5572 = vadd.f32 %v5337, %v5504
      %v5573 = vadd.f32 %v5338, %v5506
      %v5574 = vadd.f32 %v5339, %v5509
      %v5575 = vadd.f32 %v5340, %v5511
      %v5576 = vadd.f32 %v5341, %v5514
      %v5577 = vadd.f32 %v5342, %v5516
      %v5578 = vadd.f32 %v5343, %v5519
      %v5579 = vadd.f32 %v5344, %v5521
      %v5580 = vadd.f32 %v5345, %v5524
      %v5581 = vadd.f32 %v5346, %v5526
      %v5582 = vadd.f32 %v5347, %v5529
      %v5583 = vadd.f32 %v5348, %v5531
      %v5584 = vadd.f32 %v5349, %v5534
      %v5585 = vadd.f32 %v5350, %v5536
      %v5586 = vadd.f32 %v5351, %v5539
      %v5587 = vadd.f32 %v5352, %v5541
      %v5588 = vadd.f32 %v5353, %v5544
      %v5589 = vadd.f32 %v5354, %v5546
      %v5590 = vadd.f32 %v5355, %v5549
      %v5591 = vadd.f32 %v5356, %v5551
      %v5592 = vadd.f32 %v5357, %v5554
      %v5593 = vadd.f32 %v5358, %v5556
      %v5594 = vld [vmem:[#allocation2 + $0x10] sm:$0xc]
      %v5595 = vld [vmem:[#allocation2 + $0x14] sm:$0xf]
      %v5596 = vld [vmem:[#allocation2 + $0x18] sm:$0xf]
      %v5597 = vld [vmem:[#allocation2 + $0x1c] sm:$0xf]
      %v5598 = vld [vmem:[#allocation2 + $0x20] sm:$0xf]
      %v5599 = vld [vmem:[#allocation2 + $0x24] sm:$0xf]
      %v5600 = vld [vmem:[#allocation2 + $0x28] sm:$0xf]
      %v5601 = vld [vmem:[#allocation2 + $0x2c] sm:$0xf]
      %v5602 = vld [vmem:[#allocation2 + $0x30] sm:$0xf]
      %v5603 = vld [vmem:[#allocation2 + $0x34] sm:$0xf]
      %v5604 = vld [vmem:[#allocation2 + $0x38] sm:$0xf]
      %v5605 = vld [vmem:[#allocation2 + $0x3c] sm:$0xf]
      %v5606 = vld [vmem:[#allocation2 + $0x40] sm:$0xf]
      %v5607 = vld [vmem:[#allocation2 + $0x44] sm:$0xf]
      %v5608 = vld [vmem:[#allocation2 + $0x48] sm:$0xf]
      %v5609 = vld [vmem:[#allocation2 + $0x4c] sm:$0xf]
      %v5610 = vld [vmem:[#allocation2 + $0x50] sm:$0xf]
      %v5611 = vld [vmem:[#allocation2 + $0x54] sm:$0xf]
      %v5612 = vld [vmem:[#allocation2 + $0x58] sm:$0xf]
      %v5613 = vld [vmem:[#allocation2 + $0x5c] sm:$0xf]
      %v5614 = vld [vmem:[#allocation2 + $0x60] sm:$0xf]
      %v5615 = vld [vmem:[#allocation2 + $0x64] sm:$0xf]
      %v5616 = vld [vmem:[#allocation2 + $0x68] sm:$0xf]
      %v5617 = vld [vmem:[#allocation2 + $0x6c] sm:$0xf]
      %v5618 = vld [vmem:[#allocation2 + $0x70] sm:$0xf]
      %v5619 = vld [vmem:[#allocation2 + $0x74] sm:$0xf]
      %v5620 = vld [vmem:[#allocation2 + $0x78] sm:$0xf]
      %v5621 = vld [vmem:[#allocation2 + $0x7c] sm:$0xf]
      %v5622 = vld [vmem:[#allocation2 + $0x80] sm:$0xf]
      %v5623 = vld [vmem:[#allocation2 + $0x84] sm:$0xf]
      %v5624 = vld [vmem:[#allocation2 + $0x88] sm:$0xf]
      %v5625 = vld [vmem:[#allocation2 + $0x8c] sm:$0xf]
      %v5626 = vld [vmem:[#allocation2 + $0x90] sm:$0xf]
      %v5627 = vld [vmem:[#allocation2 + $0x94] sm:$0xf]
      %v5628 = vld [vmem:[#allocation2 + $0x98] sm:$0xf]
      %v5629 = vld [vmem:[#allocation2 + $0x9c] sm:$0xf]
      %v5630 = vld [vmem:[#allocation2 + $0xa0] sm:$0x3]
      %s5631 = scalar_lea.vmem %s3, 12
      %v5632 = vld [vmem:[%s5631] sm:$0x3]
      %v5670 = vunpack.c.l.b16 %v5594
      %v5671 = vunpack.c.l.b16 %v5595
      %v5672 = vunpack.c.l.b16 %v5596
      %v5673 = vunpack.c.l.b16 %v5597
      %v5674 = vunpack.c.l.b16 %v5598
      %v5675 = vunpack.c.l.b16 %v5599
      %v5676 = vunpack.c.l.b16 %v5600
      %v5677 = vunpack.c.l.b16 %v5601
      %v5678 = vunpack.c.l.b16 %v5602
      %v5679 = vunpack.c.l.b16 %v5603
      %v5680 = vunpack.c.l.b16 %v5604
      %v5681 = vunpack.c.l.b16 %v5605
      %v5682 = vunpack.c.l.b16 %v5606
      %v5683 = vunpack.c.l.b16 %v5607
      %v5684 = vunpack.c.l.b16 %v5608
      %v5685 = vunpack.c.l.b16 %v5609
      %v5686 = vunpack.c.l.b16 %v5610
      %v5687 = vunpack.c.l.b16 %v5611
      %v5688 = vunpack.c.l.b16 %v5612
      %v5689 = vunpack.c.l.b16 %v5613
      %v5690 = vunpack.c.l.b16 %v5614
      %v5691 = vunpack.c.l.b16 %v5615
      %v5692 = vunpack.c.l.b16 %v5616
      %v5693 = vunpack.c.l.b16 %v5617
      %v5694 = vunpack.c.l.b16 %v5618
      %v5695 = vunpack.c.l.b16 %v5619
      %v5696 = vunpack.c.l.b16 %v5620
      %v5697 = vunpack.c.l.b16 %v5621
      %v5698 = vunpack.c.l.b16 %v5622
      %v5699 = vunpack.c.l.b16 %v5623
      %v5700 = vunpack.c.l.b16 %v5624
      %v5701 = vunpack.c.l.b16 %v5625
      %v5702 = vunpack.c.l.b16 %v5626
      %v5703 = vunpack.c.l.b16 %v5627
      %v5704 = vunpack.c.l.b16 %v5628
      %v5705 = vunpack.c.l.b16 %v5629
      %v5706 = vunpack.c.l.b16 %v5630
      %v5707 = vpack.c.b16 %v5671, %v5670
      %v5708 = vpack.c.b16 %v5673, %v5672
      %v5709 = vpack.c.b16 %v5675, %v5674
      %v5710 = vpack.c.b16 %v5677, %v5676
      %v5711 = vpack.c.b16 %v5679, %v5678
      %v5712 = vpack.c.b16 %v5681, %v5680
      %v5713 = vpack.c.b16 %v5683, %v5682
      %v5714 = vpack.c.b16 %v5685, %v5684
      %v5715 = vpack.c.b16 %v5687, %v5686
      %v5716 = vpack.c.b16 %v5689, %v5688
      %v5717 = vpack.c.b16 %v5691, %v5690
      %v5718 = vpack.c.b16 %v5693, %v5692
      %v5719 = vpack.c.b16 %v5695, %v5694
      %v5720 = vpack.c.b16 %v5697, %v5696
      %v5721 = vpack.c.b16 %v5699, %v5698
      %v5722 = vpack.c.b16 %v5701, %v5700
      %v5723 = vpack.c.b16 %v5703, %v5702
      %v5724 = vpack.c.b16 %v5705, %v5704
      %v5725 = vpack.c.b16 %v5706, %v5706
      %v5726 = vrot.slane %v5707, 2
      %v5727 = vrot.slane %v5708, 2
      %v5728 = vsel %vm1803, %v5726, %v5727
      %v5729 = vrot.slane %v5709, 2
      %v5730 = vsel %vm1803, %v5727, %v5729
      %v5731 = vrot.slane %v5710, 2
      %v5732 = vsel %vm1803, %v5729, %v5731
      %v5733 = vrot.slane %v5711, 2
      %v5734 = vsel %vm1803, %v5731, %v5733
      %v5735 = vrot.slane %v5712, 2
      %v5736 = vsel %vm1803, %v5733, %v5735
      %v5737 = vrot.slane %v5713, 2
      %v5738 = vsel %vm1803, %v5735, %v5737
      %v5739 = vrot.slane %v5714, 2
      %v5740 = vsel %vm1803, %v5737, %v5739
      %v5741 = vrot.slane %v5715, 2
      %v5742 = vsel %vm1803, %v5739, %v5741
      %v5743 = vrot.slane %v5716, 2
      %v5744 = vsel %vm1803, %v5741, %v5743
      %v5745 = vrot.slane %v5717, 2
      %v5746 = vsel %vm1803, %v5743, %v5745
      %v5747 = vrot.slane %v5718, 2
      %v5748 = vsel %vm1803, %v5745, %v5747
      %v5749 = vrot.slane %v5719, 2
      %v5750 = vsel %vm1803, %v5747, %v5749
      %v5751 = vrot.slane %v5720, 2
      %v5752 = vsel %vm1803, %v5749, %v5751
      %v5753 = vrot.slane %v5721, 2
      %v5754 = vsel %vm1803, %v5751, %v5753
      %v5755 = vrot.slane %v5722, 2
      %v5756 = vsel %vm1803, %v5753, %v5755
      %v5757 = vrot.slane %v5723, 2
      %v5758 = vsel %vm1803, %v5755, %v5757
      %v5759 = vrot.slane %v5724, 2
      %v5760 = vsel %vm1803, %v5757, %v5759
      %v5761 = vrot.slane %v5725, 2
      %v5762 = vsel %vm1803, %v5759, %v5761
      %v5764 = vsel %vm535, %v5728, 0
      %v5767 = vsel %vm535, %v5730, 0
      %v5770 = vsel %vm535, %v5732, 0
      %v5773 = vsel %vm535, %v5734, 0
      %v5776 = vsel %vm535, %v5736, 0
      %v5779 = vsel %vm535, %v5738, 0
      %v5782 = vsel %vm535, %v5740, 0
      %v5785 = vsel %vm535, %v5742, 0
      %v5788 = vsel %vm535, %v5744, 0
      %v5791 = vsel %vm535, %v5746, 0
      %v5794 = vsel %vm535, %v5748, 0
      %v5797 = vsel %vm535, %v5750, 0
      %v5800 = vsel %vm535, %v5752, 0
      %v5803 = vsel %vm535, %v5754, 0
      %v5806 = vsel %vm535, %v5756, 0
      %v5809 = vsel %vm535, %v5758, 0
      %v5812 = vsel %vm535, %v5760, 0
      %v5815 = vsel %vm535, %v5762, 0
      %v5818 = vsel %vm590, %v5632, 0
      %5820 = vmatpush.bf16.msra.mxu0 0
      %5821 = vmatpush.bf16.msra.mxu0 0
      %5822 = vmatpush.bf16.msra.mxu0 0
      %5823 = vmatpush.bf16.msra.mxu0 0
      %5824 = vmatpush.bf16.msra.mxu0 0
      %5825 = vmatpush.bf16.msra.mxu0 0
      %5826 = vmatpush.bf16.msra.mxu0 0
      %5827 = vmatpush.bf16.msra.mxu0 %v5818
      %5828 = vmatmul.bf16.gmra.mxu0 %v5764
      %v5829 = vpop.f32.mrf.mxu0
      %v5830 = vadd.f32 0.0, %v5829
      %v5831 = vpop.f32.mrf.mxu0
      %v5832 = vadd.f32 0.0, %v5831
      %5833 = vmatmul.bf16.gmra.mxu0 %v5767
      %v5834 = vpop.f32.mrf.mxu0
      %v5835 = vadd.f32 0.0, %v5834
      %v5836 = vpop.f32.mrf.mxu0
      %v5837 = vadd.f32 0.0, %v5836
      %5838 = vmatmul.bf16.gmra.mxu0 %v5770
      %v5839 = vpop.f32.mrf.mxu0
      %v5840 = vadd.f32 0.0, %v5839
      %v5841 = vpop.f32.mrf.mxu0
      %v5842 = vadd.f32 0.0, %v5841
      %5843 = vmatmul.bf16.gmra.mxu0 %v5773
      %v5844 = vpop.f32.mrf.mxu0
      %v5845 = vadd.f32 0.0, %v5844
      %v5846 = vpop.f32.mrf.mxu0
      %v5847 = vadd.f32 0.0, %v5846
      %5848 = vmatmul.bf16.gmra.mxu0 %v5776
      %v5849 = vpop.f32.mrf.mxu0
      %v5850 = vadd.f32 0.0, %v5849
      %v5851 = vpop.f32.mrf.mxu0
      %v5852 = vadd.f32 0.0, %v5851
      %5853 = vmatmul.bf16.gmra.mxu0 %v5779
      %v5854 = vpop.f32.mrf.mxu0
      %v5855 = vadd.f32 0.0, %v5854
      %v5856 = vpop.f32.mrf.mxu0
      %v5857 = vadd.f32 0.0, %v5856
      %5858 = vmatmul.bf16.gmra.mxu0 %v5782
      %v5859 = vpop.f32.mrf.mxu0
      %v5860 = vadd.f32 0.0, %v5859
      %v5861 = vpop.f32.mrf.mxu0
      %v5862 = vadd.f32 0.0, %v5861
      %5863 = vmatmul.bf16.gmra.mxu0 %v5785
      %v5864 = vpop.f32.mrf.mxu0
      %v5865 = vadd.f32 0.0, %v5864
      %v5866 = vpop.f32.mrf.mxu0
      %v5867 = vadd.f32 0.0, %v5866
      %5868 = vmatmul.bf16.gmra.mxu0 %v5788
      %v5869 = vpop.f32.mrf.mxu0
      %v5870 = vadd.f32 0.0, %v5869
      %v5871 = vpop.f32.mrf.mxu0
      %v5872 = vadd.f32 0.0, %v5871
      %5873 = vmatmul.bf16.gmra.mxu0 %v5791
      %v5874 = vpop.f32.mrf.mxu0
      %v5875 = vadd.f32 0.0, %v5874
      %v5876 = vpop.f32.mrf.mxu0
      %v5877 = vadd.f32 0.0, %v5876
      %5878 = vmatmul.bf16.gmra.mxu0 %v5794
      %v5879 = vpop.f32.mrf.mxu0
      %v5880 = vadd.f32 0.0, %v5879
      %v5881 = vpop.f32.mrf.mxu0
      %v5882 = vadd.f32 0.0, %v5881
      %5883 = vmatmul.bf16.gmra.mxu0 %v5797
      %v5884 = vpop.f32.mrf.mxu0
      %v5885 = vadd.f32 0.0, %v5884
      %v5886 = vpop.f32.mrf.mxu0
      %v5887 = vadd.f32 0.0, %v5886
      %5888 = vmatmul.bf16.gmra.mxu0 %v5800
      %v5889 = vpop.f32.mrf.mxu0
      %v5890 = vadd.f32 0.0, %v5889
      %v5891 = vpop.f32.mrf.mxu0
      %v5892 = vadd.f32 0.0, %v5891
      %5893 = vmatmul.bf16.gmra.mxu0 %v5803
      %v5894 = vpop.f32.mrf.mxu0
      %v5895 = vadd.f32 0.0, %v5894
      %v5896 = vpop.f32.mrf.mxu0
      %v5897 = vadd.f32 0.0, %v5896
      %5898 = vmatmul.bf16.gmra.mxu0 %v5806
      %v5899 = vpop.f32.mrf.mxu0
      %v5900 = vadd.f32 0.0, %v5899
      %v5901 = vpop.f32.mrf.mxu0
      %v5902 = vadd.f32 0.0, %v5901
      %5903 = vmatmul.bf16.gmra.mxu0 %v5809
      %v5904 = vpop.f32.mrf.mxu0
      %v5905 = vadd.f32 0.0, %v5904
      %v5906 = vpop.f32.mrf.mxu0
      %v5907 = vadd.f32 0.0, %v5906
      %5908 = vmatmul.bf16.gmra.mxu0 %v5812
      %v5909 = vpop.f32.mrf.mxu0
      %v5910 = vadd.f32 0.0, %v5909
      %v5911 = vpop.f32.mrf.mxu0
      %v5912 = vadd.f32 0.0, %v5911
      %5913 = vmatmul.bf16.gmra.mxu0 %v5815
      %v5914 = vpop.f32.mrf.mxu0
      %v5915 = vadd.f32 0.0, %v5914
      %v5916 = vpop.f32.mrf.mxu0
      %v5917 = vadd.f32 0.0, %v5916
      %5918 = vdwg.mxu0
      %v5919 = vadd.f32 %v5558, %v5830
      %v5920 = vadd.f32 %v5559, %v5832
      %v5921 = vadd.f32 %v5560, %v5835
      %v5922 = vadd.f32 %v5561, %v5837
      %v5923 = vadd.f32 %v5562, %v5840
      %v5924 = vadd.f32 %v5563, %v5842
      %v5925 = vadd.f32 %v5564, %v5845
      %v5926 = vadd.f32 %v5565, %v5847
      %v5927 = vadd.f32 %v5566, %v5850
      %v5928 = vadd.f32 %v5567, %v5852
      %v5929 = vadd.f32 %v5568, %v5855
      %v5930 = vadd.f32 %v5569, %v5857
      %v5931 = vadd.f32 %v5570, %v5860
      %v5932 = vadd.f32 %v5571, %v5862
      %v5933 = vadd.f32 %v5572, %v5865
      %v5934 = vadd.f32 %v5573, %v5867
      %v5935 = vadd.f32 %v5574, %v5870
      %v5936 = vadd.f32 %v5575, %v5872
      %v5937 = vadd.f32 %v5576, %v5875
      %v5938 = vadd.f32 %v5577, %v5877
      %v5939 = vadd.f32 %v5578, %v5880
      %v5940 = vadd.f32 %v5579, %v5882
      %v5941 = vadd.f32 %v5580, %v5885
      %v5942 = vadd.f32 %v5581, %v5887
      %v5943 = vadd.f32 %v5582, %v5890
      %v5944 = vadd.f32 %v5583, %v5892
      %v5945 = vadd.f32 %v5584, %v5895
      %v5946 = vadd.f32 %v5585, %v5897
      %v5947 = vadd.f32 %v5586, %v5900
      %v5948 = vadd.f32 %v5587, %v5902
      %v5949 = vadd.f32 %v5588, %v5905
      %v5950 = vadd.f32 %v5589, %v5907
      %v5951 = vadd.f32 %v5590, %v5910
      %v5952 = vadd.f32 %v5591, %v5912
      %v5953 = vadd.f32 %v5592, %v5915
      %v5954 = vadd.f32 %v5593, %v5917
      %v5955 = vld [vmem:[#allocation2 + $0xa0] sm:$0x7]
      %s5956 = scalar_lea.vmem %s3, 14
      %v5957 = vld [vmem:[%s5956] sm:$0x3]
      %v5959 = vunpack.c.l.b16 %v5955
      %v5960 = vpack.c.b16 %v5959, %v5959
      %v5962 = vshrl.u32 %v5707, 16
      %v5964 = vrot.slane %v5962, 2
      %v5965 = vshll.u32 %v5707, 16
      %v5967 = vrot.slane %v5965, 3
      %v5968 = vor.u32 %v5964, %v5967
      %v5970 = vshrl.u32 %v5708, 16
      %v5972 = vrot.slane %v5970, 2
      %v5973 = vshll.u32 %v5708, 16
      %v5975 = vrot.slane %v5973, 3
      %v5976 = vor.u32 %v5972, %v5975
      %v5977 = vsel %vm2400, %v5968, %v5976
      %v5979 = vshrl.u32 %v5709, 16
      %v5981 = vrot.slane %v5979, 2
      %v5982 = vshll.u32 %v5709, 16
      %v5984 = vrot.slane %v5982, 3
      %v5985 = vor.u32 %v5981, %v5984
      %v5986 = vsel %vm2400, %v5976, %v5985
      %v5988 = vshrl.u32 %v5710, 16
      %v5990 = vrot.slane %v5988, 2
      %v5991 = vshll.u32 %v5710, 16
      %v5993 = vrot.slane %v5991, 3
      %v5994 = vor.u32 %v5990, %v5993
      %v5995 = vsel %vm2400, %v5985, %v5994
      %v5997 = vshrl.u32 %v5711, 16
      %v5999 = vrot.slane %v5997, 2
      %v6000 = vshll.u32 %v5711, 16
      %v6002 = vrot.slane %v6000, 3
      %v6003 = vor.u32 %v5999, %v6002
      %v6004 = vsel %vm2400, %v5994, %v6003
      %v6006 = vshrl.u32 %v5712, 16
      %v6008 = vrot.slane %v6006, 2
      %v6009 = vshll.u32 %v5712, 16
      %v6011 = vrot.slane %v6009, 3
      %v6012 = vor.u32 %v6008, %v6011
      %v6013 = vsel %vm2400, %v6003, %v6012
      %v6015 = vshrl.u32 %v5713, 16
      %v6017 = vrot.slane %v6015, 2
      %v6018 = vshll.u32 %v5713, 16
      %v6020 = vrot.slane %v6018, 3
      %v6021 = vor.u32 %v6017, %v6020
      %v6022 = vsel %vm2400, %v6012, %v6021
      %v6024 = vshrl.u32 %v5714, 16
      %v6026 = vrot.slane %v6024, 2
      %v6027 = vshll.u32 %v5714, 16
      %v6029 = vrot.slane %v6027, 3
      %v6030 = vor.u32 %v6026, %v6029
      %v6031 = vsel %vm2400, %v6021, %v6030
      %v6033 = vshrl.u32 %v5715, 16
      %v6035 = vrot.slane %v6033, 2
      %v6036 = vshll.u32 %v5715, 16
      %v6038 = vrot.slane %v6036, 3
      %v6039 = vor.u32 %v6035, %v6038
      %v6040 = vsel %vm2400, %v6030, %v6039
      %v6042 = vshrl.u32 %v5716, 16
      %v6044 = vrot.slane %v6042, 2
      %v6045 = vshll.u32 %v5716, 16
      %v6047 = vrot.slane %v6045, 3
      %v6048 = vor.u32 %v6044, %v6047
      %v6049 = vsel %vm2400, %v6039, %v6048
      %v6051 = vshrl.u32 %v5717, 16
      %v6053 = vrot.slane %v6051, 2
      %v6054 = vshll.u32 %v5717, 16
      %v6056 = vrot.slane %v6054, 3
      %v6057 = vor.u32 %v6053, %v6056
      %v6058 = vsel %vm2400, %v6048, %v6057
      %v6060 = vshrl.u32 %v5718, 16
      %v6062 = vrot.slane %v6060, 2
      %v6063 = vshll.u32 %v5718, 16
      %v6065 = vrot.slane %v6063, 3
      %v6066 = vor.u32 %v6062, %v6065
      %v6067 = vsel %vm2400, %v6057, %v6066
      %v6069 = vshrl.u32 %v5719, 16
      %v6071 = vrot.slane %v6069, 2
      %v6072 = vshll.u32 %v5719, 16
      %v6074 = vrot.slane %v6072, 3
      %v6075 = vor.u32 %v6071, %v6074
      %v6076 = vsel %vm2400, %v6066, %v6075
      %v6078 = vshrl.u32 %v5720, 16
      %v6080 = vrot.slane %v6078, 2
      %v6081 = vshll.u32 %v5720, 16
      %v6083 = vrot.slane %v6081, 3
      %v6084 = vor.u32 %v6080, %v6083
      %v6085 = vsel %vm2400, %v6075, %v6084
      %v6087 = vshrl.u32 %v5721, 16
      %v6089 = vrot.slane %v6087, 2
      %v6090 = vshll.u32 %v5721, 16
      %v6092 = vrot.slane %v6090, 3
      %v6093 = vor.u32 %v6089, %v6092
      %v6094 = vsel %vm2400, %v6084, %v6093
      %v6096 = vshrl.u32 %v5722, 16
      %v6098 = vrot.slane %v6096, 2
      %v6099 = vshll.u32 %v5722, 16
      %v6101 = vrot.slane %v6099, 3
      %v6102 = vor.u32 %v6098, %v6101
      %v6103 = vsel %vm2400, %v6093, %v6102
      %v6105 = vshrl.u32 %v5723, 16
      %v6107 = vrot.slane %v6105, 2
      %v6108 = vshll.u32 %v5723, 16
      %v6110 = vrot.slane %v6108, 3
      %v6111 = vor.u32 %v6107, %v6110
      %v6112 = vsel %vm2400, %v6102, %v6111
      %v6114 = vshrl.u32 %v5724, 16
      %v6116 = vrot.slane %v6114, 2
      %v6117 = vshll.u32 %v5724, 16
      %v6119 = vrot.slane %v6117, 3
      %v6120 = vor.u32 %v6116, %v6119
      %v6121 = vsel %vm2400, %v6111, %v6120
      %v6123 = vshrl.u32 %v5960, 16
      %v6125 = vrot.slane %v6123, 2
      %v6126 = vshll.u32 %v5960, 16
      %v6128 = vrot.slane %v6126, 3
      %v6129 = vor.u32 %v6125, %v6128
      %v6130 = vsel %vm2400, %v6120, %v6129
      %v6132 = vsel %vm535, %v5977, 0
      %v6135 = vsel %vm535, %v5986, 0
      %v6138 = vsel %vm535, %v5995, 0
      %v6141 = vsel %vm535, %v6004, 0
      %v6144 = vsel %vm535, %v6013, 0
      %v6147 = vsel %vm535, %v6022, 0
      %v6150 = vsel %vm535, %v6031, 0
      %v6153 = vsel %vm535, %v6040, 0
      %v6156 = vsel %vm535, %v6049, 0
      %v6159 = vsel %vm535, %v6058, 0
      %v6162 = vsel %vm535, %v6067, 0
      %v6165 = vsel %vm535, %v6076, 0
      %v6168 = vsel %vm535, %v6085, 0
      %v6171 = vsel %vm535, %v6094, 0
      %v6174 = vsel %vm535, %v6103, 0
      %v6177 = vsel %vm535, %v6112, 0
      %v6180 = vsel %vm535, %v6121, 0
      %v6183 = vsel %vm535, %v6130, 0
      %v6186 = vsel %vm590, %v5957, 0
      %6188 = vmatpush.bf16.msra.mxu0 0
      %6189 = vmatpush.bf16.msra.mxu0 0
      %6190 = vmatpush.bf16.msra.mxu0 0
      %6191 = vmatpush.bf16.msra.mxu0 0
      %6192 = vmatpush.bf16.msra.mxu0 0
      %6193 = vmatpush.bf16.msra.mxu0 0
      %6194 = vmatpush.bf16.msra.mxu0 0
      %6195 = vmatpush.bf16.msra.mxu0 %v6186
      %6196 = vmatmul.bf16.gmra.mxu0 %v6132
      %v6197 = vpop.f32.mrf.mxu0
      %v6198 = vadd.f32 0.0, %v6197
      %v6199 = vpop.f32.mrf.mxu0
      %v6200 = vadd.f32 0.0, %v6199
      %6201 = vmatmul.bf16.gmra.mxu0 %v6135
      %v6202 = vpop.f32.mrf.mxu0
      %v6203 = vadd.f32 0.0, %v6202
      %v6204 = vpop.f32.mrf.mxu0
      %v6205 = vadd.f32 0.0, %v6204
      %6206 = vmatmul.bf16.gmra.mxu0 %v6138
      %v6207 = vpop.f32.mrf.mxu0
      %v6208 = vadd.f32 0.0, %v6207
      %v6209 = vpop.f32.mrf.mxu0
      %v6210 = vadd.f32 0.0, %v6209
      %6211 = vmatmul.bf16.gmra.mxu0 %v6141
      %v6212 = vpop.f32.mrf.mxu0
      %v6213 = vadd.f32 0.0, %v6212
      %v6214 = vpop.f32.mrf.mxu0
      %v6215 = vadd.f32 0.0, %v6214
      %6216 = vmatmul.bf16.gmra.mxu0 %v6144
      %v6217 = vpop.f32.mrf.mxu0
      %v6218 = vadd.f32 0.0, %v6217
      %v6219 = vpop.f32.mrf.mxu0
      %v6220 = vadd.f32 0.0, %v6219
      %6221 = vmatmul.bf16.gmra.mxu0 %v6147
      %v6222 = vpop.f32.mrf.mxu0
      %v6223 = vadd.f32 0.0, %v6222
      %v6224 = vpop.f32.mrf.mxu0
      %v6225 = vadd.f32 0.0, %v6224
      %6226 = vmatmul.bf16.gmra.mxu0 %v6150
      %v6227 = vpop.f32.mrf.mxu0
      %v6228 = vadd.f32 0.0, %v6227
      %v6229 = vpop.f32.mrf.mxu0
      %v6230 = vadd.f32 0.0, %v6229
      %6231 = vmatmul.bf16.gmra.mxu0 %v6153
      %v6232 = vpop.f32.mrf.mxu0
      %v6233 = vadd.f32 0.0, %v6232
      %v6234 = vpop.f32.mrf.mxu0
      %v6235 = vadd.f32 0.0, %v6234
      %6236 = vmatmul.bf16.gmra.mxu0 %v6156
      %v6237 = vpop.f32.mrf.mxu0
      %v6238 = vadd.f32 0.0, %v6237
      %v6239 = vpop.f32.mrf.mxu0
      %v6240 = vadd.f32 0.0, %v6239
      %6241 = vmatmul.bf16.gmra.mxu0 %v6159
      %v6242 = vpop.f32.mrf.mxu0
      %v6243 = vadd.f32 0.0, %v6242
      %v6244 = vpop.f32.mrf.mxu0
      %v6245 = vadd.f32 0.0, %v6244
      %6246 = vmatmul.bf16.gmra.mxu0 %v6162
      %v6247 = vpop.f32.mrf.mxu0
      %v6248 = vadd.f32 0.0, %v6247
      %v6249 = vpop.f32.mrf.mxu0
      %v6250 = vadd.f32 0.0, %v6249
      %6251 = vmatmul.bf16.gmra.mxu0 %v6165
      %v6252 = vpop.f32.mrf.mxu0
      %v6253 = vadd.f32 0.0, %v6252
      %v6254 = vpop.f32.mrf.mxu0
      %v6255 = vadd.f32 0.0, %v6254
      %6256 = vmatmul.bf16.gmra.mxu0 %v6168
      %v6257 = vpop.f32.mrf.mxu0
      %v6258 = vadd.f32 0.0, %v6257
      %v6259 = vpop.f32.mrf.mxu0
      %v6260 = vadd.f32 0.0, %v6259
      %6261 = vmatmul.bf16.gmra.mxu0 %v6171
      %v6262 = vpop.f32.mrf.mxu0
      %v6263 = vadd.f32 0.0, %v6262
      %v6264 = vpop.f32.mrf.mxu0
      %v6265 = vadd.f32 0.0, %v6264
      %6266 = vmatmul.bf16.gmra.mxu0 %v6174
      %v6267 = vpop.f32.mrf.mxu0
      %v6268 = vadd.f32 0.0, %v6267
      %v6269 = vpop.f32.mrf.mxu0
      %v6270 = vadd.f32 0.0, %v6269
      %6271 = vmatmul.bf16.gmra.mxu0 %v6177
      %v6272 = vpop.f32.mrf.mxu0
      %v6273 = vadd.f32 0.0, %v6272
      %v6274 = vpop.f32.mrf.mxu0
      %v6275 = vadd.f32 0.0, %v6274
      %6276 = vmatmul.bf16.gmra.mxu0 %v6180
      %v6277 = vpop.f32.mrf.mxu0
      %v6278 = vadd.f32 0.0, %v6277
      %v6279 = vpop.f32.mrf.mxu0
      %v6280 = vadd.f32 0.0, %v6279
      %6281 = vmatmul.bf16.gmra.mxu0 %v6183
      %v6282 = vpop.f32.mrf.mxu0
      %v6283 = vadd.f32 0.0, %v6282
      %v6284 = vpop.f32.mrf.mxu0
      %v6285 = vadd.f32 0.0, %v6284
      %6286 = vdwg.mxu0
      %v6287 = vadd.f32 %v5919, %v6198
      %v6288 = vadd.f32 %v5920, %v6200
      %v6289 = vadd.f32 %v5921, %v6203
      %v6290 = vadd.f32 %v5922, %v6205
      %v6291 = vadd.f32 %v5923, %v6208
      %v6292 = vadd.f32 %v5924, %v6210
      %v6293 = vadd.f32 %v5925, %v6213
      %v6294 = vadd.f32 %v5926, %v6215
      %v6295 = vadd.f32 %v5927, %v6218
      %v6296 = vadd.f32 %v5928, %v6220
      %v6297 = vadd.f32 %v5929, %v6223
      %v6298 = vadd.f32 %v5930, %v6225
      %v6299 = vadd.f32 %v5931, %v6228
      %v6300 = vadd.f32 %v5932, %v6230
      %v6301 = vadd.f32 %v5933, %v6233
      %v6302 = vadd.f32 %v5934, %v6235
      %v6303 = vadd.f32 %v5935, %v6238
      %v6304 = vadd.f32 %v5936, %v6240
      %v6305 = vadd.f32 %v5937, %v6243
      %v6306 = vadd.f32 %v5938, %v6245
      %v6307 = vadd.f32 %v5939, %v6248
      %v6308 = vadd.f32 %v5940, %v6250
      %v6309 = vadd.f32 %v5941, %v6253
      %v6310 = vadd.f32 %v5942, %v6255
      %v6311 = vadd.f32 %v5943, %v6258
      %v6312 = vadd.f32 %v5944, %v6260
      %v6313 = vadd.f32 %v5945, %v6263
      %v6314 = vadd.f32 %v5946, %v6265
      %v6315 = vadd.f32 %v5947, %v6268
      %v6316 = vadd.f32 %v5948, %v6270
      %v6317 = vadd.f32 %v5949, %v6273
      %v6318 = vadd.f32 %v5950, %v6275
      %v6319 = vadd.f32 %v5951, %v6278
      %v6320 = vadd.f32 %v5952, %v6280
      %v6321 = vadd.f32 %v5953, %v6283
      %v6322 = vadd.f32 %v5954, %v6285
      %v6323 = vld [vmem:[#allocation2 + $0x10] sm:$0x8]
      %s6324 = scalar_lea.vmem %s3, 16
      %v6325 = vld [vmem:[%s6324] sm:$0x3]
      %v6327 = vunpack.c.l.b16 %v6323
      %v6328 = vpack.c.b16 %v5671, %v6327
      %v6329 = vrot.slane %v6328, 3
      %v6330 = vrot.slane %v5708, 3
      %v6331 = vsel %vm2769, %v6329, %v6330
      %v6332 = vrot.slane %v5709, 3
      %v6333 = vsel %vm2769, %v6330, %v6332
      %v6334 = vrot.slane %v5710, 3
      %v6335 = vsel %vm2769, %v6332, %v6334
      %v6336 = vrot.slane %v5711, 3
      %v6337 = vsel %vm2769, %v6334, %v6336
      %v6338 = vrot.slane %v5712, 3
      %v6339 = vsel %vm2769, %v6336, %v6338
      %v6340 = vrot.slane %v5713, 3
      %v6341 = vsel %vm2769, %v6338, %v6340
      %v6342 = vrot.slane %v5714, 3
      %v6343 = vsel %vm2769, %v6340, %v6342
      %v6344 = vrot.slane %v5715, 3
      %v6345 = vsel %vm2769, %v6342, %v6344
      %v6346 = vrot.slane %v5716, 3
      %v6347 = vsel %vm2769, %v6344, %v6346
      %v6348 = vrot.slane %v5717, 3
      %v6349 = vsel %vm2769, %v6346, %v6348
      %v6350 = vrot.slane %v5718, 3
      %v6351 = vsel %vm2769, %v6348, %v6350
      %v6352 = vrot.slane %v5719, 3
      %v6353 = vsel %vm2769, %v6350, %v6352
      %v6354 = vrot.slane %v5720, 3
      %v6355 = vsel %vm2769, %v6352, %v6354
      %v6356 = vrot.slane %v5721, 3
      %v6357 = vsel %vm2769, %v6354, %v6356
      %v6358 = vrot.slane %v5722, 3
      %v6359 = vsel %vm2769, %v6356, %v6358
      %v6360 = vrot.slane %v5723, 3
      %v6361 = vsel %vm2769, %v6358, %v6360
      %v6362 = vrot.slane %v5724, 3
      %v6363 = vsel %vm2769, %v6360, %v6362
      %v6364 = vrot.slane %v5960, 3
      %v6365 = vsel %vm2769, %v6362, %v6364
      %v6367 = vsel %vm535, %v6331, 0
      %v6370 = vsel %vm535, %v6333, 0
      %v6373 = vsel %vm535, %v6335, 0
      %v6376 = vsel %vm535, %v6337, 0
      %v6379 = vsel %vm535, %v6339, 0
      %v6382 = vsel %vm535, %v6341, 0
      %v6385 = vsel %vm535, %v6343, 0
      %v6388 = vsel %vm535, %v6345, 0
      %v6391 = vsel %vm535, %v6347, 0
      %v6394 = vsel %vm535, %v6349, 0
      %v6397 = vsel %vm535, %v6351, 0
      %v6400 = vsel %vm535, %v6353, 0
      %v6403 = vsel %vm535, %v6355, 0
      %v6406 = vsel %vm535, %v6357, 0
      %v6409 = vsel %vm535, %v6359, 0
      %v6412 = vsel %vm535, %v6361, 0
      %v6415 = vsel %vm535, %v6363, 0
      %v6418 = vsel %vm535, %v6365, 0
      %v6421 = vsel %vm590, %v6325, 0
      %6423 = vmatpush.bf16.msra.mxu0 0
      %6424 = vmatpush.bf16.msra.mxu0 0
      %6425 = vmatpush.bf16.msra.mxu0 0
      %6426 = vmatpush.bf16.msra.mxu0 0
      %6427 = vmatpush.bf16.msra.mxu0 0
      %6428 = vmatpush.bf16.msra.mxu0 0
      %6429 = vmatpush.bf16.msra.mxu0 0
      %6430 = vmatpush.bf16.msra.mxu0 %v6421
      %6431 = vmatmul.bf16.gmra.mxu0 %v6367
      %v6432 = vpop.f32.mrf.mxu0
      %v6433 = vadd.f32 0.0, %v6432
      %v6434 = vpop.f32.mrf.mxu0
      %v6435 = vadd.f32 0.0, %v6434
      %6436 = vmatmul.bf16.gmra.mxu0 %v6370
      %v6437 = vpop.f32.mrf.mxu0
      %v6438 = vadd.f32 0.0, %v6437
      %v6439 = vpop.f32.mrf.mxu0
      %v6440 = vadd.f32 0.0, %v6439
      %6441 = vmatmul.bf16.gmra.mxu0 %v6373
      %v6442 = vpop.f32.mrf.mxu0
      %v6443 = vadd.f32 0.0, %v6442
      %v6444 = vpop.f32.mrf.mxu0
      %v6445 = vadd.f32 0.0, %v6444
      %6446 = vmatmul.bf16.gmra.mxu0 %v6376
      %v6447 = vpop.f32.mrf.mxu0
      %v6448 = vadd.f32 0.0, %v6447
      %v6449 = vpop.f32.mrf.mxu0
      %v6450 = vadd.f32 0.0, %v6449
      %6451 = vmatmul.bf16.gmra.mxu0 %v6379
      %v6452 = vpop.f32.mrf.mxu0
      %v6453 = vadd.f32 0.0, %v6452
      %v6454 = vpop.f32.mrf.mxu0
      %v6455 = vadd.f32 0.0, %v6454
      %6456 = vmatmul.bf16.gmra.mxu0 %v6382
      %v6457 = vpop.f32.mrf.mxu0
      %v6458 = vadd.f32 0.0, %v6457
      %v6459 = vpop.f32.mrf.mxu0
      %v6460 = vadd.f32 0.0, %v6459
      %6461 = vmatmul.bf16.gmra.mxu0 %v6385
      %v6462 = vpop.f32.mrf.mxu0
      %v6463 = vadd.f32 0.0, %v6462
      %v6464 = vpop.f32.mrf.mxu0
      %v6465 = vadd.f32 0.0, %v6464
      %6466 = vmatmul.bf16.gmra.mxu0 %v6388
      %v6467 = vpop.f32.mrf.mxu0
      %v6468 = vadd.f32 0.0, %v6467
      %v6469 = vpop.f32.mrf.mxu0
      %v6470 = vadd.f32 0.0, %v6469
      %6471 = vmatmul.bf16.gmra.mxu0 %v6391
      %v6472 = vpop.f32.mrf.mxu0
      %v6473 = vadd.f32 0.0, %v6472
      %v6474 = vpop.f32.mrf.mxu0
      %v6475 = vadd.f32 0.0, %v6474
      %6476 = vmatmul.bf16.gmra.mxu0 %v6394
      %v6477 = vpop.f32.mrf.mxu0
      %v6478 = vadd.f32 0.0, %v6477
      %v6479 = vpop.f32.mrf.mxu0
      %v6480 = vadd.f32 0.0, %v6479
      %6481 = vmatmul.bf16.gmra.mxu0 %v6397
      %v6482 = vpop.f32.mrf.mxu0
      %v6483 = vadd.f32 0.0, %v6482
      %v6484 = vpop.f32.mrf.mxu0
      %v6485 = vadd.f32 0.0, %v6484
      %6486 = vmatmul.bf16.gmra.mxu0 %v6400
      %v6487 = vpop.f32.mrf.mxu0
      %v6488 = vadd.f32 0.0, %v6487
      %v6489 = vpop.f32.mrf.mxu0
      %v6490 = vadd.f32 0.0, %v6489
      %6491 = vmatmul.bf16.gmra.mxu0 %v6403
      %v6492 = vpop.f32.mrf.mxu0
      %v6493 = vadd.f32 0.0, %v6492
      %v6494 = vpop.f32.mrf.mxu0
      %v6495 = vadd.f32 0.0, %v6494
      %6496 = vmatmul.bf16.gmra.mxu0 %v6406
      %v6497 = vpop.f32.mrf.mxu0
      %v6498 = vadd.f32 0.0, %v6497
      %v6499 = vpop.f32.mrf.mxu0
      %v6500 = vadd.f32 0.0, %v6499
      %6501 = vmatmul.bf16.gmra.mxu0 %v6409
      %v6502 = vpop.f32.mrf.mxu0
      %v6503 = vadd.f32 0.0, %v6502
      %v6504 = vpop.f32.mrf.mxu0
      %v6505 = vadd.f32 0.0, %v6504
      %6506 = vmatmul.bf16.gmra.mxu0 %v6412
      %v6507 = vpop.f32.mrf.mxu0
      %v6508 = vadd.f32 0.0, %v6507
      %v6509 = vpop.f32.mrf.mxu0
      %v6510 = vadd.f32 0.0, %v6509
      %6511 = vmatmul.bf16.gmra.mxu0 %v6415
      %v6512 = vpop.f32.mrf.mxu0
      %v6513 = vadd.f32 0.0, %v6512
      %v6514 = vpop.f32.mrf.mxu0
      %v6515 = vadd.f32 0.0, %v6514
      %6516 = vmatmul.bf16.gmra.mxu0 %v6418
      %v6517 = vpop.f32.mrf.mxu0
      %v6518 = vadd.f32 0.0, %v6517
      %v6519 = vpop.f32.mrf.mxu0
      %v6520 = vadd.f32 0.0, %v6519
      %6521 = vdwg.mxu0
      %v6522 = vadd.f32 %v6287, %v6433
      %v6523 = vadd.f32 %v6288, %v6435
      %v6524 = vadd.f32 %v6289, %v6438
      %v6525 = vadd.f32 %v6290, %v6440
      %v6526 = vadd.f32 %v6291, %v6443
      %v6527 = vadd.f32 %v6292, %v6445
      %v6528 = vadd.f32 %v6293, %v6448
      %v6529 = vadd.f32 %v6294, %v6450
      %v6530 = vadd.f32 %v6295, %v6453
      %v6531 = vadd.f32 %v6296, %v6455
      %v6532 = vadd.f32 %v6297, %v6458
      %v6533 = vadd.f32 %v6298, %v6460
      %v6534 = vadd.f32 %v6299, %v6463
      %v6535 = vadd.f32 %v6300, %v6465
      %v6536 = vadd.f32 %v6301, %v6468
      %v6537 = vadd.f32 %v6302, %v6470
      %v6538 = vadd.f32 %v6303, %v6473
      %v6539 = vadd.f32 %v6304, %v6475
      %v6540 = vadd.f32 %v6305, %v6478
      %v6541 = vadd.f32 %v6306, %v6480
      %v6542 = vadd.f32 %v6307, %v6483
      %v6543 = vadd.f32 %v6308, %v6485
      %v6544 = vadd.f32 %v6309, %v6488
      %v6545 = vadd.f32 %v6310, %v6490
      %v6546 = vadd.f32 %v6311, %v6493
      %v6547 = vadd.f32 %v6312, %v6495
      %v6548 = vadd.f32 %v6313, %v6498
      %v6549 = vadd.f32 %v6314, %v6500
      %v6550 = vadd.f32 %v6315, %v6503
      %v6551 = vadd.f32 %v6316, %v6505
      %v6552 = vadd.f32 %v6317, %v6508
      %v6553 = vadd.f32 %v6318, %v6510
      %v6554 = vadd.f32 %v6319, %v6513
      %v6555 = vadd.f32 %v6320, %v6515
      %v6556 = vadd.f32 %v6321, %v6518
      %v6557 = vadd.f32 %v6322, %v6520
      %v6558 = vld [vmem:[%s246 + $0x8] sm:$0xe]
      %v6559 = vld [vmem:[%s246 + $0xc] sm:$0xf]
      %v6560 = vld [vmem:[%s246 + $0x10] sm:$0xf]
      %v6561 = vld [vmem:[%s246 + $0x14] sm:$0xf]
      %v6562 = vld [vmem:[%s246 + $0x18] sm:$0xf]
      %v6563 = vld [vmem:[%s246 + $0x1c] sm:$0xf]
      %v6564 = vld [vmem:[%s246 + $0x20] sm:$0xf]
      %v6565 = vld [vmem:[%s246 + $0x24] sm:$0xf]
      %v6566 = vld [vmem:[%s246 + $0x28] sm:$0xf]
      %v6567 = vld [vmem:[%s246 + $0x2c] sm:$0xf]
      %v6568 = vld [vmem:[%s246 + $0x30] sm:$0xf]
      %v6569 = vld [vmem:[%s246 + $0x34] sm:$0xf]
      %v6570 = vld [vmem:[%s246 + $0x38] sm:$0xf]
      %v6571 = vld [vmem:[%s246 + $0x3c] sm:$0xf]
      %v6572 = vld [vmem:[%s246 + $0x40] sm:$0xf]
      %v6573 = vld [vmem:[%s246 + $0x44] sm:$0xf]
      %v6574 = vld [vmem:[%s246 + $0x48] sm:$0xf]
      %v6575 = vld [vmem:[%s246 + $0x4c] sm:$0xf]
      %v6576 = vld [vmem:[%s246 + $0x50] sm:$0xf]
      %v6577 = vld [vmem:[%s246 + $0x54] sm:$0xf]
      %v6578 = vld [vmem:[%s246 + $0x58] sm:$0xf]
      %v6579 = vld [vmem:[%s246 + $0x5c] sm:$0xf]
      %v6580 = vld [vmem:[%s246 + $0x60] sm:$0xf]
      %v6581 = vld [vmem:[%s246 + $0x64] sm:$0xf]
      %v6582 = vld [vmem:[%s246 + $0x68] sm:$0xf]
      %v6583 = vld [vmem:[%s246 + $0x6c] sm:$0xf]
      %v6584 = vld [vmem:[%s246 + $0x70] sm:$0xf]
      %v6585 = vld [vmem:[%s246 + $0x74] sm:$0xf]
      %v6586 = vld [vmem:[%s246 + $0x78] sm:$0xf]
      %v6587 = vld [vmem:[%s246 + $0x7c] sm:$0xf]
      %v6588 = vld [vmem:[%s246 + $0x80] sm:$0xf]
      %v6589 = vld [vmem:[%s246 + $0x84] sm:$0xf]
      %v6590 = vld [vmem:[%s246 + $0x88] sm:$0xf]
      %v6591 = vld [vmem:[%s246 + $0x8c] sm:$0xf]
      %v6592 = vld [vmem:[%s246 + $0x90] sm:$0xf]
      %v6593 = vld [vmem:[%s246 + $0x94] sm:$0xf]
      %v6594 = vld [vmem:[%s246 + $0x98] sm:$0x3]
      %v6595 = vunpack.c.l.bf16 %v6558
      %v6596 = vunpack.c.l.bf16 %v6559
      %v6597 = vunpack.c.l.bf16 %v6560
      %v6598 = vunpack.c.l.bf16 %v6561
      %v6599 = vunpack.c.l.bf16 %v6562
      %v6600 = vunpack.c.l.bf16 %v6563
      %v6601 = vunpack.c.l.bf16 %v6564
      %v6602 = vunpack.c.l.bf16 %v6565
      %v6603 = vunpack.c.l.bf16 %v6566
      %v6604 = vunpack.c.l.bf16 %v6567
      %v6605 = vunpack.c.l.bf16 %v6568
      %v6606 = vunpack.c.l.bf16 %v6569
      %v6607 = vunpack.c.l.bf16 %v6570
      %v6608 = vunpack.c.l.bf16 %v6571
      %v6609 = vunpack.c.l.bf16 %v6572
      %v6610 = vunpack.c.l.bf16 %v6573
      %v6611 = vunpack.c.l.bf16 %v6574
      %v6612 = vunpack.c.l.bf16 %v6575
      %v6613 = vunpack.c.l.bf16 %v6576
      %v6614 = vunpack.c.l.bf16 %v6577
      %v6615 = vunpack.c.l.bf16 %v6578
      %v6616 = vunpack.c.l.bf16 %v6579
      %v6617 = vunpack.c.l.bf16 %v6580
      %v6618 = vunpack.c.l.bf16 %v6581
      %v6619 = vunpack.c.l.bf16 %v6582
      %v6620 = vunpack.c.l.bf16 %v6583
      %v6621 = vunpack.c.l.bf16 %v6584
      %v6622 = vunpack.c.l.bf16 %v6585
      %v6623 = vunpack.c.l.bf16 %v6586
      %v6624 = vunpack.c.l.bf16 %v6587
      %v6625 = vunpack.c.l.bf16 %v6588
      %v6626 = vunpack.c.l.bf16 %v6589
      %v6627 = vunpack.c.l.bf16 %v6590
      %v6628 = vunpack.c.l.bf16 %v6591
      %v6629 = vunpack.c.l.bf16 %v6592
      %v6630 = vunpack.c.l.bf16 %v6593
      %v6631 = vunpack.c.l.bf16 %v6594
      %v6632 = vld [vmem:[%s5] sm:$0x1]
      %v6634 = vperm.slane %v6632, 0
      %v6636 = vadd.f32 %v6522, %v6634
      %v6637 = vadd.f32 %v6523, %v6634
      %v6638 = vadd.f32 %v6524, %v6634
      %v6639 = vadd.f32 %v6525, %v6634
      %v6640 = vadd.f32 %v6526, %v6634
      %v6641 = vadd.f32 %v6527, %v6634
      %v6642 = vadd.f32 %v6528, %v6634
      %v6643 = vadd.f32 %v6529, %v6634
      %v6644 = vadd.f32 %v6530, %v6634
      %v6645 = vadd.f32 %v6531, %v6634
      %v6646 = vadd.f32 %v6532, %v6634
      %v6647 = vadd.f32 %v6533, %v6634
      %v6648 = vadd.f32 %v6534, %v6634
      %v6649 = vadd.f32 %v6535, %v6634
      %v6650 = vadd.f32 %v6536, %v6634
      %v6651 = vadd.f32 %v6537, %v6634
      %v6652 = vadd.f32 %v6538, %v6634
      %v6653 = vadd.f32 %v6539, %v6634
      %v6654 = vadd.f32 %v6540, %v6634
      %v6655 = vadd.f32 %v6541, %v6634
      %v6656 = vadd.f32 %v6542, %v6634
      %v6657 = vadd.f32 %v6543, %v6634
      %v6658 = vadd.f32 %v6544, %v6634
      %v6659 = vadd.f32 %v6545, %v6634
      %v6660 = vadd.f32 %v6546, %v6634
      %v6661 = vadd.f32 %v6547, %v6634
      %v6662 = vadd.f32 %v6548, %v6634
      %v6663 = vadd.f32 %v6549, %v6634
      %v6664 = vadd.f32 %v6550, %v6634
      %v6665 = vadd.f32 %v6551, %v6634
      %v6666 = vadd.f32 %v6552, %v6634
      %v6667 = vadd.f32 %v6553, %v6634
      %v6668 = vadd.f32 %v6554, %v6634
      %v6669 = vadd.f32 %v6555, %v6634
      %v6670 = vadd.f32 %v6556, %v6634
      %v6671 = vadd.f32 %v6557, %v6634
      %vm6709 = vcmask 1044480
      %v6710 = vrot.slane %v6595, 3
      %v6711 = vrot.slane %v6596, 3
      %v6712 = vsel %vm6709, %v6710, %v6711
      %v6713 = vrot.slane %v6597, 3
      %v6714 = vsel %vm6709, %v6711, %v6713
      %v6715 = vrot.slane %v6598, 3
      %v6716 = vsel %vm6709, %v6713, %v6715
      %v6717 = vrot.slane %v6599, 3
      %v6718 = vsel %vm6709, %v6715, %v6717
      %v6719 = vrot.slane %v6600, 3
      %v6720 = vsel %vm6709, %v6717, %v6719
      %v6721 = vrot.slane %v6601, 3
      %v6722 = vsel %vm6709, %v6719, %v6721
      %v6723 = vrot.slane %v6602, 3
      %v6724 = vsel %vm6709, %v6721, %v6723
      %v6725 = vrot.slane %v6603, 3
      %v6726 = vsel %vm6709, %v6723, %v6725
      %v6727 = vrot.slane %v6604, 3
      %v6728 = vsel %vm6709, %v6725, %v6727
      %v6729 = vrot.slane %v6605, 3
      %v6730 = vsel %vm6709, %v6727, %v6729
      %v6731 = vrot.slane %v6606, 3
      %v6732 = vsel %vm6709, %v6729, %v6731
      %v6733 = vrot.slane %v6607, 3
      %v6734 = vsel %vm6709, %v6731, %v6733
      %v6735 = vrot.slane %v6608, 3
      %v6736 = vsel %vm6709, %v6733, %v6735
      %v6737 = vrot.slane %v6609, 3
      %v6738 = vsel %vm6709, %v6735, %v6737
      %v6739 = vrot.slane %v6610, 3
      %v6740 = vsel %vm6709, %v6737, %v6739
      %v6741 = vrot.slane %v6611, 3
      %v6742 = vsel %vm6709, %v6739, %v6741
      %v6743 = vrot.slane %v6612, 3
      %v6744 = vsel %vm6709, %v6741, %v6743
      %v6745 = vrot.slane %v6613, 3
      %v6746 = vsel %vm6709, %v6743, %v6745
      %v6747 = vrot.slane %v6614, 3
      %v6748 = vsel %vm6709, %v6745, %v6747
      %v6749 = vrot.slane %v6615, 3
      %v6750 = vsel %vm6709, %v6747, %v6749
      %v6751 = vrot.slane %v6616, 3
      %v6752 = vsel %vm6709, %v6749, %v6751
      %v6753 = vrot.slane %v6617, 3
      %v6754 = vsel %vm6709, %v6751, %v6753
      %v6755 = vrot.slane %v6618, 3
      %v6756 = vsel %vm6709, %v6753, %v6755
      %v6757 = vrot.slane %v6619, 3
      %v6758 = vsel %vm6709, %v6755, %v6757
      %v6759 = vrot.slane %v6620, 3
      %v6760 = vsel %vm6709, %v6757, %v6759
      %v6761 = vrot.slane %v6621, 3
      %v6762 = vsel %vm6709, %v6759, %v6761
      %v6763 = vrot.slane %v6622, 3
      %v6764 = vsel %vm6709, %v6761, %v6763
      %v6765 = vrot.slane %v6623, 3
      %v6766 = vsel %vm6709, %v6763, %v6765
      %v6767 = vrot.slane %v6624, 3
      %v6768 = vsel %vm6709, %v6765, %v6767
      %v6769 = vrot.slane %v6625, 3
      %v6770 = vsel %vm6709, %v6767, %v6769
      %v6771 = vrot.slane %v6626, 3
      %v6772 = vsel %vm6709, %v6769, %v6771
      %v6773 = vrot.slane %v6627, 3
      %v6774 = vsel %vm6709, %v6771, %v6773
      %v6775 = vrot.slane %v6628, 3
      %v6776 = vsel %vm6709, %v6773, %v6775
      %v6777 = vrot.slane %v6629, 3
      %v6778 = vsel %vm6709, %v6775, %v6777
      %v6779 = vrot.slane %v6630, 3
      %v6780 = vsel %vm6709, %v6777, %v6779
      %v6781 = vrot.slane %v6631, 3
      %v6782 = vsel %vm6709, %v6779, %v6781
      %v6819 = vadd.f32 %v6636, %v6712
      %v6820 = vadd.f32 %v6637, %v6714
      %v6821 = vadd.f32 %v6638, %v6716
      %v6822 = vadd.f32 %v6639, %v6718
      %v6823 = vadd.f32 %v6640, %v6720
      %v6824 = vadd.f32 %v6641, %v6722
      %v6825 = vadd.f32 %v6642, %v6724
      %v6826 = vadd.f32 %v6643, %v6726
      %v6827 = vadd.f32 %v6644, %v6728
      %v6828 = vadd.f32 %v6645, %v6730
      %v6829 = vadd.f32 %v6646, %v6732
      %v6830 = vadd.f32 %v6647, %v6734
      %v6831 = vadd.f32 %v6648, %v6736
      %v6832 = vadd.f32 %v6649, %v6738
      %v6833 = vadd.f32 %v6650, %v6740
      %v6834 = vadd.f32 %v6651, %v6742
      %v6835 = vadd.f32 %v6652, %v6744
      %v6836 = vadd.f32 %v6653, %v6746
      %v6837 = vadd.f32 %v6654, %v6748
      %v6838 = vadd.f32 %v6655, %v6750
      %v6839 = vadd.f32 %v6656, %v6752
      %v6840 = vadd.f32 %v6657, %v6754
      %v6841 = vadd.f32 %v6658, %v6756
      %v6842 = vadd.f32 %v6659, %v6758
      %v6843 = vadd.f32 %v6660, %v6760
      %v6844 = vadd.f32 %v6661, %v6762
      %v6845 = vadd.f32 %v6662, %v6764
      %v6846 = vadd.f32 %v6663, %v6766
      %v6847 = vadd.f32 %v6664, %v6768
      %v6848 = vadd.f32 %v6665, %v6770
      %v6849 = vadd.f32 %v6666, %v6772
      %v6850 = vadd.f32 %v6667, %v6774
      %v6851 = vadd.f32 %v6668, %v6776
      %v6852 = vadd.f32 %v6669, %v6778
      %v6853 = vadd.f32 %v6670, %v6780
      %v6854 = vadd.f32 %v6671, %v6782
      %v6855 = vmax.f32 %v6819, 0.0
      %v6856 = vmax.f32 %v6820, 0.0
      %v6857 = vmax.f32 %v6821, 0.0
      %v6858 = vmax.f32 %v6822, 0.0
      %v6859 = vmax.f32 %v6823, 0.0
      %v6860 = vmax.f32 %v6824, 0.0
      %v6861 = vmax.f32 %v6825, 0.0
      %v6862 = vmax.f32 %v6826, 0.0
      %v6863 = vmax.f32 %v6827, 0.0
      %v6864 = vmax.f32 %v6828, 0.0
      %v6865 = vmax.f32 %v6829, 0.0
      %v6866 = vmax.f32 %v6830, 0.0
      %v6867 = vmax.f32 %v6831, 0.0
      %v6868 = vmax.f32 %v6832, 0.0
      %v6869 = vmax.f32 %v6833, 0.0
      %v6870 = vmax.f32 %v6834, 0.0
      %v6871 = vmax.f32 %v6835, 0.0
      %v6872 = vmax.f32 %v6836, 0.0
      %v6873 = vmax.f32 %v6837, 0.0
      %v6874 = vmax.f32 %v6838, 0.0
      %v6875 = vmax.f32 %v6839, 0.0
      %v6876 = vmax.f32 %v6840, 0.0
      %v6877 = vmax.f32 %v6841, 0.0
      %v6878 = vmax.f32 %v6842, 0.0
      %v6879 = vmax.f32 %v6843, 0.0
      %v6880 = vmax.f32 %v6844, 0.0
      %v6881 = vmax.f32 %v6845, 0.0
      %v6882 = vmax.f32 %v6846, 0.0
      %v6883 = vmax.f32 %v6847, 0.0
      %v6884 = vmax.f32 %v6848, 0.0
      %v6885 = vmax.f32 %v6849, 0.0
      %v6886 = vmax.f32 %v6850, 0.0
      %v6887 = vmax.f32 %v6851, 0.0
      %v6888 = vmax.f32 %v6852, 0.0
      %v6889 = vmax.f32 %v6853, 0.0
      %v6890 = vmax.f32 %v6854, 0.0
      %6891 = vst.msk [vmem:[%s251] sm:$0xff] %vm535, %v6855
      %6892 = vst.msk [vmem:[%s251 + $0x8] sm:$0xff] %vm535, %v6856
      %6893 = vst.msk [vmem:[%s251 + $0x10] sm:$0xff] %vm535, %v6857
      %6894 = vst.msk [vmem:[%s251 + $0x18] sm:$0xff] %vm535, %v6858
      %6895 = vst.msk [vmem:[%s251 + $0x20] sm:$0xff] %vm535, %v6859
      %6896 = vst.msk [vmem:[%s251 + $0x28] sm:$0xff] %vm535, %v6860
      %6897 = vst.msk [vmem:[%s251 + $0x30] sm:$0xff] %vm535, %v6861
      %6898 = vst.msk [vmem:[%s251 + $0x38] sm:$0xff] %vm535, %v6862
      %6899 = vst.msk [vmem:[%s251 + $0x40] sm:$0xff] %vm535, %v6863
      %6900 = vst.msk [vmem:[%s251 + $0x48] sm:$0xff] %vm535, %v6864
      %6901 = vst.msk [vmem:[%s251 + $0x50] sm:$0xff] %vm535, %v6865
      %6902 = vst.msk [vmem:[%s251 + $0x58] sm:$0xff] %vm535, %v6866
      %6903 = vst.msk [vmem:[%s251 + $0x60] sm:$0xff] %vm535, %v6867
      %6904 = vst.msk [vmem:[%s251 + $0x68] sm:$0xff] %vm535, %v6868
      %6905 = vst.msk [vmem:[%s251 + $0x70] sm:$0xff] %vm535, %v6869
      %6906 = vst.msk [vmem:[%s251 + $0x78] sm:$0xff] %vm535, %v6870
      %6907 = vst.msk [vmem:[%s251 + $0x80] sm:$0xff] %vm535, %v6871
      %6908 = vst.msk [vmem:[%s251 + $0x88] sm:$0xff] %vm535, %v6872
      %6909 = vst.msk [vmem:[%s251 + $0x90] sm:$0xff] %vm535, %v6873
      %6910 = vst.msk [vmem:[%s251 + $0x98] sm:$0xff] %vm535, %v6874
      %6911 = vst.msk [vmem:[%s251 + $0xa0] sm:$0xff] %vm535, %v6875
      %6912 = vst.msk [vmem:[%s251 + $0xa8] sm:$0xff] %vm535, %v6876
      %6913 = vst.msk [vmem:[%s251 + $0xb0] sm:$0xff] %vm535, %v6877
      %6914 = vst.msk [vmem:[%s251 + $0xb8] sm:$0xff] %vm535, %v6878
      %6915 = vst.msk [vmem:[%s251 + $0xc0] sm:$0xff] %vm535, %v6879
      %6916 = vst.msk [vmem:[%s251 + $0xc8] sm:$0xff] %vm535, %v6880
      %6917 = vst.msk [vmem:[%s251 + $0xd0] sm:$0xff] %vm535, %v6881
      %6918 = vst.msk [vmem:[%s251 + $0xd8] sm:$0xff] %vm535, %v6882
      %6919 = vst.msk [vmem:[%s251 + $0xe0] sm:$0xff] %vm535, %v6883
      %6920 = vst.msk [vmem:[%s251 + $0xe8] sm:$0xff] %vm535, %v6884
      %6921 = vst.msk [vmem:[%s251 + $0xf0] sm:$0xff] %vm535, %v6885
      %6922 = vst.msk [vmem:[%s251 + $0xf8] sm:$0xff] %vm535, %v6886
      %6923 = vst.msk [vmem:[%s251 + $0x100] sm:$0xff] %vm535, %v6887
      %6924 = vst.msk [vmem:[%s251 + $0x108] sm:$0xff] %vm535, %v6888
      %6925 = vst.msk [vmem:[%s251 + $0x110] sm:$0xff] %vm535, %v6889
      %6926 = vst.msk [vmem:[%s251 + $0x118] sm:$0xff] %vm535, %v6890
      %p6927 = scmp.lt.s32.totalorder %s17, 1
      %s6928 = scalar_select %p6927, %s17, 1
      %s6929 = smul.addr %s6928, 36
      %s6930 = smul.addr %s6929, 8
      %s6931 = scalar_lea.vmem %s6, %s6930
      // Predicated region
      $region45: #{tpu_custom_call.1} parent=43 // pred_check
        %p6932 = pneg %p166
      $region46: #{tpu_custom_call.1} parent=43 // pred_check_branch
        %6934 = sbr.rel (%p6932) target = $region48
      $region47: #{tpu_custom_call.1} parent=43 // pred_region
        _
      $region48: #{tpu_custom_call.1} parent=43 // pred_fallthru
        _
    $region44: #{tpu_custom_call.1} parent=5 // pred_fallthru
      _
    %p6935 = scmp.le.s32.totalorder 2, %s12
    // Predicated region
    $region49: #{tpu_custom_call.1} parent=5 // pred_check
      %p6936 = pneg %p6935
    $region50: #{tpu_custom_call.1} parent=5 // pred_check_branch
      %6938 = sbr.rel (%p6936) target = $region52
    $region51: #{tpu_custom_call.1} parent=5 // pred_region
      %s6939 = ssub.s32 %s12, 2
      // Predicated region
      $region53: #{tpu_custom_call.1} parent=51 // pred_check
        %p6940 = pneg %p172
      $region54: #{tpu_custom_call.1} parent=51 // pred_check_branch
        %6942 = sbr.rel (%p6940) target = $region56
      $region55: #{tpu_custom_call.1} parent=51 // pred_region
        %p6943 = scmp.lt.s32.totalorder %s18, 1
        %s6944 = scalar_select %p6943, %s18, 1
        %s6945 = smul.addr %s6944, 36
        %s6946 = smul.addr %s6945, 8
        %s6947 = scalar_lea.vmem %s6, %s6946
      $region56: #{tpu_custom_call.1} parent=51 // pred_fallthru
        _
    $region52: #{tpu_custom_call.1} parent=5 // pred_fallthru
      _
  $region6: #{tpu_custom_call.1} parent=0 // loop_footer
    %s16 = sadd.s32 1, %s12
  $region7: #{tpu_custom_call.1} parent=0 // loop_footer_branch
    %11 = sbr.rel target = $region3
  $region8: #{tpu_custom_call.1} parent=0 // loop_exit
    _

</llo_original>
